<compile_context>
chip_gen: v6e
topology: v6e:2x2x1
jax: 0.10.0
libtpu: 0.0.40
codegen_flags: <defaults>
</compile_context>

<pallas_src>
import math

import jax
import jax.numpy as jnp
from jax.experimental import pallas as pl
from jax.experimental.pallas import tpu as pltpu

# Model dims (from the PyTorch module)
IN_FEATURES = 8192   # fc1 input
H1 = 256             # fc1 output
H2 = 512             # embedding_layer / fc2 width
N_VALUE = 1          # critic head
N_LOGIT = 4          # actor head
HEAD = N_VALUE + N_LOGIT
HEAD_PAD = 128       # lane-dense fused head output width (zero padded)

TK = 2048            # fc1 K-tile for DMA/compute overlap (8192 / 2048 = 4 steps)


def actor_critic_kernel(x_ref, w1_ref, b1_ref,
                        wes_ref, wet_ref, be_ref,
                        w2_ref, b2_ref,
                        wh_ref, bh_ref,
                        out_ref, acc_ref):
    k = pl.program_id(0)

    @pl.when(k == 0)
    def _init():
        acc_ref[...] = jnp.zeros_like(acc_ref)

    # fc1 on stacked [state; target]: accumulate over K tiles in f32.
    acc_ref[...] += jnp.dot(x_ref[...], w1_ref[...],
                            preferred_element_type=jnp.float32)

    @pl.when(k == pl.num_programs(0) - 1)
    def _finalize():
        h1 = jnp.maximum(acc_ref[...] + b1_ref[...], 0.0)       # [2B, H1] f32
        b = h1.shape[0] // 2
        h1_s = h1[:b].astype(wes_ref.dtype)
        h1_t = h1[b:].astype(wet_ref.dtype)
        # concat([h1_s, h1_t], 1) @ We == h1_s @ We[:H1] + h1_t @ We[H1:]
        emb = (jnp.dot(h1_s, wes_ref[...], preferred_element_type=jnp.float32)
               + jnp.dot(h1_t, wet_ref[...], preferred_element_type=jnp.float32)
               + be_ref[...])
        h2 = jnp.maximum(emb, 0.0).astype(w2_ref.dtype)
        h3 = jnp.maximum(
            jnp.dot(h2, w2_ref[...], preferred_element_type=jnp.float32)
            + b2_ref[...], 0.0).astype(wh_ref.dtype)
        # fused critic+actor head (lane-padded to HEAD_PAD columns)
        out_ref[...] = (jnp.dot(h3, wh_ref[...], preferred_element_type=jnp.float32)
                        + bh_ref[...])


def actor_critic_forward(state_input, target_input, kp):
    B = state_input.shape[0]
    # XLA fuses concat + bf16 cast into a single small HBM op ahead of the kernel.
    x = jnp.concatenate([state_input, target_input], axis=0).astype(jnp.bfloat16)
    n_k = IN_FEATURES // TK

    grid_spec = pltpu.PrefetchScalarGridSpec(
        num_scalar_prefetch=0,
        grid=(n_k,),
        in_specs=[
            pl.BlockSpec((2 * B, TK), lambda k: (0, k)),      # stacked input
            pl.BlockSpec((TK, H1), lambda k: (k, 0)),         # w1 K-tile
            pl.BlockSpec((1, H1), lambda k: (0, 0)),          # b1
            pl.BlockSpec((H1, H2), lambda k: (0, 0)),         # we (state half)
            pl.BlockSpec((H1, H2), lambda k: (0, 0)),         # we (target half)
            pl.BlockSpec((1, H2), lambda k: (0, 0)),          # be
            pl.BlockSpec((H2, H2), lambda k: (0, 0)),         # w2
            pl.BlockSpec((1, H2), lambda k: (0, 0)),          # b2
            pl.BlockSpec((H2, HEAD_PAD), lambda k: (0, 0)),   # fused head weight
            pl.BlockSpec((1, HEAD_PAD), lambda k: (0, 0)),    # fused head bias
        ],
        out_specs=pl.BlockSpec((B, HEAD_PAD), lambda k: (0, 0)),
        scratch_shapes=[pltpu.VMEM((2 * B, H1), jnp.float32)],
    )

    head = pl.pallas_call(
        actor_critic_kernel,
        out_shape=jax.ShapeDtypeStruct((B, HEAD_PAD), jnp.float32),
        grid_spec=grid_spec,
        compiler_params=pltpu.CompilerParams(
            dimension_semantics=("arbitrary",),   # K axis is a reduction
            vmem_limit_bytes=16 << 20,            # safe on v5e/v6e/v7x; ~4 MiB actual
        ),
    )(x, kp["w1"], kp["b1"], kp["we_s"], kp["we_t"], kp["be"],
      kp["w2"], kp["b2"], kp["wh"], kp["bh"])

    value = head[:, :N_VALUE]
    logit = head[:, N_VALUE:N_VALUE + N_LOGIT]
    return value, logit


def init_params(key):
    """Deterministic init mirroring weights_init / normalized_columns_initializer."""
    ks = jax.random.split(key, 5)

    def linear(k, fan_in, fan_out):
        bound = math.sqrt(6.0 / (fan_in + fan_out))
        w = jax.random.uniform(k, (fan_in, fan_out), jnp.float32, -bound, bound)
        return w, jnp.zeros((1, fan_out), jnp.float32)

    def norm_cols(k, fan_in, fan_out, std):
        # PyTorch weight is [out, in], normalized along dim 1 (in); store transposed.
        w = jax.random.normal(k, (fan_out, fan_in), jnp.float32)
        w = w * std / jnp.sqrt(jnp.sum(w * w, axis=1, keepdims=True))
        return w.T, jnp.zeros((1, fan_out), jnp.float32)

    w1, b1 = linear(ks[0], IN_FEATURES, H1)        # fc1
    we, be = linear(ks[1], 2 * H1, H2)             # embedding_layer
    w2, b2 = linear(ks[2], H2, H2)                 # fc2
    wc, bc = norm_cols(ks[3], H2, N_VALUE, 1.0)    # critic_linear
    wa, ba = norm_cols(ks[4], H2, N_LOGIT, 0.01)   # actor_linear
    return dict(w1=w1, b1=b1, we=we, be=be, w2=w2, b2=b2,
                wc=wc, bc=bc, wa=wa, ba=ba)


def prepare_kernel_params(p):
    """One-time repack: bf16 weights, split embedding weight, fused+padded head."""
    wh = jnp.concatenate([p["wc"], p["wa"]], axis=1)            # [H2, 5]
    bh = jnp.concatenate([p["bc"], p["ba"]], axis=1)            # [1, 5]
    wh = jnp.pad(wh, ((0, 0), (0, HEAD_PAD - HEAD)))
    bh = jnp.pad(bh, ((0, 0), (0, HEAD_PAD - HEAD)))
    return dict(
        w1=p["w1"].astype(jnp.bfloat16),
        b1=p["b1"],
        we_s=p["we"][:H1].astype(jnp.bfloat16),
        we_t=p["we"][H1:].astype(jnp.bfloat16),
        be=p["be"],
        w2=p["w2"].astype(jnp.bfloat16),
        b2=p["b2"],
        wh=wh.astype(jnp.bfloat16),
        bh=bh,
    )


def reference_forward(state_input, target_input, kp):
    """Pure-JAX reference with the same bf16-weight / f32-accumulate dtype flow."""
    def dot(a, b):
        return jnp.dot(a.astype(jnp.bfloat16), b,
                       preferred_element_type=jnp.float32)

    h1_s = jnp.maximum(dot(state_input, kp["w1"]) + kp["b1"], 0.0)
    h1_t = jnp.maximum(dot(target_input, kp["w1"]) + kp["b1"], 0.0)
    emb = dot(h1_s, kp["we_s"]) + dot(h1_t, kp["we_t"]) + kp["be"]
    h2 = jnp.maximum(emb, 0.0)
    h3 = jnp.maximum(dot(h2, kp["w2"]) + kp["b2"], 0.0)
    head = dot(h3, kp["wh"]) + kp["bh"]
    return head[:, :N_VALUE], head[:, N_VALUE:N_VALUE + N_LOGIT]


if __name__ == "__main__":
    key = jax.random.PRNGKey(0)
    k_s, k_t, k_p = jax.random.split(key, 3)

    B = 2
    state_input = jax.random.normal(k_s, (B, IN_FEATURES), jnp.float32)
    target_input = jax.random.normal(k_t, (B, IN_FEATURES), jnp.float32)

    params = init_params(k_p)
    kparams = prepare_kernel_params(params)

    fwd = jax.jit(actor_critic_forward)
    value, logit = fwd(state_input, target_input, kparams)
    jax.block_until_ready((value, logit))

    ref_value, ref_logit = reference_forward(state_input, target_input, kparams)
    assert value.shape == (B, N_VALUE) and logit.shape == (B, N_LOGIT)
    assert jnp.allclose(value, ref_value, atol=2e-3, rtol=2e-3)
    assert jnp.allclose(logit, ref_logit, atol=2e-3, rtol=2e-3)

    print("KERNEL_OK")
</pallas_src>

<mosaic_0001>
module attributes {stable_mosaic.version = 11 : i64} {
  func.func @actor_critic_kernel(%arg0: i32, %arg1: memref<4x2048xbf16, #tpu.memory_space<vmem>>, %arg2: memref<2048x256xbf16, #tpu.memory_space<vmem>>, %arg3: memref<1x256xf32, #tpu.memory_space<vmem>>, %arg4: memref<256x512xbf16, #tpu.memory_space<vmem>>, %arg5: memref<256x512xbf16, #tpu.memory_space<vmem>>, %arg6: memref<1x512xf32, #tpu.memory_space<vmem>>, %arg7: memref<512x512xbf16, #tpu.memory_space<vmem>>, %arg8: memref<1x512xf32, #tpu.memory_space<vmem>>, %arg9: memref<512x128xbf16, #tpu.memory_space<vmem>>, %arg10: memref<1x128xf32, #tpu.memory_space<vmem>>, %arg11: memref<2x128xf32, #tpu.memory_space<vmem>>, %arg12: memref<4x256xf32, #tpu.memory_space<vmem>>) attributes {dimension_semantics = [#tpu.dimension_semantics<arbitrary>], iteration_bounds = array<i64: 4>, scalar_prefetch = 0 : i64, scratch_operands = 1 : i64, tpu.core_type = #tpu.core_type<tc>, window_params = [{transform_indices = @transform_0, window_bounds = array<i64: 4, 2048>}, {transform_indices = @transform_1, window_bounds = array<i64: 2048, 256>}, {pipeline_mode = #tpu.pipeline_mode<synchronous>, transform_indices = @transform_2, window_bounds = array<i64: 1, 256>}, {pipeline_mode = #tpu.pipeline_mode<synchronous>, transform_indices = @transform_3, window_bounds = array<i64: 256, 512>}, {pipeline_mode = #tpu.pipeline_mode<synchronous>, transform_indices = @transform_4, window_bounds = array<i64: 256, 512>}, {pipeline_mode = #tpu.pipeline_mode<synchronous>, transform_indices = @transform_5, window_bounds = array<i64: 1, 512>}, {pipeline_mode = #tpu.pipeline_mode<synchronous>, transform_indices = @transform_6, window_bounds = array<i64: 512, 512>}, {pipeline_mode = #tpu.pipeline_mode<synchronous>, transform_indices = @transform_7, window_bounds = array<i64: 1, 512>}, {pipeline_mode = #tpu.pipeline_mode<synchronous>, transform_indices = @transform_8, window_bounds = array<i64: 512, 128>}, {pipeline_mode = #tpu.pipeline_mode<synchronous>, transform_indices = @transform_9, window_bounds = array<i64: 1, 128>}, {pipeline_mode = #tpu.pipeline_mode<synchronous>, transform_indices = @transform_10, window_bounds = array<i64: 2, 128>}]} {
    %c0_i32 = arith.constant 0 : i32
    %0 = arith.cmpi eq, %arg0, %c0_i32 : i32
    %1 = arith.extui %0 : i1 to i32
    %c0_i32_0 = arith.constant 0 : i32
    %2 = arith.cmpi ne, %1, %c0_i32_0 : i32
    scf.if %2 {
      %cst_9 = arith.constant 0.000000e+00 : f32
      %12 = vector.broadcast %cst_9 : f32 to vector<4x256xf32>
      %c0_10 = arith.constant 0 : index
      %c0_11 = arith.constant 0 : index
      %13 = vector.load %arg12[%c0_10, %c0_11] : memref<4x256xf32, #tpu.memory_space<vmem>>, vector<4x256xf32>
      tpu.vector_store %arg12[%c0_10, %c0_11], %12 {strides = array<i32>} : memref<4x256xf32, #tpu.memory_space<vmem>>, vector<4x256xf32>,
    } else {
    }
    %c0 = arith.constant 0 : index
    %c0_1 = arith.constant 0 : index
    %3 = vector.load %arg12[%c0, %c0_1] : memref<4x256xf32, #tpu.memory_space<vmem>>, vector<4x256xf32>
    %c0_2 = arith.constant 0 : index
    %c0_3 = arith.constant 0 : index
    %4 = vector.load %arg1[%c0_2, %c0_3] : memref<4x2048xbf16, #tpu.memory_space<vmem>>, vector<4x2048xbf16>
    %c0_4 = arith.constant 0 : index
    %c0_5 = arith.constant 0 : index
    %5 = vector.load %arg2[%c0_4, %c0_5] : memref<2048x256xbf16, #tpu.memory_space<vmem>>, vector<2048x256xbf16>
    %cst = arith.constant dense<0.000000e+00> : vector<4x256xf32>
    %6 = tpu.matmul %4, %5, %cst {dimension_numbers = #tpu.dot_dimension_numbers<[1], [0], [0], [1], [0, 0, 1, 1], [], []>} : vector<4x2048xbf16>, vector<2048x256xbf16>, vector<4x256xf32> -> vector<4x256xf32>
    %7 = arith.addf %3, %6 : vector<4x256xf32>
    %c0_6 = arith.constant 0 : index
    %c0_7 = arith.constant 0 : index
    %8 = vector.load %arg12[%c0_6, %c0_7] : memref<4x256xf32, #tpu.memory_space<vmem>>, vector<4x256xf32>
    tpu.vector_store %arg12[%c0_6, %c0_7], %7 {strides = array<i32>} : memref<4x256xf32, #tpu.memory_space<vmem>>, vector<4x256xf32>,
    %c3_i32 = arith.constant 3 : i32
    %9 = arith.cmpi eq, %arg0, %c3_i32 : i32
    %10 = arith.extui %9 : i1 to i32
    %c0_i32_8 = arith.constant 0 : i32
    %11 = arith.cmpi ne, %10, %c0_i32_8 : i32
    scf.if %11 {
      %c0_9 = arith.constant 0 : index
      %c0_10 = arith.constant 0 : index
      %12 = vector.load %arg12[%c0_9, %c0_10] : memref<4x256xf32, #tpu.memory_space<vmem>>, vector<4x256xf32>
      %c0_11 = arith.constant 0 : index
      %c0_12 = arith.constant 0 : index
      %13 = vector.load %arg3[%c0_11, %c0_12] : memref<1x256xf32, #tpu.memory_space<vmem>>, vector<1x256xf32>
      %14 = vector.broadcast %13 : vector<1x256xf32> to vector<4x256xf32>
      %15 = arith.addf %12, %14 : vector<4x256xf32>
      %cst_13 = arith.constant 0.000000e+00 : f32
      %16 = vector.broadcast %cst_13 : f32 to vector<4x256xf32>
      %17 = arith.maximumf %15, %16 : vector<4x256xf32>
      %18 = vector.extract_strided_slice %17 {offsets = [0, 0], sizes = [2, 256], strides = [1, 1]} : vector<4x256xf32> to vector<2x256xf32>
      %19 = arith.truncf %18 : vector<2x256xf32> to vector<2x256xbf16>
      %20 = vector.extract_strided_slice %17 {offsets = [2, 0], sizes = [2, 256], strides = [1, 1]} : vector<4x256xf32> to vector<2x256xf32>
      %21 = arith.truncf %20 : vector<2x256xf32> to vector<2x256xbf16>
      %c0_14 = arith.constant 0 : index
      %c0_15 = arith.constant 0 : index
      %22 = vector.load %arg4[%c0_14, %c0_15] : memref<256x512xbf16, #tpu.memory_space<vmem>>, vector<256x512xbf16>
      %cst_16 = arith.constant dense<0.000000e+00> : vector<2x512xf32>
      %23 = tpu.matmul %19, %22, %cst_16 {dimension_numbers = #tpu.dot_dimension_numbers<[1], [0], [0], [1], [0, 0, 1, 1], [], []>} : vector<2x256xbf16>, vector<256x512xbf16>, vector<2x512xf32> -> vector<2x512xf32>
      %c0_17 = arith.constant 0 : index
      %c0_18 = arith.constant 0 : index
      %24 = vector.load %arg5[%c0_17, %c0_18] : memref<256x512xbf16, #tpu.memory_space<vmem>>, vector<256x512xbf16>
      %cst_19 = arith.constant dense<0.000000e+00> : vector<2x512xf32>
      %25 = tpu.matmul %21, %24, %cst_19 {dimension_numbers = #tpu.dot_dimension_numbers<[1], [0], [0], [1], [0, 0, 1, 1], [], []>} : vector<2x256xbf16>, vector<256x512xbf16>, vector<2x512xf32> -> vector<2x512xf32>
      %26 = arith.addf %23, %25 : vector<2x512xf32>
      %c0_20 = arith.constant 0 : index
      %c0_21 = arith.constant 0 : index
      %27 = vector.load %arg6[%c0_20, %c0_21] : memref<1x512xf32, #tpu.memory_space<vmem>>, vector<1x512xf32>
      %28 = vector.broadcast %27 : vector<1x512xf32> to vector<2x512xf32>
      %29 = arith.addf %26, %28 : vector<2x512xf32>
      %cst_22 = arith.constant 0.000000e+00 : f32
      %30 = vector.broadcast %cst_22 : f32 to vector<2x512xf32>
      %31 = arith.maximumf %29, %30 : vector<2x512xf32>
      %32 = arith.truncf %31 : vector<2x512xf32> to vector<2x512xbf16>
      %c0_23 = arith.constant 0 : index
      %c0_24 = arith.constant 0 : index
      %33 = vector.load %arg7[%c0_23, %c0_24] : memref<512x512xbf16, #tpu.memory_space<vmem>>, vector<512x512xbf16>
      %cst_25 = arith.constant dense<0.000000e+00> : vector<2x512xf32>
      %34 = tpu.matmul %32, %33, %cst_25 {dimension_numbers = #tpu.dot_dimension_numbers<[1], [0], [0], [1], [0, 0, 1, 1], [], []>} : vector<2x512xbf16>, vector<512x512xbf16>, vector<2x512xf32> -> vector<2x512xf32>
      %c0_26 = arith.constant 0 : index
      %c0_27 = arith.constant 0 : index
      %35 = vector.load %arg8[%c0_26, %c0_27] : memref<1x512xf32, #tpu.memory_space<vmem>>, vector<1x512xf32>
      %36 = vector.broadcast %35 : vector<1x512xf32> to vector<2x512xf32>
      %37 = arith.addf %34, %36 : vector<2x512xf32>
      %cst_28 = arith.constant 0.000000e+00 : f32
      %38 = vector.broadcast %cst_28 : f32 to vector<2x512xf32>
      %39 = arith.maximumf %37, %38 : vector<2x512xf32>
      %40 = arith.truncf %39 : vector<2x512xf32> to vector<2x512xbf16>
      %c0_29 = arith.constant 0 : index
      %c0_30 = arith.constant 0 : index
      %41 = vector.load %arg9[%c0_29, %c0_30] : memref<512x128xbf16, #tpu.memory_space<vmem>>, vector<512x128xbf16>
      %cst_31 = arith.constant dense<0.000000e+00> : vector<2x128xf32>
      %42 = tpu.matmul %40, %41, %cst_31 {dimension_numbers = #tpu.dot_dimension_numbers<[1], [0], [0], [1], [0, 0, 1, 1], [], []>} : vector<2x512xbf16>, vector<512x128xbf16>, vector<2x128xf32> -> vector<2x128xf32>
      %c0_32 = arith.constant 0 : index
      %c0_33 = arith.constant 0 : index
      %43 = vector.load %arg10[%c0_32, %c0_33] : memref<1x128xf32, #tpu.memory_space<vmem>>, vector<1x128xf32>
      %44 = vector.broadcast %43 : vector<1x128xf32> to vector<2x128xf32>
      %45 = arith.addf %42, %44 : vector<2x128xf32>
      %c0_34 = arith.constant 0 : index
      %c0_35 = arith.constant 0 : index
      %46 = vector.load %arg11[%c0_34, %c0_35] : memref<2x128xf32, #tpu.memory_space<vmem>>, vector<2x128xf32>
      tpu.vector_store %arg11[%c0_34, %c0_35], %45 {strides = array<i32>} : memref<2x128xf32, #tpu.memory_space<vmem>>, vector<2x128xf32>,
    } else {
    }
    return
  }
  func.func @transform_0(%arg0: i32) -> (i32, i32) {
    %c0_i32 = arith.constant 0 : i32
    %c0_i32_0 = arith.constant 0 : i32
    return %c0_i32, %arg0 : i32, i32
  }
  func.func @transform_1(%arg0: i32) -> (i32, i32) {
    %c0_i32 = arith.constant 0 : i32
    %c0_i32_0 = arith.constant 0 : i32
    return %arg0, %c0_i32 : i32, i32
  }
  func.func @transform_2(%arg0: i32) -> (i32, i32) {
    %c0_i32 = arith.constant 0 : i32
    %c0_i32_0 = arith.constant 0 : i32
    %c0_i32_1 = arith.constant 0 : i32
    return %c0_i32, %c0_i32_0 : i32, i32
  }
  func.func @transform_3(%arg0: i32) -> (i32, i32) {
    %c0_i32 = arith.constant 0 : i32
    %c0_i32_0 = arith.constant 0 : i32
    %c0_i32_1 = arith.constant 0 : i32
    return %c0_i32, %c0_i32_0 : i32, i32
  }
  func.func @transform_4(%arg0: i32) -> (i32, i32) {
    %c0_i32 = arith.constant 0 : i32
    %c0_i32_0 = arith.constant 0 : i32
    %c0_i32_1 = arith.constant 0 : i32
    return %c0_i32, %c0_i32_0 : i32, i32
  }
  func.func @transform_5(%arg0: i32) -> (i32, i32) {
    %c0_i32 = arith.constant 0 : i32
    %c0_i32_0 = arith.constant 0 : i32
    %c0_i32_1 = arith.constant 0 : i32
    return %c0_i32, %c0_i32_0 : i32, i32
  }
  func.func @transform_6(%arg0: i32) -> (i32, i32) {
    %c0_i32 = arith.constant 0 : i32
    %c0_i32_0 = arith.constant 0 : i32
    %c0_i32_1 = arith.constant 0 : i32
    return %c0_i32, %c0_i32_0 : i32, i32
  }
  func.func @transform_7(%arg0: i32) -> (i32, i32) {
    %c0_i32 = arith.constant 0 : i32
    %c0_i32_0 = arith.constant 0 : i32
    %c0_i32_1 = arith.constant 0 : i32
    return %c0_i32, %c0_i32_0 : i32, i32
  }
  func.func @transform_8(%arg0: i32) -> (i32, i32) {
    %c0_i32 = arith.constant 0 : i32
    %c0_i32_0 = arith.constant 0 : i32
    %c0_i32_1 = arith.constant 0 : i32
    return %c0_i32, %c0_i32_0 : i32, i32
  }
  func.func @transform_9(%arg0: i32) -> (i32, i32) {
    %c0_i32 = arith.constant 0 : i32
    %c0_i32_0 = arith.constant 0 : i32
    %c0_i32_1 = arith.constant 0 : i32
    return %c0_i32, %c0_i32_0 : i32, i32
  }
  func.func @transform_10(%arg0: i32) -> (i32, i32) {
    %c0_i32 = arith.constant 0 : i32
    %c0_i32_0 = arith.constant 0 : i32
    %c0_i32_1 = arith.constant 0 : i32
    return %c0_i32, %c0_i32_0 : i32, i32
  }
}

</mosaic_0001>

<llo_original>
// kernel: actor_critic_forward.1
$region0: #{actor_critic_forward.1}
  #allocation0 [shape = 'u32[]', space=smem, size = 0x4, offset = 0x4, fixed_abs, tag = 'smem constant byte address 0x4 - core index']
  #allocation1 [shape = 'u32[144,128]{1,0:T(1,128)}', space=vmem, size = 0x12000, scoped, tag = 'internal scratch']
  #allocation2 [shape = 'f32[4,256]{1,0:T(4,128)}', space=vmem, size = 0x1000, scoped, tag = 'scratch operand']
  %s0 = inlined_call_operand.vmem [shape: bf16[4,8192], index: 0, kind: input, shape index: {}]
  %s1 = inlined_call_operand.hbm [shape: bf16[8192,256], index: 1, kind: input, shape index: {}]
  %s2 = inlined_call_operand.hbm [shape: f32[1,256], index: 2, kind: input, shape index: {}]
  %s3 = inlined_call_operand.hbm [shape: bf16[256,512], index: 3, kind: input, shape index: {}]
  %s4 = inlined_call_operand.hbm [shape: bf16[256,512], index: 4, kind: input, shape index: {}]
  %s5 = inlined_call_operand.hbm [shape: f32[1,512], index: 5, kind: input, shape index: {}]
  %s6 = inlined_call_operand.hbm [shape: bf16[512,512], index: 6, kind: input, shape index: {}]
  %s7 = inlined_call_operand.hbm [shape: f32[1,512], index: 7, kind: input, shape index: {}]
  %s8 = inlined_call_operand.hbm [shape: bf16[512,128], index: 8, kind: input, shape index: {}]
  %s9 = inlined_call_operand.hbm [shape: f32[1,128], index: 9, kind: input, shape index: {}]
  %s10 = inlined_call_operand.vmem [shape: f32[2,128], index: 10, kind: output, shape index: {}]
  %s11 = sld [smem:[#allocation0]]
  $region117: #{actor_critic_forward.1} parent=0
    _
  %s13 = ssub.s32 1, %s11
  %s14 = scalar_select 0, %s13, %s11
  $region1: #{actor_critic_forward.1} parent=0
    #allocation3 [shape = 'u8[2097152]{0}', space=vmem, size = 0x200000, scoped, tag = 'input window, operand 1']
    #allocation4 [shape = 's32[2]{0}', space=sflag, size = 0x8, scoped, tag = 'scoped memory for actor_critic_forward.1']
    #allocation5 [shape = 'u8[1024]{0}', space=vmem, size = 0x400, scoped, tag = 'input window, operand 2, single buffered']
    #allocation6 [shape = 's32[1]{0}', space=sflag, size = 0x4, scoped, tag = 'scoped memory for actor_critic_forward.1']
    #allocation7 [shape = 'u8[262144]{0}', space=vmem, size = 0x40000, scoped, tag = 'input window, operand 3, single buffered']
    #allocation8 [shape = 'u8[262144]{0}', space=vmem, size = 0x40000, scoped, tag = 'input window, operand 4, single buffered']
    #allocation9 [shape = 's32[1]{0}', space=sflag, size = 0x4, scoped, tag = 'scoped memory for actor_critic_forward.1']
    #allocation10 [shape = 'u8[2048]{0}', space=vmem, size = 0x800, scoped, tag = 'input window, operand 5, single buffered']
    #allocation11 [shape = 'u8[524288]{0}', space=vmem, size = 0x80000, scoped, tag = 'input window, operand 6, single buffered']
    #allocation12 [shape = 's32[1]{0}', space=sflag, size = 0x4, scoped, tag = 'scoped memory for actor_critic_forward.1']
    #allocation13 [shape = 'u8[2048]{0}', space=vmem, size = 0x800, scoped, tag = 'input window, operand 7, single buffered']
    #allocation14 [shape = 'u8[131072]{0}', space=vmem, size = 0x20000, scoped, tag = 'input window, operand 8, single buffered']
    #allocation15 [shape = 's32[1]{0}', space=sflag, size = 0x4, scoped, tag = 'scoped memory for actor_critic_forward.1']
    #allocation16 [shape = 'u8[512]{0}', space=vmem, size = 0x400, scoped, tag = 'input window, operand 9, single buffered']
    %15 = vsyncpa [#allocation4], 0
    %s16 = scalar_lea.sflag [#allocation4], 1
    %17 = vsyncpa %s16, 0
    %18 = vsyncpa [#allocation6], 0
    %19 = vsyncpa [#allocation9], 0
    %20 = vsyncpa [#allocation12], 0
    %21 = vsyncpa [#allocation15], 0
    loop: start=0, step=1, limit=6
    $region2: #{actor_critic_forward.1} parent=1 // loop_pre_header
      _
    $region3: #{actor_critic_forward.1} parent=1 // loop_header
      %s23 = sphi 0, %s27
      %p24 = scmp.ge.s32.totalorder %s23, 6
      %s33 = sphi 0, %s35
      %s36 = sphi 0, %s33
      %s37 = sphi 0, %s36
      %s53 = sphi 0, %s37
      %s59 = sphi 0, %s61
      %s62 = sphi 0, %s59
      %s63 = sphi 0, %s62
      %s79 = sphi 0, %s63
      %s83 = sphi 0, %s83
      %s85 = sphi 0, %s83
      %s86 = sphi 0, %s85
      %s100 = sphi 0, %s86
      %s104 = sphi 0, %s104
      %s106 = sphi 0, %s104
      %s107 = sphi 0, %s106
      %s121 = sphi 0, %s107
      %s125 = sphi 0, %s125
      %s127 = sphi 0, %s125
      %s128 = sphi 0, %s127
      %s142 = sphi 0, %s128
      %s146 = sphi 0, %s146
      %s148 = sphi 0, %s146
      %s149 = sphi 0, %s148
      %s163 = sphi 0, %s149
      %s167 = sphi 0, %s167
      %s169 = sphi 0, %s167
      %s170 = sphi 0, %s169
      %s184 = sphi 0, %s170
      %s188 = sphi 0, %s188
      %s190 = sphi 0, %s188
      %s191 = sphi 0, %s190
      %s205 = sphi 0, %s191
      %s209 = sphi 0, %s209
      %s211 = sphi 0, %s209
      %s212 = sphi 0, %s211
      %s226 = sphi 0, %s212
      %s230 = sphi 0, %s230
      %s232 = sphi 0, %s230
      %s233 = sphi 0, %s232
      %s247 = sphi 0, %s233
      %s251 = sphi 0, %s251
      %s253 = sphi 0, %s251
      %s254 = sphi 0, %s253
      %s268 = sphi 0, %s254
    $region4: #{actor_critic_forward.1} parent=1 // loop_header_branch
      %26 = sbr.rel (%p24) target = $region8
    $region5: #{actor_critic_forward.1} parent=1 // loop_body
      %s28 = ssub.s32 %s23, 1
      %s29 = ssub.s32 %s23, 2
      %s30 = sadd.s32 %s23, 1
      %s31 = ssub.s32 %s23, %s30
      %p32 = scmp.eq.s32.totalorder %s31, 0
      %s34 = sadd.s32 %s33, 1
      %s35 = scalar_select %p32, %s33, %s34
      %p38 = pneg %p32
      %p39 = scmp.eq.s32.totalorder %s23, 3
      %p40 = por %p38, %p39
      %p41 = scmp.ne.s32.totalorder %s33, %s36
      %p42 = scmp.eq.s32.totalorder %s23, 0
      %p43 = por %p41, %p42
      %p44 = scmp.ne.s32.totalorder %s33, %s36
      %p45 = scmp.eq.s32.totalorder %s28, 3
      %p46 = por %p44, %p45
      %p47 = scmp.ne.s32.totalorder %s36, %s37
      %p48 = scmp.eq.s32.totalorder %s28, 0
      %p49 = por %p47, %p48
      %p50 = scmp.ne.s32.totalorder %s36, %s37
      %p51 = scmp.eq.s32.totalorder %s29, 3
      %p52 = por %p50, %p51
      %p54 = scmp.ne.s32.totalorder %s37, %s53
      %p55 = scmp.eq.s32.totalorder %s29, 0
      %p56 = por %p54, %p55
      %s57 = ssub.s32 %s23, %s30
      %p58 = scmp.eq.s32.totalorder %s57, 0
      %s60 = sadd.s32 %s59, 1
      %s61 = scalar_select %p58, %s59, %s60
      %p64 = pneg %p58
      %p65 = scmp.eq.s32.totalorder %s23, 3
      %p66 = por %p64, %p65
      %p67 = scmp.ne.s32.totalorder %s59, %s62
      %p68 = scmp.eq.s32.totalorder %s23, 0
      %p69 = por %p67, %p68
      %p70 = scmp.ne.s32.totalorder %s59, %s62
      %p71 = scmp.eq.s32.totalorder %s28, 3
      %p72 = por %p70, %p71
      %p73 = scmp.ne.s32.totalorder %s62, %s63
      %p74 = scmp.eq.s32.totalorder %s28, 0
      %p75 = por %p73, %p74
      %p76 = scmp.ne.s32.totalorder %s62, %s63
      %p77 = scmp.eq.s32.totalorder %s29, 3
      %p78 = por %p76, %p77
      %p80 = scmp.ne.s32.totalorder %s63, %s79
      %p81 = scmp.eq.s32.totalorder %s29, 0
      %p82 = por %p80, %p81
      %s84 = sadd.s32 %s83, 1
      %p87 = scmp.eq.s32.totalorder %s23, 3
      %p88 = scmp.ne.s32.totalorder %s83, %s85
      %p89 = scmp.eq.s32.totalorder %s23, 0
      %p90 = por %p88, %p89
      %p91 = scmp.ne.s32.totalorder %s83, %s85
      %p92 = scmp.eq.s32.totalorder %s28, 3
      %p93 = por %p91, %p92
      %p94 = scmp.ne.s32.totalorder %s85, %s86
      %p95 = scmp.eq.s32.totalorder %s28, 0
      %p96 = por %p94, %p95
      %p97 = scmp.ne.s32.totalorder %s85, %s86
      %p98 = scmp.eq.s32.totalorder %s29, 3
      %p99 = por %p97, %p98
      %p101 = scmp.ne.s32.totalorder %s86, %s100
      %p102 = scmp.eq.s32.totalorder %s29, 0
      %p103 = por %p101, %p102
      %s105 = sadd.s32 %s104, 1
      %p108 = scmp.eq.s32.totalorder %s23, 3
      %p109 = scmp.ne.s32.totalorder %s104, %s106
      %p110 = scmp.eq.s32.totalorder %s23, 0
      %p111 = por %p109, %p110
      %p112 = scmp.ne.s32.totalorder %s104, %s106
      %p113 = scmp.eq.s32.totalorder %s28, 3
      %p114 = por %p112, %p113
      %p115 = scmp.ne.s32.totalorder %s106, %s107
      %p116 = scmp.eq.s32.totalorder %s28, 0
      %p117 = por %p115, %p116
      %p118 = scmp.ne.s32.totalorder %s106, %s107
      %p119 = scmp.eq.s32.totalorder %s29, 3
      %p120 = por %p118, %p119
      %p122 = scmp.ne.s32.totalorder %s107, %s121
      %p123 = scmp.eq.s32.totalorder %s29, 0
      %p124 = por %p122, %p123
      %s126 = sadd.s32 %s125, 1
      %p129 = scmp.eq.s32.totalorder %s23, 3
      %p130 = scmp.ne.s32.totalorder %s125, %s127
      %p131 = scmp.eq.s32.totalorder %s23, 0
      %p132 = por %p130, %p131
      %p133 = scmp.ne.s32.totalorder %s125, %s127
      %p134 = scmp.eq.s32.totalorder %s28, 3
      %p135 = por %p133, %p134
      %p136 = scmp.ne.s32.totalorder %s127, %s128
      %p137 = scmp.eq.s32.totalorder %s28, 0
      %p138 = por %p136, %p137
      %p139 = scmp.ne.s32.totalorder %s127, %s128
      %p140 = scmp.eq.s32.totalorder %s29, 3
      %p141 = por %p139, %p140
      %p143 = scmp.ne.s32.totalorder %s128, %s142
      %p144 = scmp.eq.s32.totalorder %s29, 0
      %p145 = por %p143, %p144
      %s147 = sadd.s32 %s146, 1
      %p150 = scmp.eq.s32.totalorder %s23, 3
      %p151 = scmp.ne.s32.totalorder %s146, %s148
      %p152 = scmp.eq.s32.totalorder %s23, 0
      %p153 = por %p151, %p152
      %p154 = scmp.ne.s32.totalorder %s146, %s148
      %p155 = scmp.eq.s32.totalorder %s28, 3
      %p156 = por %p154, %p155
      %p157 = scmp.ne.s32.totalorder %s148, %s149
      %p158 = scmp.eq.s32.totalorder %s28, 0
      %p159 = por %p157, %p158
      %p160 = scmp.ne.s32.totalorder %s148, %s149
      %p161 = scmp.eq.s32.totalorder %s29, 3
      %p162 = por %p160, %p161
      %p164 = scmp.ne.s32.totalorder %s149, %s163
      %p165 = scmp.eq.s32.totalorder %s29, 0
      %p166 = por %p164, %p165
      %s168 = sadd.s32 %s167, 1
      %p171 = scmp.eq.s32.totalorder %s23, 3
      %p172 = scmp.ne.s32.totalorder %s167, %s169
      %p173 = scmp.eq.s32.totalorder %s23, 0
      %p174 = por %p172, %p173
      %p175 = scmp.ne.s32.totalorder %s167, %s169
      %p176 = scmp.eq.s32.totalorder %s28, 3
      %p177 = por %p175, %p176
      %p178 = scmp.ne.s32.totalorder %s169, %s170
      %p179 = scmp.eq.s32.totalorder %s28, 0
      %p180 = por %p178, %p179
      %p181 = scmp.ne.s32.totalorder %s169, %s170
      %p182 = scmp.eq.s32.totalorder %s29, 3
      %p183 = por %p181, %p182
      %p185 = scmp.ne.s32.totalorder %s170, %s184
      %p186 = scmp.eq.s32.totalorder %s29, 0
      %p187 = por %p185, %p186
      %s189 = sadd.s32 %s188, 1
      %p192 = scmp.eq.s32.totalorder %s23, 3
      %p193 = scmp.ne.s32.totalorder %s188, %s190
      %p194 = scmp.eq.s32.totalorder %s23, 0
      %p195 = por %p193, %p194
      %p196 = scmp.ne.s32.totalorder %s188, %s190
      %p197 = scmp.eq.s32.totalorder %s28, 3
      %p198 = por %p196, %p197
      %p199 = scmp.ne.s32.totalorder %s190, %s191
      %p200 = scmp.eq.s32.totalorder %s28, 0
      %p201 = por %p199, %p200
      %p202 = scmp.ne.s32.totalorder %s190, %s191
      %p203 = scmp.eq.s32.totalorder %s29, 3
      %p204 = por %p202, %p203
      %p206 = scmp.ne.s32.totalorder %s191, %s205
      %p207 = scmp.eq.s32.totalorder %s29, 0
      %p208 = por %p206, %p207
      %s210 = sadd.s32 %s209, 1
      %p213 = scmp.eq.s32.totalorder %s23, 3
      %p214 = scmp.ne.s32.totalorder %s209, %s211
      %p215 = scmp.eq.s32.totalorder %s23, 0
      %p216 = por %p214, %p215
      %p217 = scmp.ne.s32.totalorder %s209, %s211
      %p218 = scmp.eq.s32.totalorder %s28, 3
      %p219 = por %p217, %p218
      %p220 = scmp.ne.s32.totalorder %s211, %s212
      %p221 = scmp.eq.s32.totalorder %s28, 0
      %p222 = por %p220, %p221
      %p223 = scmp.ne.s32.totalorder %s211, %s212
      %p224 = scmp.eq.s32.totalorder %s29, 3
      %p225 = por %p223, %p224
      %p227 = scmp.ne.s32.totalorder %s212, %s226
      %p228 = scmp.eq.s32.totalorder %s29, 0
      %p229 = por %p227, %p228
      %s231 = sadd.s32 %s230, 1
      %p234 = scmp.eq.s32.totalorder %s23, 3
      %p235 = scmp.ne.s32.totalorder %s230, %s232
      %p236 = scmp.eq.s32.totalorder %s23, 0
      %p237 = por %p235, %p236
      %p238 = scmp.ne.s32.totalorder %s230, %s232
      %p239 = scmp.eq.s32.totalorder %s28, 3
      %p240 = por %p238, %p239
      %p241 = scmp.ne.s32.totalorder %s232, %s233
      %p242 = scmp.eq.s32.totalorder %s28, 0
      %p243 = por %p241, %p242
      %p244 = scmp.ne.s32.totalorder %s232, %s233
      %p245 = scmp.eq.s32.totalorder %s29, 3
      %p246 = por %p244, %p245
      %p248 = scmp.ne.s32.totalorder %s233, %s247
      %p249 = scmp.eq.s32.totalorder %s29, 0
      %p250 = por %p248, %p249
      %s252 = sadd.s32 %s251, 1
      %p255 = scmp.eq.s32.totalorder %s23, 3
      %p256 = scmp.ne.s32.totalorder %s251, %s253
      %p257 = scmp.eq.s32.totalorder %s23, 0
      %p258 = por %p256, %p257
      %p259 = scmp.ne.s32.totalorder %s251, %s253
      %p260 = scmp.eq.s32.totalorder %s28, 3
      %p261 = por %p259, %p260
      %p262 = scmp.ne.s32.totalorder %s253, %s254
      %p263 = scmp.eq.s32.totalorder %s28, 0
      %p264 = por %p262, %p263
      %p265 = scmp.ne.s32.totalorder %s253, %s254
      %p266 = scmp.eq.s32.totalorder %s29, 3
      %p267 = por %p265, %p266
      %p269 = scmp.ne.s32.totalorder %s254, %s268
      %p270 = scmp.eq.s32.totalorder %s29, 0
      %p271 = por %p269, %p270
      %p272 = scmp.le.s32.totalorder 1, %s23
      %p273 = scmp.lt.s32.totalorder %s23, 5
      %p274 = pnand %p272, %p273
      %p275 = pneg %p274
      // Predicated region
      $region9: #{actor_critic_forward.1} parent=5 // pred_check
        _
      $region10: #{actor_critic_forward.1} parent=5 // pred_check_branch
        %277 = sbr.rel (%p274) target = $region12
      $region11: #{actor_critic_forward.1} parent=5 // pred_region
        %s278 = ssub.s32 %s23, 1
        // Predicated region
        $region13: #{actor_critic_forward.1} parent=11 // pred_check
          %p279 = pneg %p96
        $region14: #{actor_critic_forward.1} parent=11 // pred_check_branch
          %281 = sbr.rel (%p279) target = $region16
        $region15: #{actor_critic_forward.1} parent=11 // pred_region
          %s283 = ssub.s32 32, 32
          %284 = vsyncadd [#allocation6], %s283
          %s286 = sshll.u32 [#allocation5], 4
          %s287 = int_to_ptr.vmem [resolvable:$true] %s286
          %289 = dma.hbm_to_vmem [thread:$0]  %s2, 32, %s287, [#allocation6]
        $region16: #{actor_critic_forward.1} parent=11 // pred_fallthru
          _
        // Predicated region
        $region17: #{actor_critic_forward.1} parent=11 // pred_check
          %p290 = pneg %p117
        $region18: #{actor_critic_forward.1} parent=11 // pred_check_branch
          %292 = sbr.rel (%p290) target = $region20
        $region19: #{actor_critic_forward.1} parent=11 // pred_region
          %s294 = ssub.s32 8192, 8192
          %295 = vsyncadd [#allocation6], %s294
          %s296 = sshll.u32 [#allocation7], 4
          %s297 = int_to_ptr.vmem [resolvable:$true] %s296
          %302 = dma.hbm_to_vmem [thread:$0]  %s3, 8192, %s297, [#allocation6], 256, 256, 16
        $region20: #{actor_critic_forward.1} parent=11 // pred_fallthru
          _
        // Predicated region
        $region21: #{actor_critic_forward.1} parent=11 // pred_check
          %p303 = pneg %p138
        $region22: #{actor_critic_forward.1} parent=11 // pred_check_branch
          %305 = sbr.rel (%p303) target = $region24
        $region23: #{actor_critic_forward.1} parent=11 // pred_region
          %s307 = ssub.s32 8192, 8192
          %308 = vsyncadd [#allocation9], %s307
          %s309 = sshll.u32 [#allocation8], 4
          %s310 = int_to_ptr.vmem [resolvable:$true] %s309
          %315 = dma.hbm_to_vmem [thread:$0]  %s4, 8192, %s310, [#allocation9], 256, 256, 16
        $region24: #{actor_critic_forward.1} parent=11 // pred_fallthru
          _
        // Predicated region
        $region25: #{actor_critic_forward.1} parent=11 // pred_check
          %p316 = pneg %p159
        $region26: #{actor_critic_forward.1} parent=11 // pred_check_branch
          %318 = sbr.rel (%p316) target = $region28
        $region27: #{actor_critic_forward.1} parent=11 // pred_region
          %s320 = ssub.s32 64, 64
          %321 = vsyncadd [#allocation9], %s320
          %s323 = sshll.u32 [#allocation10], 4
          %s324 = int_to_ptr.vmem [resolvable:$true] %s323
          %326 = dma.hbm_to_vmem [thread:$0]  %s5, 64, %s324, [#allocation9]
        $region28: #{actor_critic_forward.1} parent=11 // pred_fallthru
          _
        // Predicated region
        $region29: #{actor_critic_forward.1} parent=11 // pred_check
          %p327 = pneg %p180
        $region30: #{actor_critic_forward.1} parent=11 // pred_check_branch
          %329 = sbr.rel (%p327) target = $region32
        $region31: #{actor_critic_forward.1} parent=11 // pred_region
          %s331 = ssub.s32 16384, 16384
          %332 = vsyncadd [#allocation12], %s331
          %s333 = sshll.u32 [#allocation11], 4
          %s334 = int_to_ptr.vmem [resolvable:$true] %s333
          %339 = dma.hbm_to_vmem [thread:$0]  %s6, 16384, %s334, [#allocation12], 256, 256, 16
        $region32: #{actor_critic_forward.1} parent=11 // pred_fallthru
          _
        // Predicated region
        $region33: #{actor_critic_forward.1} parent=11 // pred_check
          %p340 = pneg %p201
        $region34: #{actor_critic_forward.1} parent=11 // pred_check_branch
          %342 = sbr.rel (%p340) target = $region36
        $region35: #{actor_critic_forward.1} parent=11 // pred_region
          %s344 = ssub.s32 64, 64
          %345 = vsyncadd [#allocation12], %s344
          %s347 = sshll.u32 [#allocation13], 4
          %s348 = int_to_ptr.vmem [resolvable:$true] %s347
          %350 = dma.hbm_to_vmem [thread:$0]  %s7, 64, %s348, [#allocation12]
        $region36: #{actor_critic_forward.1} parent=11 // pred_fallthru
          _
        // Predicated region
        $region37: #{actor_critic_forward.1} parent=11 // pred_check
          %p351 = pneg %p222
        $region38: #{actor_critic_forward.1} parent=11 // pred_check_branch
          %353 = sbr.rel (%p351) target = $region40
        $region39: #{actor_critic_forward.1} parent=11 // pred_region
          %s355 = ssub.s32 4096, 4096
          %356 = vsyncadd [#allocation15], %s355
          %s357 = sshll.u32 [#allocation14], 4
          %s358 = int_to_ptr.vmem [resolvable:$true] %s357
          %363 = dma.hbm_to_vmem [thread:$0]  %s8, 4096, %s358, [#allocation15], 64, 64, 4
        $region40: #{actor_critic_forward.1} parent=11 // pred_fallthru
          _
        // Predicated region
        $region41: #{actor_critic_forward.1} parent=11 // pred_check
          %p364 = pneg %p243
        $region42: #{actor_critic_forward.1} parent=11 // pred_check_branch
          %366 = sbr.rel (%p364) target = $region44
        $region43: #{actor_critic_forward.1} parent=11 // pred_region
          %s368 = ssub.s32 16, 16
          %369 = vsyncadd [#allocation15], %s368
          %s371 = sshll.u32 [#allocation16], 4
          %s372 = int_to_ptr.vmem [resolvable:$true] %s371
          %374 = dma.hbm_to_vmem [thread:$0]  %s9, 16, %s372, [#allocation15]
        $region44: #{actor_critic_forward.1} parent=11 // pred_fallthru
          _
      $region12: #{actor_critic_forward.1} parent=5 // pred_fallthru
        _
      %p375 = scmp.lt.s32.totalorder %s23, 4
      // Predicated region
      $region45: #{actor_critic_forward.1} parent=5 // pred_check
        %p376 = pneg %p375
      $region46: #{actor_critic_forward.1} parent=5 // pred_check_branch
        %378 = sbr.rel (%p376) target = $region48
      $region47: #{actor_critic_forward.1} parent=5 // pred_region
        // Predicated region
        $region49: #{actor_critic_forward.1} parent=47 // pred_check
          %p379 = pneg %p43
        $region50: #{actor_critic_forward.1} parent=47 // pred_check_branch
          %381 = sbr.rel (%p379) target = $region52
        $region51: #{actor_critic_forward.1} parent=47 // pred_region
          %s382 = smul.u32 16, %s23
          %p383 = scmp.lt.s32.totalorder %s382, 63
          %s384 = scalar_select %p383, %s382, 63
          %s385 = smul.addr %s384, 2
          %s386 = scalar_lea.vmem %s0, %s385
          %s387 = smul.u32 16, %s23
        $region52: #{actor_critic_forward.1} parent=47 // pred_fallthru
          _
        // Predicated region
        $region53: #{actor_critic_forward.1} parent=47 // pred_check
          %p388 = pneg %p69
        $region54: #{actor_critic_forward.1} parent=47 // pred_check_branch
          %390 = sbr.rel (%p388) target = $region56
        $region55: #{actor_critic_forward.1} parent=47 // pred_region
          %s391 = sand.u32 %s59, 1
          %s392 = scalar_lea.sflag [#allocation4], %s391
          %s393 = sand.u32 %s59, 1
          %s394 = smul.addr %s393, 2048
          %s395 = scalar_lea.vmem [#allocation3], %s394
          %s396 = smul.u32 256, %s23
          %s398 = ssub.s32 32768, 32768
          %399 = vsyncadd %s392, %s398
          %s400 = smul.addr %s396, 2
          %s401 = smul.addr %s400, 64
          %s402 = scalar_lea.hbm %s1, %s401
          %s403 = sshll.u32 %s395, 4
          %s404 = int_to_ptr.vmem [resolvable:$true] %s403
          %409 = dma.hbm_to_vmem [thread:$0]  %s402, 32768, %s404, %s392, 128, 128, 8
        $region56: #{actor_critic_forward.1} parent=47 // pred_fallthru
          _
      $region48: #{actor_critic_forward.1} parent=5 // pred_fallthru
        _
      %p410 = scmp.le.s32.totalorder 1, %s23
      %p411 = scmp.lt.s32.totalorder %s23, 5
      %p412 = pnand %p410, %p411
      %p413 = pneg %p412
      // Predicated region
      $region57: #{actor_critic_forward.1} parent=5 // pred_check
        _
      $region58: #{actor_critic_forward.1} parent=5 // pred_check_branch
        %415 = sbr.rel (%p412) target = $region60
      $region59: #{actor_critic_forward.1} parent=5 // pred_region
        %s416 = ssub.s32 %s23, 1
        %s417 = sand.u32 %s62, 1
        %s418 = scalar_lea.sflag [#allocation4], %s417
        %s419 = sand.u32 %s62, 1
        %s420 = smul.addr %s419, 2048
        %s421 = scalar_lea.vmem [#allocation3], %s420
        // Predicated region
        $region61: #{actor_critic_forward.1} parent=59 // pred_check
          %p422 = pneg %p75
        $region62: #{actor_critic_forward.1} parent=59 // pred_check_branch
          %424 = sbr.rel (%p422) target = $region64
        $region63: #{actor_critic_forward.1} parent=59 // pred_region
          %425 = dma.done %s418, 32768
        $region64: #{actor_critic_forward.1} parent=59 // pred_fallthru
          _
        // Predicated region
        $region65: #{actor_critic_forward.1} parent=59 // pred_check
          %p426 = pneg %p96
        $region66: #{actor_critic_forward.1} parent=59 // pred_check_branch
          %428 = sbr.rel (%p426) target = $region68
        $region67: #{actor_critic_forward.1} parent=59 // pred_region
          %429 = dma.done [#allocation6], 32
        $region68: #{actor_critic_forward.1} parent=59 // pred_fallthru
          _
        // Predicated region
        $region69: #{actor_critic_forward.1} parent=59 // pred_check
          %p430 = pneg %p117
        $region70: #{actor_critic_forward.1} parent=59 // pred_check_branch
          %432 = sbr.rel (%p430) target = $region72
        $region71: #{actor_critic_forward.1} parent=59 // pred_region
          %433 = dma.done [#allocation6], 8192
        $region72: #{actor_critic_forward.1} parent=59 // pred_fallthru
          _
        // Predicated region
        $region73: #{actor_critic_forward.1} parent=59 // pred_check
          %p434 = pneg %p138
        $region74: #{actor_critic_forward.1} parent=59 // pred_check_branch
          %436 = sbr.rel (%p434) target = $region76
        $region75: #{actor_critic_forward.1} parent=59 // pred_region
          %437 = dma.done [#allocation9], 8192
        $region76: #{actor_critic_forward.1} parent=59 // pred_fallthru
          _
        // Predicated region
        $region77: #{actor_critic_forward.1} parent=59 // pred_check
          %p438 = pneg %p159
        $region78: #{actor_critic_forward.1} parent=59 // pred_check_branch
          %440 = sbr.rel (%p438) target = $region80
        $region79: #{actor_critic_forward.1} parent=59 // pred_region
          %441 = dma.done [#allocation9], 64
        $region80: #{actor_critic_forward.1} parent=59 // pred_fallthru
          _
        // Predicated region
        $region81: #{actor_critic_forward.1} parent=59 // pred_check
          %p442 = pneg %p180
        $region82: #{actor_critic_forward.1} parent=59 // pred_check_branch
          %444 = sbr.rel (%p442) target = $region84
        $region83: #{actor_critic_forward.1} parent=59 // pred_region
          %445 = dma.done [#allocation12], 16384
        $region84: #{actor_critic_forward.1} parent=59 // pred_fallthru
          _
        // Predicated region
        $region85: #{actor_critic_forward.1} parent=59 // pred_check
          %p446 = pneg %p201
        $region86: #{actor_critic_forward.1} parent=59 // pred_check_branch
          %448 = sbr.rel (%p446) target = $region88
        $region87: #{actor_critic_forward.1} parent=59 // pred_region
          %449 = dma.done [#allocation12], 64
        $region88: #{actor_critic_forward.1} parent=59 // pred_fallthru
          _
        // Predicated region
        $region89: #{actor_critic_forward.1} parent=59 // pred_check
          %p450 = pneg %p222
        $region90: #{actor_critic_forward.1} parent=59 // pred_check_branch
          %452 = sbr.rel (%p450) target = $region92
        $region91: #{actor_critic_forward.1} parent=59 // pred_region
          %453 = dma.done [#allocation15], 4096
        $region92: #{actor_critic_forward.1} parent=59 // pred_fallthru
          _
        // Predicated region
        $region93: #{actor_critic_forward.1} parent=59 // pred_check
          %p454 = pneg %p243
        $region94: #{actor_critic_forward.1} parent=59 // pred_check_branch
          %456 = sbr.rel (%p454) target = $region96
        $region95: #{actor_critic_forward.1} parent=59 // pred_region
          %457 = dma.done [#allocation15], 16
        $region96: #{actor_critic_forward.1} parent=59 // pred_fallthru
          _
        %s458 = smul.u32 16, %s28
        %p459 = scmp.lt.s32.totalorder %s458, 63
        %s460 = scalar_select %p459, %s458, 63
        %s461 = smul.addr %s460, 2
        %s462 = scalar_lea.vmem %s0, %s461
        %p463 = pneg %p49
        %p464 = pneg %p46
        %s465 = sand.u32 %s62, 1
        %s466 = scalar_lea.sflag [#allocation4], %s465
        %s467 = sand.u32 %s62, 1
        %s468 = smul.addr %s467, 2048
        %s469 = scalar_lea.vmem [#allocation3], %s468
        %p470 = pneg %p75
        %p471 = pneg %p72
        %p472 = pneg %p96
        %p473 = pneg %p93
        %p474 = pneg %p117
        %p475 = pneg %p114
        %p476 = pneg %p138
        %p477 = pneg %p135
        %p478 = pneg %p159
        %p479 = pneg %p156
        %p480 = pneg %p180
        %p481 = pneg %p177
        %p482 = pneg %p201
        %p483 = pneg %p198
        %p484 = pneg %p222
        %p485 = pneg %p219
        %p486 = pneg %p243
        %p487 = pneg %p240
        %p488 = pneg %p264
        %p489 = pneg %p261
        %s490 = smul.u32 16, %s28
        %p491 = scmp.lt.s32.totalorder %s490, 63
        %s492 = scalar_select %p491, %s490, 63
        %s493 = smul.addr %s492, 2
        %s494 = scalar_lea.vmem %s0, %s493
        %s495 = smul.u32 16, %s28
        %s496 = smul.u32 256, %s28
        %p498 = scmp.eq.s32.totalorder %s28, 0
        // Predicated region
        $region97: #{actor_critic_forward.1} parent=59 // pred_check
          %p499 = pneg %p498
        $region98: #{actor_critic_forward.1} parent=59 // pred_check_branch
          %501 = sbr.rel (%p499) target = $region100
        $region99: #{actor_critic_forward.1} parent=59 // pred_region
          %502 = vst [vmem:[#allocation2] sm:$0xff] 0.0
        $region100: #{actor_critic_forward.1} parent=59 // pred_fallthru
          _
        %v503 = vld [vmem:[#allocation2] sm:$0xff]
        %v504 = vld [vmem:[%s494] sm:$0xff]
        %v505 = vld [vmem:[%s494 + $0x8] sm:$0xff]
        %v506 = vld [vmem:[%s494 + $0x10] sm:$0xff]
        %v507 = vld [vmem:[%s494 + $0x18] sm:$0xff]
        %v508 = vld [vmem:[%s421] sm:$0xff]
        %v509 = vld [vmem:[%s421 + $0x8] sm:$0xff]
        %v510 = vld [vmem:[%s421 + $0x10] sm:$0xff]
        %v511 = vld [vmem:[%s421 + $0x18] sm:$0xff]
        %v512 = vld [vmem:[%s421 + $0x20] sm:$0xff]
        %v513 = vld [vmem:[%s421 + $0x28] sm:$0xff]
        %v514 = vld [vmem:[%s421 + $0x30] sm:$0xff]
        %v515 = vld [vmem:[%s421 + $0x38] sm:$0xff]
        %v516 = vld [vmem:[%s421 + $0x40] sm:$0xff]
        %v517 = vld [vmem:[%s421 + $0x48] sm:$0xff]
        %v518 = vld [vmem:[%s421 + $0x50] sm:$0xff]
        %v519 = vld [vmem:[%s421 + $0x58] sm:$0xff]
        %v520 = vld [vmem:[%s421 + $0x60] sm:$0xff]
        %v521 = vld [vmem:[%s421 + $0x68] sm:$0xff]
        %v522 = vld [vmem:[%s421 + $0x70] sm:$0xff]
        %v523 = vld [vmem:[%s421 + $0x78] sm:$0xff]
        %v524 = vld [vmem:[%s421 + $0x80] sm:$0xff]
        %v525 = vld [vmem:[%s421 + $0x88] sm:$0xff]
        %v526 = vld [vmem:[%s421 + $0x90] sm:$0xff]
        %v527 = vld [vmem:[%s421 + $0x98] sm:$0xff]
        %v528 = vld [vmem:[%s421 + $0xa0] sm:$0xff]
        %v529 = vld [vmem:[%s421 + $0xa8] sm:$0xff]
        %v530 = vld [vmem:[%s421 + $0xb0] sm:$0xff]
        %v531 = vld [vmem:[%s421 + $0xb8] sm:$0xff]
        %v532 = vld [vmem:[%s421 + $0xc0] sm:$0xff]
        %v533 = vld [vmem:[%s421 + $0xc8] sm:$0xff]
        %v534 = vld [vmem:[%s421 + $0xd0] sm:$0xff]
        %v535 = vld [vmem:[%s421 + $0xd8] sm:$0xff]
        %v536 = vld [vmem:[%s421 + $0xe0] sm:$0xff]
        %v537 = vld [vmem:[%s421 + $0xe8] sm:$0xff]
        %v538 = vld [vmem:[%s421 + $0xf0] sm:$0xff]
        %v539 = vld [vmem:[%s421 + $0xf8] sm:$0xff]
        %v540 = vld [vmem:[%s421 + $0x100] sm:$0xff]
        %v541 = vld [vmem:[%s421 + $0x108] sm:$0xff]
        %v542 = vld [vmem:[%s421 + $0x110] sm:$0xff]
        %v543 = vld [vmem:[%s421 + $0x118] sm:$0xff]
        %v544 = vld [vmem:[%s421 + $0x120] sm:$0xff]
        %v545 = vld [vmem:[%s421 + $0x128] sm:$0xff]
        %v546 = vld [vmem:[%s421 + $0x130] sm:$0xff]
        %v547 = vld [vmem:[%s421 + $0x138] sm:$0xff]
        %v548 = vld [vmem:[%s421 + $0x140] sm:$0xff]
        %v549 = vld [vmem:[%s421 + $0x148] sm:$0xff]
        %v550 = vld [vmem:[%s421 + $0x150] sm:$0xff]
        %v551 = vld [vmem:[%s421 + $0x158] sm:$0xff]
        %v552 = vld [vmem:[%s421 + $0x160] sm:$0xff]
        %v553 = vld [vmem:[%s421 + $0x168] sm:$0xff]
        %v554 = vld [vmem:[%s421 + $0x170] sm:$0xff]
        %v555 = vld [vmem:[%s421 + $0x178] sm:$0xff]
        %v556 = vld [vmem:[%s421 + $0x180] sm:$0xff]
        %v557 = vld [vmem:[%s421 + $0x188] sm:$0xff]
        %v558 = vld [vmem:[%s421 + $0x190] sm:$0xff]
        %v559 = vld [vmem:[%s421 + $0x198] sm:$0xff]
        %v560 = vld [vmem:[%s421 + $0x1a0] sm:$0xff]
        %v561 = vld [vmem:[%s421 + $0x1a8] sm:$0xff]
        %v562 = vld [vmem:[%s421 + $0x1b0] sm:$0xff]
        %v563 = vld [vmem:[%s421 + $0x1b8] sm:$0xff]
        %v564 = vld [vmem:[%s421 + $0x1c0] sm:$0xff]
        %v565 = vld [vmem:[%s421 + $0x1c8] sm:$0xff]
        %v566 = vld [vmem:[%s421 + $0x1d0] sm:$0xff]
        %v567 = vld [vmem:[%s421 + $0x1d8] sm:$0xff]
        %v568 = vld [vmem:[%s421 + $0x1e0] sm:$0xff]
        %v569 = vld [vmem:[%s421 + $0x1e8] sm:$0xff]
        %v570 = vld [vmem:[%s421 + $0x1f0] sm:$0xff]
        %v571 = vld [vmem:[%s421 + $0x1f8] sm:$0xff]
        %v572 = vld [vmem:[%s421 + $0x200] sm:$0xff]
        %v573 = vld [vmem:[%s421 + $0x208] sm:$0xff]
        %v574 = vld [vmem:[%s421 + $0x210] sm:$0xff]
        %v575 = vld [vmem:[%s421 + $0x218] sm:$0xff]
        %v576 = vld [vmem:[%s421 + $0x220] sm:$0xff]
        %v577 = vld [vmem:[%s421 + $0x228] sm:$0xff]
        %v578 = vld [vmem:[%s421 + $0x230] sm:$0xff]
        %v579 = vld [vmem:[%s421 + $0x238] sm:$0xff]
        %v580 = vld [vmem:[%s421 + $0x240] sm:$0xff]
        %v581 = vld [vmem:[%s421 + $0x248] sm:$0xff]
        %v582 = vld [vmem:[%s421 + $0x250] sm:$0xff]
        %v583 = vld [vmem:[%s421 + $0x258] sm:$0xff]
        %v584 = vld [vmem:[%s421 + $0x260] sm:$0xff]
        %v585 = vld [vmem:[%s421 + $0x268] sm:$0xff]
        %v586 = vld [vmem:[%s421 + $0x270] sm:$0xff]
        %v587 = vld [vmem:[%s421 + $0x278] sm:$0xff]
        %v588 = vld [vmem:[%s421 + $0x280] sm:$0xff]
        %v589 = vld [vmem:[%s421 + $0x288] sm:$0xff]
        %v590 = vld [vmem:[%s421 + $0x290] sm:$0xff]
        %v591 = vld [vmem:[%s421 + $0x298] sm:$0xff]
        %v592 = vld [vmem:[%s421 + $0x2a0] sm:$0xff]
        %v593 = vld [vmem:[%s421 + $0x2a8] sm:$0xff]
        %v594 = vld [vmem:[%s421 + $0x2b0] sm:$0xff]
        %v595 = vld [vmem:[%s421 + $0x2b8] sm:$0xff]
        %v596 = vld [vmem:[%s421 + $0x2c0] sm:$0xff]
        %v597 = vld [vmem:[%s421 + $0x2c8] sm:$0xff]
        %v598 = vld [vmem:[%s421 + $0x2d0] sm:$0xff]
        %v599 = vld [vmem:[%s421 + $0x2d8] sm:$0xff]
        %v600 = vld [vmem:[%s421 + $0x2e0] sm:$0xff]
        %v601 = vld [vmem:[%s421 + $0x2e8] sm:$0xff]
        %v602 = vld [vmem:[%s421 + $0x2f0] sm:$0xff]
        %v603 = vld [vmem:[%s421 + $0x2f8] sm:$0xff]
        %v604 = vld [vmem:[%s421 + $0x300] sm:$0xff]
        %v605 = vld [vmem:[%s421 + $0x308] sm:$0xff]
        %v606 = vld [vmem:[%s421 + $0x310] sm:$0xff]
        %v607 = vld [vmem:[%s421 + $0x318] sm:$0xff]
        %v608 = vld [vmem:[%s421 + $0x320] sm:$0xff]
        %v609 = vld [vmem:[%s421 + $0x328] sm:$0xff]
        %v610 = vld [vmem:[%s421 + $0x330] sm:$0xff]
        %v611 = vld [vmem:[%s421 + $0x338] sm:$0xff]
        %v612 = vld [vmem:[%s421 + $0x340] sm:$0xff]
        %v613 = vld [vmem:[%s421 + $0x348] sm:$0xff]
        %v614 = vld [vmem:[%s421 + $0x350] sm:$0xff]
        %v615 = vld [vmem:[%s421 + $0x358] sm:$0xff]
        %v616 = vld [vmem:[%s421 + $0x360] sm:$0xff]
        %v617 = vld [vmem:[%s421 + $0x368] sm:$0xff]
        %v618 = vld [vmem:[%s421 + $0x370] sm:$0xff]
        %v619 = vld [vmem:[%s421 + $0x378] sm:$0xff]
        %v620 = vld [vmem:[%s421 + $0x380] sm:$0xff]
        %v621 = vld [vmem:[%s421 + $0x388] sm:$0xff]
        %v622 = vld [vmem:[%s421 + $0x390] sm:$0xff]
        %v623 = vld [vmem:[%s421 + $0x398] sm:$0xff]
        %v624 = vld [vmem:[%s421 + $0x3a0] sm:$0xff]
        %v625 = vld [vmem:[%s421 + $0x3a8] sm:$0xff]
        %v626 = vld [vmem:[%s421 + $0x3b0] sm:$0xff]
        %v627 = vld [vmem:[%s421 + $0x3b8] sm:$0xff]
        %v628 = vld [vmem:[%s421 + $0x3c0] sm:$0xff]
        %v629 = vld [vmem:[%s421 + $0x3c8] sm:$0xff]
        %v630 = vld [vmem:[%s421 + $0x3d0] sm:$0xff]
        %v631 = vld [vmem:[%s421 + $0x3d8] sm:$0xff]
        %v632 = vld [vmem:[%s421 + $0x3e0] sm:$0xff]
        %v633 = vld [vmem:[%s421 + $0x3e8] sm:$0xff]
        %v634 = vld [vmem:[%s421 + $0x3f0] sm:$0xff]
        %v635 = vld [vmem:[%s421 + $0x3f8] sm:$0xff]
        %v636 = vld [vmem:[%s421 + $0x400] sm:$0xff]
        %v637 = vld [vmem:[%s421 + $0x408] sm:$0xff]
        %v638 = vld [vmem:[%s421 + $0x410] sm:$0xff]
        %v639 = vld [vmem:[%s421 + $0x418] sm:$0xff]
        %v640 = vld [vmem:[%s421 + $0x420] sm:$0xff]
        %v641 = vld [vmem:[%s421 + $0x428] sm:$0xff]
        %v642 = vld [vmem:[%s421 + $0x430] sm:$0xff]
        %v643 = vld [vmem:[%s421 + $0x438] sm:$0xff]
        %v644 = vld [vmem:[%s421 + $0x440] sm:$0xff]
        %v645 = vld [vmem:[%s421 + $0x448] sm:$0xff]
        %v646 = vld [vmem:[%s421 + $0x450] sm:$0xff]
        %v647 = vld [vmem:[%s421 + $0x458] sm:$0xff]
        %v648 = vld [vmem:[%s421 + $0x460] sm:$0xff]
        %v649 = vld [vmem:[%s421 + $0x468] sm:$0xff]
        %v650 = vld [vmem:[%s421 + $0x470] sm:$0xff]
        %v651 = vld [vmem:[%s421 + $0x478] sm:$0xff]
        %v652 = vld [vmem:[%s421 + $0x480] sm:$0xff]
        %v653 = vld [vmem:[%s421 + $0x488] sm:$0xff]
        %v654 = vld [vmem:[%s421 + $0x490] sm:$0xff]
        %v655 = vld [vmem:[%s421 + $0x498] sm:$0xff]
        %v656 = vld [vmem:[%s421 + $0x4a0] sm:$0xff]
        %v657 = vld [vmem:[%s421 + $0x4a8] sm:$0xff]
        %v658 = vld [vmem:[%s421 + $0x4b0] sm:$0xff]
        %v659 = vld [vmem:[%s421 + $0x4b8] sm:$0xff]
        %v660 = vld [vmem:[%s421 + $0x4c0] sm:$0xff]
        %v661 = vld [vmem:[%s421 + $0x4c8] sm:$0xff]
        %v662 = vld [vmem:[%s421 + $0x4d0] sm:$0xff]
        %v663 = vld [vmem:[%s421 + $0x4d8] sm:$0xff]
        %v664 = vld [vmem:[%s421 + $0x4e0] sm:$0xff]
        %v665 = vld [vmem:[%s421 + $0x4e8] sm:$0xff]
        %v666 = vld [vmem:[%s421 + $0x4f0] sm:$0xff]
        %v667 = vld [vmem:[%s421 + $0x4f8] sm:$0xff]
        %v668 = vld [vmem:[%s421 + $0x500] sm:$0xff]
        %v669 = vld [vmem:[%s421 + $0x508] sm:$0xff]
        %v670 = vld [vmem:[%s421 + $0x510] sm:$0xff]
        %v671 = vld [vmem:[%s421 + $0x518] sm:$0xff]
        %v672 = vld [vmem:[%s421 + $0x520] sm:$0xff]
        %v673 = vld [vmem:[%s421 + $0x528] sm:$0xff]
        %v674 = vld [vmem:[%s421 + $0x530] sm:$0xff]
        %v675 = vld [vmem:[%s421 + $0x538] sm:$0xff]
        %v676 = vld [vmem:[%s421 + $0x540] sm:$0xff]
        %v677 = vld [vmem:[%s421 + $0x548] sm:$0xff]
        %v678 = vld [vmem:[%s421 + $0x550] sm:$0xff]
        %v679 = vld [vmem:[%s421 + $0x558] sm:$0xff]
        %v680 = vld [vmem:[%s421 + $0x560] sm:$0xff]
        %v681 = vld [vmem:[%s421 + $0x568] sm:$0xff]
        %v682 = vld [vmem:[%s421 + $0x570] sm:$0xff]
        %v683 = vld [vmem:[%s421 + $0x578] sm:$0xff]
        %v684 = vld [vmem:[%s421 + $0x580] sm:$0xff]
        %v685 = vld [vmem:[%s421 + $0x588] sm:$0xff]
        %v686 = vld [vmem:[%s421 + $0x590] sm:$0xff]
        %v687 = vld [vmem:[%s421 + $0x598] sm:$0xff]
        %v688 = vld [vmem:[%s421 + $0x5a0] sm:$0xff]
        %v689 = vld [vmem:[%s421 + $0x5a8] sm:$0xff]
        %v690 = vld [vmem:[%s421 + $0x5b0] sm:$0xff]
        %v691 = vld [vmem:[%s421 + $0x5b8] sm:$0xff]
        %v692 = vld [vmem:[%s421 + $0x5c0] sm:$0xff]
        %v693 = vld [vmem:[%s421 + $0x5c8] sm:$0xff]
        %v694 = vld [vmem:[%s421 + $0x5d0] sm:$0xff]
        %v695 = vld [vmem:[%s421 + $0x5d8] sm:$0xff]
        %v696 = vld [vmem:[%s421 + $0x5e0] sm:$0xff]
        %v697 = vld [vmem:[%s421 + $0x5e8] sm:$0xff]
        %v698 = vld [vmem:[%s421 + $0x5f0] sm:$0xff]
        %v699 = vld [vmem:[%s421 + $0x5f8] sm:$0xff]
        %v700 = vld [vmem:[%s421 + $0x600] sm:$0xff]
        %v701 = vld [vmem:[%s421 + $0x608] sm:$0xff]
        %v702 = vld [vmem:[%s421 + $0x610] sm:$0xff]
        %v703 = vld [vmem:[%s421 + $0x618] sm:$0xff]
        %v704 = vld [vmem:[%s421 + $0x620] sm:$0xff]
        %v705 = vld [vmem:[%s421 + $0x628] sm:$0xff]
        %v706 = vld [vmem:[%s421 + $0x630] sm:$0xff]
        %v707 = vld [vmem:[%s421 + $0x638] sm:$0xff]
        %v708 = vld [vmem:[%s421 + $0x640] sm:$0xff]
        %v709 = vld [vmem:[%s421 + $0x648] sm:$0xff]
        %v710 = vld [vmem:[%s421 + $0x650] sm:$0xff]
        %v711 = vld [vmem:[%s421 + $0x658] sm:$0xff]
        %v712 = vld [vmem:[%s421 + $0x660] sm:$0xff]
        %v713 = vld [vmem:[%s421 + $0x668] sm:$0xff]
        %v714 = vld [vmem:[%s421 + $0x670] sm:$0xff]
        %v715 = vld [vmem:[%s421 + $0x678] sm:$0xff]
        %v716 = vld [vmem:[%s421 + $0x680] sm:$0xff]
        %v717 = vld [vmem:[%s421 + $0x688] sm:$0xff]
        %v718 = vld [vmem:[%s421 + $0x690] sm:$0xff]
        %v719 = vld [vmem:[%s421 + $0x698] sm:$0xff]
        %v720 = vld [vmem:[%s421 + $0x6a0] sm:$0xff]
        %v721 = vld [vmem:[%s421 + $0x6a8] sm:$0xff]
        %v722 = vld [vmem:[%s421 + $0x6b0] sm:$0xff]
        %v723 = vld [vmem:[%s421 + $0x6b8] sm:$0xff]
        %v724 = vld [vmem:[%s421 + $0x6c0] sm:$0xff]
        %v725 = vld [vmem:[%s421 + $0x6c8] sm:$0xff]
        %v726 = vld [vmem:[%s421 + $0x6d0] sm:$0xff]
        %v727 = vld [vmem:[%s421 + $0x6d8] sm:$0xff]
        %v728 = vld [vmem:[%s421 + $0x6e0] sm:$0xff]
        %v729 = vld [vmem:[%s421 + $0x6e8] sm:$0xff]
        %v730 = vld [vmem:[%s421 + $0x6f0] sm:$0xff]
        %v731 = vld [vmem:[%s421 + $0x6f8] sm:$0xff]
        %v732 = vld [vmem:[%s421 + $0x700] sm:$0xff]
        %v733 = vld [vmem:[%s421 + $0x708] sm:$0xff]
        %v734 = vld [vmem:[%s421 + $0x710] sm:$0xff]
        %v735 = vld [vmem:[%s421 + $0x718] sm:$0xff]
        %v736 = vld [vmem:[%s421 + $0x720] sm:$0xff]
        %v737 = vld [vmem:[%s421 + $0x728] sm:$0xff]
        %v738 = vld [vmem:[%s421 + $0x730] sm:$0xff]
        %v739 = vld [vmem:[%s421 + $0x738] sm:$0xff]
        %v740 = vld [vmem:[%s421 + $0x740] sm:$0xff]
        %v741 = vld [vmem:[%s421 + $0x748] sm:$0xff]
        %v742 = vld [vmem:[%s421 + $0x750] sm:$0xff]
        %v743 = vld [vmem:[%s421 + $0x758] sm:$0xff]
        %v744 = vld [vmem:[%s421 + $0x760] sm:$0xff]
        %v745 = vld [vmem:[%s421 + $0x768] sm:$0xff]
        %v746 = vld [vmem:[%s421 + $0x770] sm:$0xff]
        %v747 = vld [vmem:[%s421 + $0x778] sm:$0xff]
        %v748 = vld [vmem:[%s421 + $0x780] sm:$0xff]
        %v749 = vld [vmem:[%s421 + $0x788] sm:$0xff]
        %v750 = vld [vmem:[%s421 + $0x790] sm:$0xff]
        %v751 = vld [vmem:[%s421 + $0x798] sm:$0xff]
        %v752 = vld [vmem:[%s421 + $0x7a0] sm:$0xff]
        %v753 = vld [vmem:[%s421 + $0x7a8] sm:$0xff]
        %v754 = vld [vmem:[%s421 + $0x7b0] sm:$0xff]
        %v755 = vld [vmem:[%s421 + $0x7b8] sm:$0xff]
        %v756 = vld [vmem:[%s421 + $0x7c0] sm:$0xff]
        %v757 = vld [vmem:[%s421 + $0x7c8] sm:$0xff]
        %v758 = vld [vmem:[%s421 + $0x7d0] sm:$0xff]
        %v759 = vld [vmem:[%s421 + $0x7d8] sm:$0xff]
        %v760 = vld [vmem:[%s421 + $0x7e0] sm:$0xff]
        %v761 = vld [vmem:[%s421 + $0x7e8] sm:$0xff]
        %v762 = vld [vmem:[%s421 + $0x7f0] sm:$0xff]
        %v763 = vld [vmem:[%s421 + $0x7f8] sm:$0xff]
        %v768 = vcombine.high %v504, %v504
        %v770 = vunpack.c.l.s4 1983009808
        %v771 = vunpack.c.0.s8 %v770
        %v772 = vlaneseq
        %v773 = vshrl.u32 %v772, 7
        %v774 = vsub.s32 %v771, %v773
        %v775 = vrot.slane %v504, %v774
        %v777 = vunpack.c.l.s4 1983009808
        %v778 = vunpack.c.0.s8 %v777
        %v779 = vlaneseq
        %v780 = vshrl.u32 %v779, 7
        %v781 = vsub.s32 %v778, %v780
        %v782 = vrot.slane %v768, %v781
        %v783 = vcombine.high %v775, %v775
        %v784 = vcombine.high %v782, %v782
        %v785 = vcombine.high %v505, %v505
        %v787 = vunpack.c.l.s4 1983009808
        %v788 = vunpack.c.0.s8 %v787
        %v789 = vlaneseq
        %v790 = vshrl.u32 %v789, 7
        %v791 = vsub.s32 %v788, %v790
        %v792 = vrot.slane %v505, %v791
        %v794 = vunpack.c.l.s4 1983009808
        %v795 = vunpack.c.0.s8 %v794
        %v796 = vlaneseq
        %v797 = vshrl.u32 %v796, 7
        %v798 = vsub.s32 %v795, %v797
        %v799 = vrot.slane %v785, %v798
        %v800 = vcombine.high %v792, %v792
        %v801 = vcombine.high %v799, %v799
        %v802 = vcombine.high %v506, %v506
        %v804 = vunpack.c.l.s4 1983009808
        %v805 = vunpack.c.0.s8 %v804
        %v806 = vlaneseq
        %v807 = vshrl.u32 %v806, 7
        %v808 = vsub.s32 %v805, %v807
        %v809 = vrot.slane %v506, %v808
        %v811 = vunpack.c.l.s4 1983009808
        %v812 = vunpack.c.0.s8 %v811
        %v813 = vlaneseq
        %v814 = vshrl.u32 %v813, 7
        %v815 = vsub.s32 %v812, %v814
        %v816 = vrot.slane %v802, %v815
        %v817 = vcombine.high %v809, %v809
        %v818 = vcombine.high %v816, %v816
        %v819 = vcombine.high %v507, %v507
        %v821 = vunpack.c.l.s4 1983009808
        %v822 = vunpack.c.0.s8 %v821
        %v823 = vlaneseq
        %v824 = vshrl.u32 %v823, 7
        %v825 = vsub.s32 %v822, %v824
        %v826 = vrot.slane %v507, %v825
        %v828 = vunpack.c.l.s4 1983009808
        %v829 = vunpack.c.0.s8 %v828
        %v830 = vlaneseq
        %v831 = vshrl.u32 %v830, 7
        %v832 = vsub.s32 %v829, %v831
        %v833 = vrot.slane %v819, %v832
        %v834 = vcombine.high %v826, %v826
        %v835 = vcombine.high %v833, %v833
        %v1108 = vunpack.c.l.b16 %v508
        %v1109 = vunpack.c.h.b16 %v508
        %v1110 = vunpack.c.l.b16 %v509
        %v1111 = vunpack.c.h.b16 %v509
        %v1112 = vunpack.c.l.b16 %v510
        %v1113 = vunpack.c.h.b16 %v510
        %v1114 = vunpack.c.l.b16 %v511
        %v1115 = vunpack.c.h.b16 %v511
        %v1116 = vunpack.c.l.b16 %v512
        %v1117 = vunpack.c.h.b16 %v512
        %v1118 = vunpack.c.l.b16 %v513
        %v1119 = vunpack.c.h.b16 %v513
        %v1120 = vunpack.c.l.b16 %v514
        %v1121 = vunpack.c.h.b16 %v514
        %v1122 = vunpack.c.l.b16 %v515
        %v1123 = vunpack.c.h.b16 %v515
        %v1124 = vunpack.c.l.b16 %v516
        %v1125 = vunpack.c.h.b16 %v516
        %v1126 = vunpack.c.l.b16 %v517
        %v1127 = vunpack.c.h.b16 %v517
        %v1128 = vunpack.c.l.b16 %v518
        %v1129 = vunpack.c.h.b16 %v518
        %v1130 = vunpack.c.l.b16 %v519
        %v1131 = vunpack.c.h.b16 %v519
        %v1132 = vunpack.c.l.b16 %v520
        %v1133 = vunpack.c.h.b16 %v520
        %v1134 = vunpack.c.l.b16 %v521
        %v1135 = vunpack.c.h.b16 %v521
        %v1136 = vunpack.c.l.b16 %v522
        %v1137 = vunpack.c.h.b16 %v522
        %v1138 = vunpack.c.l.b16 %v523
        %v1139 = vunpack.c.h.b16 %v523
        %v1140 = vunpack.c.l.b16 %v524
        %v1141 = vunpack.c.h.b16 %v524
        %v1142 = vunpack.c.l.b16 %v525
        %v1143 = vunpack.c.h.b16 %v525
        %v1144 = vunpack.c.l.b16 %v526
        %v1145 = vunpack.c.h.b16 %v526
        %v1146 = vunpack.c.l.b16 %v527
        %v1147 = vunpack.c.h.b16 %v527
        %v1148 = vunpack.c.l.b16 %v528
        %v1149 = vunpack.c.h.b16 %v528
        %v1150 = vunpack.c.l.b16 %v529
        %v1151 = vunpack.c.h.b16 %v529
        %v1152 = vunpack.c.l.b16 %v530
        %v1153 = vunpack.c.h.b16 %v530
        %v1154 = vunpack.c.l.b16 %v531
        %v1155 = vunpack.c.h.b16 %v531
        %v1156 = vunpack.c.l.b16 %v532
        %v1157 = vunpack.c.h.b16 %v532
        %v1158 = vunpack.c.l.b16 %v533
        %v1159 = vunpack.c.h.b16 %v533
        %v1160 = vunpack.c.l.b16 %v534
        %v1161 = vunpack.c.h.b16 %v534
        %v1162 = vunpack.c.l.b16 %v535
        %v1163 = vunpack.c.h.b16 %v535
        %v1164 = vunpack.c.l.b16 %v536
        %v1165 = vunpack.c.h.b16 %v536
        %v1166 = vunpack.c.l.b16 %v537
        %v1167 = vunpack.c.h.b16 %v537
        %v1168 = vunpack.c.l.b16 %v538
        %v1169 = vunpack.c.h.b16 %v538
        %v1170 = vunpack.c.l.b16 %v539
        %v1171 = vunpack.c.h.b16 %v539
        %v1172 = vunpack.c.l.b16 %v540
        %v1173 = vunpack.c.h.b16 %v540
        %v1174 = vunpack.c.l.b16 %v541
        %v1175 = vunpack.c.h.b16 %v541
        %v1176 = vunpack.c.l.b16 %v542
        %v1177 = vunpack.c.h.b16 %v542
        %v1178 = vunpack.c.l.b16 %v543
        %v1179 = vunpack.c.h.b16 %v543
        %v1180 = vunpack.c.l.b16 %v544
        %v1181 = vunpack.c.h.b16 %v544
        %v1182 = vunpack.c.l.b16 %v545
        %v1183 = vunpack.c.h.b16 %v545
        %v1184 = vunpack.c.l.b16 %v546
        %v1185 = vunpack.c.h.b16 %v546
        %v1186 = vunpack.c.l.b16 %v547
        %v1187 = vunpack.c.h.b16 %v547
        %v1188 = vunpack.c.l.b16 %v548
        %v1189 = vunpack.c.h.b16 %v548
        %v1190 = vunpack.c.l.b16 %v549
        %v1191 = vunpack.c.h.b16 %v549
        %v1192 = vunpack.c.l.b16 %v550
        %v1193 = vunpack.c.h.b16 %v550
        %v1194 = vunpack.c.l.b16 %v551
        %v1195 = vunpack.c.h.b16 %v551
        %v1196 = vunpack.c.l.b16 %v552
        %v1197 = vunpack.c.h.b16 %v552
        %v1198 = vunpack.c.l.b16 %v553
        %v1199 = vunpack.c.h.b16 %v553
        %v1200 = vunpack.c.l.b16 %v554
        %v1201 = vunpack.c.h.b16 %v554
        %v1202 = vunpack.c.l.b16 %v555
        %v1203 = vunpack.c.h.b16 %v555
        %v1204 = vunpack.c.l.b16 %v556
        %v1205 = vunpack.c.h.b16 %v556
        %v1206 = vunpack.c.l.b16 %v557
        %v1207 = vunpack.c.h.b16 %v557
        %v1208 = vunpack.c.l.b16 %v558
        %v1209 = vunpack.c.h.b16 %v558
        %v1210 = vunpack.c.l.b16 %v559
        %v1211 = vunpack.c.h.b16 %v559
        %v1212 = vunpack.c.l.b16 %v560
        %v1213 = vunpack.c.h.b16 %v560
        %v1214 = vunpack.c.l.b16 %v561
        %v1215 = vunpack.c.h.b16 %v561
        %v1216 = vunpack.c.l.b16 %v562
        %v1217 = vunpack.c.h.b16 %v562
        %v1218 = vunpack.c.l.b16 %v563
        %v1219 = vunpack.c.h.b16 %v563
        %v1220 = vunpack.c.l.b16 %v564
        %v1221 = vunpack.c.h.b16 %v564
        %v1222 = vunpack.c.l.b16 %v565
        %v1223 = vunpack.c.h.b16 %v565
        %v1224 = vunpack.c.l.b16 %v566
        %v1225 = vunpack.c.h.b16 %v566
        %v1226 = vunpack.c.l.b16 %v567
        %v1227 = vunpack.c.h.b16 %v567
        %v1228 = vunpack.c.l.b16 %v568
        %v1229 = vunpack.c.h.b16 %v568
        %v1230 = vunpack.c.l.b16 %v569
        %v1231 = vunpack.c.h.b16 %v569
        %v1232 = vunpack.c.l.b16 %v570
        %v1233 = vunpack.c.h.b16 %v570
        %v1234 = vunpack.c.l.b16 %v571
        %v1235 = vunpack.c.h.b16 %v571
        %v1236 = vunpack.c.l.b16 %v572
        %v1237 = vunpack.c.h.b16 %v572
        %v1238 = vunpack.c.l.b16 %v573
        %v1239 = vunpack.c.h.b16 %v573
        %v1240 = vunpack.c.l.b16 %v574
        %v1241 = vunpack.c.h.b16 %v574
        %v1242 = vunpack.c.l.b16 %v575
        %v1243 = vunpack.c.h.b16 %v575
        %v1244 = vunpack.c.l.b16 %v576
        %v1245 = vunpack.c.h.b16 %v576
        %v1246 = vunpack.c.l.b16 %v577
        %v1247 = vunpack.c.h.b16 %v577
        %v1248 = vunpack.c.l.b16 %v578
        %v1249 = vunpack.c.h.b16 %v578
        %v1250 = vunpack.c.l.b16 %v579
        %v1251 = vunpack.c.h.b16 %v579
        %v1252 = vunpack.c.l.b16 %v580
        %v1253 = vunpack.c.h.b16 %v580
        %v1254 = vunpack.c.l.b16 %v581
        %v1255 = vunpack.c.h.b16 %v581
        %v1256 = vunpack.c.l.b16 %v582
        %v1257 = vunpack.c.h.b16 %v582
        %v1258 = vunpack.c.l.b16 %v583
        %v1259 = vunpack.c.h.b16 %v583
        %v1260 = vunpack.c.l.b16 %v584
        %v1261 = vunpack.c.h.b16 %v584
        %v1262 = vunpack.c.l.b16 %v585
        %v1263 = vunpack.c.h.b16 %v585
        %v1264 = vunpack.c.l.b16 %v586
        %v1265 = vunpack.c.h.b16 %v586
        %v1266 = vunpack.c.l.b16 %v587
        %v1267 = vunpack.c.h.b16 %v587
        %v1268 = vunpack.c.l.b16 %v588
        %v1269 = vunpack.c.h.b16 %v588
        %v1270 = vunpack.c.l.b16 %v589
        %v1271 = vunpack.c.h.b16 %v589
        %v1272 = vunpack.c.l.b16 %v590
        %v1273 = vunpack.c.h.b16 %v590
        %v1274 = vunpack.c.l.b16 %v591
        %v1275 = vunpack.c.h.b16 %v591
        %v1276 = vunpack.c.l.b16 %v592
        %v1277 = vunpack.c.h.b16 %v592
        %v1278 = vunpack.c.l.b16 %v593
        %v1279 = vunpack.c.h.b16 %v593
        %v1280 = vunpack.c.l.b16 %v594
        %v1281 = vunpack.c.h.b16 %v594
        %v1282 = vunpack.c.l.b16 %v595
        %v1283 = vunpack.c.h.b16 %v595
        %v1284 = vunpack.c.l.b16 %v596
        %v1285 = vunpack.c.h.b16 %v596
        %v1286 = vunpack.c.l.b16 %v597
        %v1287 = vunpack.c.h.b16 %v597
        %v1288 = vunpack.c.l.b16 %v598
        %v1289 = vunpack.c.h.b16 %v598
        %v1290 = vunpack.c.l.b16 %v599
        %v1291 = vunpack.c.h.b16 %v599
        %v1292 = vunpack.c.l.b16 %v600
        %v1293 = vunpack.c.h.b16 %v600
        %v1294 = vunpack.c.l.b16 %v601
        %v1295 = vunpack.c.h.b16 %v601
        %v1296 = vunpack.c.l.b16 %v602
        %v1297 = vunpack.c.h.b16 %v602
        %v1298 = vunpack.c.l.b16 %v603
        %v1299 = vunpack.c.h.b16 %v603
        %v1300 = vunpack.c.l.b16 %v604
        %v1301 = vunpack.c.h.b16 %v604
        %v1302 = vunpack.c.l.b16 %v605
        %v1303 = vunpack.c.h.b16 %v605
        %v1304 = vunpack.c.l.b16 %v606
        %v1305 = vunpack.c.h.b16 %v606
        %v1306 = vunpack.c.l.b16 %v607
        %v1307 = vunpack.c.h.b16 %v607
        %v1308 = vunpack.c.l.b16 %v608
        %v1309 = vunpack.c.h.b16 %v608
        %v1310 = vunpack.c.l.b16 %v609
        %v1311 = vunpack.c.h.b16 %v609
        %v1312 = vunpack.c.l.b16 %v610
        %v1313 = vunpack.c.h.b16 %v610
        %v1314 = vunpack.c.l.b16 %v611
        %v1315 = vunpack.c.h.b16 %v611
        %v1316 = vunpack.c.l.b16 %v612
        %v1317 = vunpack.c.h.b16 %v612
        %v1318 = vunpack.c.l.b16 %v613
        %v1319 = vunpack.c.h.b16 %v613
        %v1320 = vunpack.c.l.b16 %v614
        %v1321 = vunpack.c.h.b16 %v614
        %v1322 = vunpack.c.l.b16 %v615
        %v1323 = vunpack.c.h.b16 %v615
        %v1324 = vunpack.c.l.b16 %v616
        %v1325 = vunpack.c.h.b16 %v616
        %v1326 = vunpack.c.l.b16 %v617
        %v1327 = vunpack.c.h.b16 %v617
        %v1328 = vunpack.c.l.b16 %v618
        %v1329 = vunpack.c.h.b16 %v618
        %v1330 = vunpack.c.l.b16 %v619
        %v1331 = vunpack.c.h.b16 %v619
        %v1332 = vunpack.c.l.b16 %v620
        %v1333 = vunpack.c.h.b16 %v620
        %v1334 = vunpack.c.l.b16 %v621
        %v1335 = vunpack.c.h.b16 %v621
        %v1336 = vunpack.c.l.b16 %v622
        %v1337 = vunpack.c.h.b16 %v622
        %v1338 = vunpack.c.l.b16 %v623
        %v1339 = vunpack.c.h.b16 %v623
        %v1340 = vunpack.c.l.b16 %v624
        %v1341 = vunpack.c.h.b16 %v624
        %v1342 = vunpack.c.l.b16 %v625
        %v1343 = vunpack.c.h.b16 %v625
        %v1344 = vunpack.c.l.b16 %v626
        %v1345 = vunpack.c.h.b16 %v626
        %v1346 = vunpack.c.l.b16 %v627
        %v1347 = vunpack.c.h.b16 %v627
        %v1348 = vunpack.c.l.b16 %v628
        %v1349 = vunpack.c.h.b16 %v628
        %v1350 = vunpack.c.l.b16 %v629
        %v1351 = vunpack.c.h.b16 %v629
        %v1352 = vunpack.c.l.b16 %v630
        %v1353 = vunpack.c.h.b16 %v630
        %v1354 = vunpack.c.l.b16 %v631
        %v1355 = vunpack.c.h.b16 %v631
        %v1356 = vunpack.c.l.b16 %v632
        %v1357 = vunpack.c.h.b16 %v632
        %v1358 = vunpack.c.l.b16 %v633
        %v1359 = vunpack.c.h.b16 %v633
        %v1360 = vunpack.c.l.b16 %v634
        %v1361 = vunpack.c.h.b16 %v634
        %v1362 = vunpack.c.l.b16 %v635
        %v1363 = vunpack.c.h.b16 %v635
        %v1364 = vunpack.c.l.b16 %v636
        %v1365 = vunpack.c.h.b16 %v636
        %v1366 = vunpack.c.l.b16 %v637
        %v1367 = vunpack.c.h.b16 %v637
        %v1368 = vunpack.c.l.b16 %v638
        %v1369 = vunpack.c.h.b16 %v638
        %v1370 = vunpack.c.l.b16 %v639
        %v1371 = vunpack.c.h.b16 %v639
        %v1372 = vunpack.c.l.b16 %v640
        %v1373 = vunpack.c.h.b16 %v640
        %v1374 = vunpack.c.l.b16 %v641
        %v1375 = vunpack.c.h.b16 %v641
        %v1376 = vunpack.c.l.b16 %v642
        %v1377 = vunpack.c.h.b16 %v642
        %v1378 = vunpack.c.l.b16 %v643
        %v1379 = vunpack.c.h.b16 %v643
        %v1380 = vunpack.c.l.b16 %v644
        %v1381 = vunpack.c.h.b16 %v644
        %v1382 = vunpack.c.l.b16 %v645
        %v1383 = vunpack.c.h.b16 %v645
        %v1384 = vunpack.c.l.b16 %v646
        %v1385 = vunpack.c.h.b16 %v646
        %v1386 = vunpack.c.l.b16 %v647
        %v1387 = vunpack.c.h.b16 %v647
        %v1388 = vunpack.c.l.b16 %v648
        %v1389 = vunpack.c.h.b16 %v648
        %v1390 = vunpack.c.l.b16 %v649
        %v1391 = vunpack.c.h.b16 %v649
        %v1392 = vunpack.c.l.b16 %v650
        %v1393 = vunpack.c.h.b16 %v650
        %v1394 = vunpack.c.l.b16 %v651
        %v1395 = vunpack.c.h.b16 %v651
        %v1396 = vunpack.c.l.b16 %v652
        %v1397 = vunpack.c.h.b16 %v652
        %v1398 = vunpack.c.l.b16 %v653
        %v1399 = vunpack.c.h.b16 %v653
        %v1400 = vunpack.c.l.b16 %v654
        %v1401 = vunpack.c.h.b16 %v654
        %v1402 = vunpack.c.l.b16 %v655
        %v1403 = vunpack.c.h.b16 %v655
        %v1404 = vunpack.c.l.b16 %v656
        %v1405 = vunpack.c.h.b16 %v656
        %v1406 = vunpack.c.l.b16 %v657
        %v1407 = vunpack.c.h.b16 %v657
        %v1408 = vunpack.c.l.b16 %v658
        %v1409 = vunpack.c.h.b16 %v658
        %v1410 = vunpack.c.l.b16 %v659
        %v1411 = vunpack.c.h.b16 %v659
        %v1412 = vunpack.c.l.b16 %v660
        %v1413 = vunpack.c.h.b16 %v660
        %v1414 = vunpack.c.l.b16 %v661
        %v1415 = vunpack.c.h.b16 %v661
        %v1416 = vunpack.c.l.b16 %v662
        %v1417 = vunpack.c.h.b16 %v662
        %v1418 = vunpack.c.l.b16 %v663
        %v1419 = vunpack.c.h.b16 %v663
        %v1420 = vunpack.c.l.b16 %v664
        %v1421 = vunpack.c.h.b16 %v664
        %v1422 = vunpack.c.l.b16 %v665
        %v1423 = vunpack.c.h.b16 %v665
        %v1424 = vunpack.c.l.b16 %v666
        %v1425 = vunpack.c.h.b16 %v666
        %v1426 = vunpack.c.l.b16 %v667
        %v1427 = vunpack.c.h.b16 %v667
        %v1428 = vunpack.c.l.b16 %v668
        %v1429 = vunpack.c.h.b16 %v668
        %v1430 = vunpack.c.l.b16 %v669
        %v1431 = vunpack.c.h.b16 %v669
        %v1432 = vunpack.c.l.b16 %v670
        %v1433 = vunpack.c.h.b16 %v670
        %v1434 = vunpack.c.l.b16 %v671
        %v1435 = vunpack.c.h.b16 %v671
        %v1436 = vunpack.c.l.b16 %v672
        %v1437 = vunpack.c.h.b16 %v672
        %v1438 = vunpack.c.l.b16 %v673
        %v1439 = vunpack.c.h.b16 %v673
        %v1440 = vunpack.c.l.b16 %v674
        %v1441 = vunpack.c.h.b16 %v674
        %v1442 = vunpack.c.l.b16 %v675
        %v1443 = vunpack.c.h.b16 %v675
        %v1444 = vunpack.c.l.b16 %v676
        %v1445 = vunpack.c.h.b16 %v676
        %v1446 = vunpack.c.l.b16 %v677
        %v1447 = vunpack.c.h.b16 %v677
        %v1448 = vunpack.c.l.b16 %v678
        %v1449 = vunpack.c.h.b16 %v678
        %v1450 = vunpack.c.l.b16 %v679
        %v1451 = vunpack.c.h.b16 %v679
        %v1452 = vunpack.c.l.b16 %v680
        %v1453 = vunpack.c.h.b16 %v680
        %v1454 = vunpack.c.l.b16 %v681
        %v1455 = vunpack.c.h.b16 %v681
        %v1456 = vunpack.c.l.b16 %v682
        %v1457 = vunpack.c.h.b16 %v682
        %v1458 = vunpack.c.l.b16 %v683
        %v1459 = vunpack.c.h.b16 %v683
        %v1460 = vunpack.c.l.b16 %v684
        %v1461 = vunpack.c.h.b16 %v684
        %v1462 = vunpack.c.l.b16 %v685
        %v1463 = vunpack.c.h.b16 %v685
        %v1464 = vunpack.c.l.b16 %v686
        %v1465 = vunpack.c.h.b16 %v686
        %v1466 = vunpack.c.l.b16 %v687
        %v1467 = vunpack.c.h.b16 %v687
        %v1468 = vunpack.c.l.b16 %v688
        %v1469 = vunpack.c.h.b16 %v688
        %v1470 = vunpack.c.l.b16 %v689
        %v1471 = vunpack.c.h.b16 %v689
        %v1472 = vunpack.c.l.b16 %v690
        %v1473 = vunpack.c.h.b16 %v690
        %v1474 = vunpack.c.l.b16 %v691
        %v1475 = vunpack.c.h.b16 %v691
        %v1476 = vunpack.c.l.b16 %v692
        %v1477 = vunpack.c.h.b16 %v692
        %v1478 = vunpack.c.l.b16 %v693
        %v1479 = vunpack.c.h.b16 %v693
        %v1480 = vunpack.c.l.b16 %v694
        %v1481 = vunpack.c.h.b16 %v694
        %v1482 = vunpack.c.l.b16 %v695
        %v1483 = vunpack.c.h.b16 %v695
        %v1484 = vunpack.c.l.b16 %v696
        %v1485 = vunpack.c.h.b16 %v696
        %v1486 = vunpack.c.l.b16 %v697
        %v1487 = vunpack.c.h.b16 %v697
        %v1488 = vunpack.c.l.b16 %v698
        %v1489 = vunpack.c.h.b16 %v698
        %v1490 = vunpack.c.l.b16 %v699
        %v1491 = vunpack.c.h.b16 %v699
        %v1492 = vunpack.c.l.b16 %v700
        %v1493 = vunpack.c.h.b16 %v700
        %v1494 = vunpack.c.l.b16 %v701
        %v1495 = vunpack.c.h.b16 %v701
        %v1496 = vunpack.c.l.b16 %v702
        %v1497 = vunpack.c.h.b16 %v702
        %v1498 = vunpack.c.l.b16 %v703
        %v1499 = vunpack.c.h.b16 %v703
        %v1500 = vunpack.c.l.b16 %v704
        %v1501 = vunpack.c.h.b16 %v704
        %v1502 = vunpack.c.l.b16 %v705
        %v1503 = vunpack.c.h.b16 %v705
        %v1504 = vunpack.c.l.b16 %v706
        %v1505 = vunpack.c.h.b16 %v706
        %v1506 = vunpack.c.l.b16 %v707
        %v1507 = vunpack.c.h.b16 %v707
        %v1508 = vunpack.c.l.b16 %v708
        %v1509 = vunpack.c.h.b16 %v708
        %v1510 = vunpack.c.l.b16 %v709
        %v1511 = vunpack.c.h.b16 %v709
        %v1512 = vunpack.c.l.b16 %v710
        %v1513 = vunpack.c.h.b16 %v710
        %v1514 = vunpack.c.l.b16 %v711
        %v1515 = vunpack.c.h.b16 %v711
        %v1516 = vunpack.c.l.b16 %v712
        %v1517 = vunpack.c.h.b16 %v712
        %v1518 = vunpack.c.l.b16 %v713
        %v1519 = vunpack.c.h.b16 %v713
        %v1520 = vunpack.c.l.b16 %v714
        %v1521 = vunpack.c.h.b16 %v714
        %v1522 = vunpack.c.l.b16 %v715
        %v1523 = vunpack.c.h.b16 %v715
        %v1524 = vunpack.c.l.b16 %v716
        %v1525 = vunpack.c.h.b16 %v716
        %v1526 = vunpack.c.l.b16 %v717
        %v1527 = vunpack.c.h.b16 %v717
        %v1528 = vunpack.c.l.b16 %v718
        %v1529 = vunpack.c.h.b16 %v718
        %v1530 = vunpack.c.l.b16 %v719
        %v1531 = vunpack.c.h.b16 %v719
        %v1532 = vunpack.c.l.b16 %v720
        %v1533 = vunpack.c.h.b16 %v720
        %v1534 = vunpack.c.l.b16 %v721
        %v1535 = vunpack.c.h.b16 %v721
        %v1536 = vunpack.c.l.b16 %v722
        %v1537 = vunpack.c.h.b16 %v722
        %v1538 = vunpack.c.l.b16 %v723
        %v1539 = vunpack.c.h.b16 %v723
        %v1540 = vunpack.c.l.b16 %v724
        %v1541 = vunpack.c.h.b16 %v724
        %v1542 = vunpack.c.l.b16 %v725
        %v1543 = vunpack.c.h.b16 %v725
        %v1544 = vunpack.c.l.b16 %v726
        %v1545 = vunpack.c.h.b16 %v726
        %v1546 = vunpack.c.l.b16 %v727
        %v1547 = vunpack.c.h.b16 %v727
        %v1548 = vunpack.c.l.b16 %v728
        %v1549 = vunpack.c.h.b16 %v728
        %v1550 = vunpack.c.l.b16 %v729
        %v1551 = vunpack.c.h.b16 %v729
        %v1552 = vunpack.c.l.b16 %v730
        %v1553 = vunpack.c.h.b16 %v730
        %v1554 = vunpack.c.l.b16 %v731
        %v1555 = vunpack.c.h.b16 %v731
        %v1556 = vunpack.c.l.b16 %v732
        %v1557 = vunpack.c.h.b16 %v732
        %v1558 = vunpack.c.l.b16 %v733
        %v1559 = vunpack.c.h.b16 %v733
        %v1560 = vunpack.c.l.b16 %v734
        %v1561 = vunpack.c.h.b16 %v734
        %v1562 = vunpack.c.l.b16 %v735
        %v1563 = vunpack.c.h.b16 %v735
        %v1564 = vunpack.c.l.b16 %v736
        %v1565 = vunpack.c.h.b16 %v736
        %v1566 = vunpack.c.l.b16 %v737
        %v1567 = vunpack.c.h.b16 %v737
        %v1568 = vunpack.c.l.b16 %v738
        %v1569 = vunpack.c.h.b16 %v738
        %v1570 = vunpack.c.l.b16 %v739
        %v1571 = vunpack.c.h.b16 %v739
        %v1572 = vunpack.c.l.b16 %v740
        %v1573 = vunpack.c.h.b16 %v740
        %v1574 = vunpack.c.l.b16 %v741
        %v1575 = vunpack.c.h.b16 %v741
        %v1576 = vunpack.c.l.b16 %v742
        %v1577 = vunpack.c.h.b16 %v742
        %v1578 = vunpack.c.l.b16 %v743
        %v1579 = vunpack.c.h.b16 %v743
        %v1580 = vunpack.c.l.b16 %v744
        %v1581 = vunpack.c.h.b16 %v744
        %v1582 = vunpack.c.l.b16 %v745
        %v1583 = vunpack.c.h.b16 %v745
        %v1584 = vunpack.c.l.b16 %v746
        %v1585 = vunpack.c.h.b16 %v746
        %v1586 = vunpack.c.l.b16 %v747
        %v1587 = vunpack.c.h.b16 %v747
        %v1588 = vunpack.c.l.b16 %v748
        %v1589 = vunpack.c.h.b16 %v748
        %v1590 = vunpack.c.l.b16 %v749
        %v1591 = vunpack.c.h.b16 %v749
        %v1592 = vunpack.c.l.b16 %v750
        %v1593 = vunpack.c.h.b16 %v750
        %v1594 = vunpack.c.l.b16 %v751
        %v1595 = vunpack.c.h.b16 %v751
        %v1596 = vunpack.c.l.b16 %v752
        %v1597 = vunpack.c.h.b16 %v752
        %v1598 = vunpack.c.l.b16 %v753
        %v1599 = vunpack.c.h.b16 %v753
        %v1600 = vunpack.c.l.b16 %v754
        %v1601 = vunpack.c.h.b16 %v754
        %v1602 = vunpack.c.l.b16 %v755
        %v1603 = vunpack.c.h.b16 %v755
        %v1604 = vunpack.c.l.b16 %v756
        %v1605 = vunpack.c.h.b16 %v756
        %v1606 = vunpack.c.l.b16 %v757
        %v1607 = vunpack.c.h.b16 %v757
        %v1608 = vunpack.c.l.b16 %v758
        %v1609 = vunpack.c.h.b16 %v758
        %v1610 = vunpack.c.l.b16 %v759
        %v1611 = vunpack.c.h.b16 %v759
        %v1612 = vunpack.c.l.b16 %v760
        %v1613 = vunpack.c.h.b16 %v760
        %v1614 = vunpack.c.l.b16 %v761
        %v1615 = vunpack.c.h.b16 %v761
        %v1616 = vunpack.c.l.b16 %v762
        %v1617 = vunpack.c.h.b16 %v762
        %v1618 = vunpack.c.l.b16 %v763
        %v1619 = vunpack.c.h.b16 %v763
        %v1620 = vpack.c.b16 %v1110, %v1108
        %v1621 = vpack.c.b16 %v1111, %v1109
        %v1622 = vpack.c.b16 %v1114, %v1112
        %v1623 = vpack.c.b16 %v1115, %v1113
        %v1624 = vpack.c.b16 %v1118, %v1116
        %v1625 = vpack.c.b16 %v1119, %v1117
        %v1626 = vpack.c.b16 %v1122, %v1120
        %v1627 = vpack.c.b16 %v1123, %v1121
        %v1628 = vpack.c.b16 %v1126, %v1124
        %v1629 = vpack.c.b16 %v1127, %v1125
        %v1630 = vpack.c.b16 %v1130, %v1128
        %v1631 = vpack.c.b16 %v1131, %v1129
        %v1632 = vpack.c.b16 %v1134, %v1132
        %v1633 = vpack.c.b16 %v1135, %v1133
        %v1634 = vpack.c.b16 %v1138, %v1136
        %v1635 = vpack.c.b16 %v1139, %v1137
        %v1636 = vpack.c.b16 %v1142, %v1140
        %v1637 = vpack.c.b16 %v1143, %v1141
        %v1638 = vpack.c.b16 %v1146, %v1144
        %v1639 = vpack.c.b16 %v1147, %v1145
        %v1640 = vpack.c.b16 %v1150, %v1148
        %v1641 = vpack.c.b16 %v1151, %v1149
        %v1642 = vpack.c.b16 %v1154, %v1152
        %v1643 = vpack.c.b16 %v1155, %v1153
        %v1644 = vpack.c.b16 %v1158, %v1156
        %v1645 = vpack.c.b16 %v1159, %v1157
        %v1646 = vpack.c.b16 %v1162, %v1160
        %v1647 = vpack.c.b16 %v1163, %v1161
        %v1648 = vpack.c.b16 %v1166, %v1164
        %v1649 = vpack.c.b16 %v1167, %v1165
        %v1650 = vpack.c.b16 %v1170, %v1168
        %v1651 = vpack.c.b16 %v1171, %v1169
        %v1652 = vpack.c.b16 %v1174, %v1172
        %v1653 = vpack.c.b16 %v1175, %v1173
        %v1654 = vpack.c.b16 %v1178, %v1176
        %v1655 = vpack.c.b16 %v1179, %v1177
        %v1656 = vpack.c.b16 %v1182, %v1180
        %v1657 = vpack.c.b16 %v1183, %v1181
        %v1658 = vpack.c.b16 %v1186, %v1184
        %v1659 = vpack.c.b16 %v1187, %v1185
        %v1660 = vpack.c.b16 %v1190, %v1188
        %v1661 = vpack.c.b16 %v1191, %v1189
        %v1662 = vpack.c.b16 %v1194, %v1192
        %v1663 = vpack.c.b16 %v1195, %v1193
        %v1664 = vpack.c.b16 %v1198, %v1196
        %v1665 = vpack.c.b16 %v1199, %v1197
        %v1666 = vpack.c.b16 %v1202, %v1200
        %v1667 = vpack.c.b16 %v1203, %v1201
        %v1668 = vpack.c.b16 %v1206, %v1204
        %v1669 = vpack.c.b16 %v1207, %v1205
        %v1670 = vpack.c.b16 %v1210, %v1208
        %v1671 = vpack.c.b16 %v1211, %v1209
        %v1672 = vpack.c.b16 %v1214, %v1212
        %v1673 = vpack.c.b16 %v1215, %v1213
        %v1674 = vpack.c.b16 %v1218, %v1216
        %v1675 = vpack.c.b16 %v1219, %v1217
        %v1676 = vpack.c.b16 %v1222, %v1220
        %v1677 = vpack.c.b16 %v1223, %v1221
        %v1678 = vpack.c.b16 %v1226, %v1224
        %v1679 = vpack.c.b16 %v1227, %v1225
        %v1680 = vpack.c.b16 %v1230, %v1228
        %v1681 = vpack.c.b16 %v1231, %v1229
        %v1682 = vpack.c.b16 %v1234, %v1232
        %v1683 = vpack.c.b16 %v1235, %v1233
        %v1684 = vpack.c.b16 %v1238, %v1236
        %v1685 = vpack.c.b16 %v1239, %v1237
        %v1686 = vpack.c.b16 %v1242, %v1240
        %v1687 = vpack.c.b16 %v1243, %v1241
        %v1688 = vpack.c.b16 %v1246, %v1244
        %v1689 = vpack.c.b16 %v1247, %v1245
        %v1690 = vpack.c.b16 %v1250, %v1248
        %v1691 = vpack.c.b16 %v1251, %v1249
        %v1692 = vpack.c.b16 %v1254, %v1252
        %v1693 = vpack.c.b16 %v1255, %v1253
        %v1694 = vpack.c.b16 %v1258, %v1256
        %v1695 = vpack.c.b16 %v1259, %v1257
        %v1696 = vpack.c.b16 %v1262, %v1260
        %v1697 = vpack.c.b16 %v1263, %v1261
        %v1698 = vpack.c.b16 %v1266, %v1264
        %v1699 = vpack.c.b16 %v1267, %v1265
        %v1700 = vpack.c.b16 %v1270, %v1268
        %v1701 = vpack.c.b16 %v1271, %v1269
        %v1702 = vpack.c.b16 %v1274, %v1272
        %v1703 = vpack.c.b16 %v1275, %v1273
        %v1704 = vpack.c.b16 %v1278, %v1276
        %v1705 = vpack.c.b16 %v1279, %v1277
        %v1706 = vpack.c.b16 %v1282, %v1280
        %v1707 = vpack.c.b16 %v1283, %v1281
        %v1708 = vpack.c.b16 %v1286, %v1284
        %v1709 = vpack.c.b16 %v1287, %v1285
        %v1710 = vpack.c.b16 %v1290, %v1288
        %v1711 = vpack.c.b16 %v1291, %v1289
        %v1712 = vpack.c.b16 %v1294, %v1292
        %v1713 = vpack.c.b16 %v1295, %v1293
        %v1714 = vpack.c.b16 %v1298, %v1296
        %v1715 = vpack.c.b16 %v1299, %v1297
        %v1716 = vpack.c.b16 %v1302, %v1300
        %v1717 = vpack.c.b16 %v1303, %v1301
        %v1718 = vpack.c.b16 %v1306, %v1304
        %v1719 = vpack.c.b16 %v1307, %v1305
        %v1720 = vpack.c.b16 %v1310, %v1308
        %v1721 = vpack.c.b16 %v1311, %v1309
        %v1722 = vpack.c.b16 %v1314, %v1312
        %v1723 = vpack.c.b16 %v1315, %v1313
        %v1724 = vpack.c.b16 %v1318, %v1316
        %v1725 = vpack.c.b16 %v1319, %v1317
        %v1726 = vpack.c.b16 %v1322, %v1320
        %v1727 = vpack.c.b16 %v1323, %v1321
        %v1728 = vpack.c.b16 %v1326, %v1324
        %v1729 = vpack.c.b16 %v1327, %v1325
        %v1730 = vpack.c.b16 %v1330, %v1328
        %v1731 = vpack.c.b16 %v1331, %v1329
        %v1732 = vpack.c.b16 %v1334, %v1332
        %v1733 = vpack.c.b16 %v1335, %v1333
        %v1734 = vpack.c.b16 %v1338, %v1336
        %v1735 = vpack.c.b16 %v1339, %v1337
        %v1736 = vpack.c.b16 %v1342, %v1340
        %v1737 = vpack.c.b16 %v1343, %v1341
        %v1738 = vpack.c.b16 %v1346, %v1344
        %v1739 = vpack.c.b16 %v1347, %v1345
        %v1740 = vpack.c.b16 %v1350, %v1348
        %v1741 = vpack.c.b16 %v1351, %v1349
        %v1742 = vpack.c.b16 %v1354, %v1352
        %v1743 = vpack.c.b16 %v1355, %v1353
        %v1744 = vpack.c.b16 %v1358, %v1356
        %v1745 = vpack.c.b16 %v1359, %v1357
        %v1746 = vpack.c.b16 %v1362, %v1360
        %v1747 = vpack.c.b16 %v1363, %v1361
        %v1748 = vpack.c.b16 %v1366, %v1364
        %v1749 = vpack.c.b16 %v1367, %v1365
        %v1750 = vpack.c.b16 %v1370, %v1368
        %v1751 = vpack.c.b16 %v1371, %v1369
        %v1752 = vpack.c.b16 %v1374, %v1372
        %v1753 = vpack.c.b16 %v1375, %v1373
        %v1754 = vpack.c.b16 %v1378, %v1376
        %v1755 = vpack.c.b16 %v1379, %v1377
        %v1756 = vpack.c.b16 %v1382, %v1380
        %v1757 = vpack.c.b16 %v1383, %v1381
        %v1758 = vpack.c.b16 %v1386, %v1384
        %v1759 = vpack.c.b16 %v1387, %v1385
        %v1760 = vpack.c.b16 %v1390, %v1388
        %v1761 = vpack.c.b16 %v1391, %v1389
        %v1762 = vpack.c.b16 %v1394, %v1392
        %v1763 = vpack.c.b16 %v1395, %v1393
        %v1764 = vpack.c.b16 %v1398, %v1396
        %v1765 = vpack.c.b16 %v1399, %v1397
        %v1766 = vpack.c.b16 %v1402, %v1400
        %v1767 = vpack.c.b16 %v1403, %v1401
        %v1768 = vpack.c.b16 %v1406, %v1404
        %v1769 = vpack.c.b16 %v1407, %v1405
        %v1770 = vpack.c.b16 %v1410, %v1408
        %v1771 = vpack.c.b16 %v1411, %v1409
        %v1772 = vpack.c.b16 %v1414, %v1412
        %v1773 = vpack.c.b16 %v1415, %v1413
        %v1774 = vpack.c.b16 %v1418, %v1416
        %v1775 = vpack.c.b16 %v1419, %v1417
        %v1776 = vpack.c.b16 %v1422, %v1420
        %v1777 = vpack.c.b16 %v1423, %v1421
        %v1778 = vpack.c.b16 %v1426, %v1424
        %v1779 = vpack.c.b16 %v1427, %v1425
        %v1780 = vpack.c.b16 %v1430, %v1428
        %v1781 = vpack.c.b16 %v1431, %v1429
        %v1782 = vpack.c.b16 %v1434, %v1432
        %v1783 = vpack.c.b16 %v1435, %v1433
        %v1784 = vpack.c.b16 %v1438, %v1436
        %v1785 = vpack.c.b16 %v1439, %v1437
        %v1786 = vpack.c.b16 %v1442, %v1440
        %v1787 = vpack.c.b16 %v1443, %v1441
        %v1788 = vpack.c.b16 %v1446, %v1444
        %v1789 = vpack.c.b16 %v1447, %v1445
        %v1790 = vpack.c.b16 %v1450, %v1448
        %v1791 = vpack.c.b16 %v1451, %v1449
        %v1792 = vpack.c.b16 %v1454, %v1452
        %v1793 = vpack.c.b16 %v1455, %v1453
        %v1794 = vpack.c.b16 %v1458, %v1456
        %v1795 = vpack.c.b16 %v1459, %v1457
        %v1796 = vpack.c.b16 %v1462, %v1460
        %v1797 = vpack.c.b16 %v1463, %v1461
        %v1798 = vpack.c.b16 %v1466, %v1464
        %v1799 = vpack.c.b16 %v1467, %v1465
        %v1800 = vpack.c.b16 %v1470, %v1468
        %v1801 = vpack.c.b16 %v1471, %v1469
        %v1802 = vpack.c.b16 %v1474, %v1472
        %v1803 = vpack.c.b16 %v1475, %v1473
        %v1804 = vpack.c.b16 %v1478, %v1476
        %v1805 = vpack.c.b16 %v1479, %v1477
        %v1806 = vpack.c.b16 %v1482, %v1480
        %v1807 = vpack.c.b16 %v1483, %v1481
        %v1808 = vpack.c.b16 %v1486, %v1484
        %v1809 = vpack.c.b16 %v1487, %v1485
        %v1810 = vpack.c.b16 %v1490, %v1488
        %v1811 = vpack.c.b16 %v1491, %v1489
        %v1812 = vpack.c.b16 %v1494, %v1492
        %v1813 = vpack.c.b16 %v1495, %v1493
        %v1814 = vpack.c.b16 %v1498, %v1496
        %v1815 = vpack.c.b16 %v1499, %v1497
        %v1816 = vpack.c.b16 %v1502, %v1500
        %v1817 = vpack.c.b16 %v1503, %v1501
        %v1818 = vpack.c.b16 %v1506, %v1504
        %v1819 = vpack.c.b16 %v1507, %v1505
        %v1820 = vpack.c.b16 %v1510, %v1508
        %v1821 = vpack.c.b16 %v1511, %v1509
        %v1822 = vpack.c.b16 %v1514, %v1512
        %v1823 = vpack.c.b16 %v1515, %v1513
        %v1824 = vpack.c.b16 %v1518, %v1516
        %v1825 = vpack.c.b16 %v1519, %v1517
        %v1826 = vpack.c.b16 %v1522, %v1520
        %v1827 = vpack.c.b16 %v1523, %v1521
        %v1828 = vpack.c.b16 %v1526, %v1524
        %v1829 = vpack.c.b16 %v1527, %v1525
        %v1830 = vpack.c.b16 %v1530, %v1528
        %v1831 = vpack.c.b16 %v1531, %v1529
        %v1832 = vpack.c.b16 %v1534, %v1532
        %v1833 = vpack.c.b16 %v1535, %v1533
        %v1834 = vpack.c.b16 %v1538, %v1536
        %v1835 = vpack.c.b16 %v1539, %v1537
        %v1836 = vpack.c.b16 %v1542, %v1540
        %v1837 = vpack.c.b16 %v1543, %v1541
        %v1838 = vpack.c.b16 %v1546, %v1544
        %v1839 = vpack.c.b16 %v1547, %v1545
        %v1840 = vpack.c.b16 %v1550, %v1548
        %v1841 = vpack.c.b16 %v1551, %v1549
        %v1842 = vpack.c.b16 %v1554, %v1552
        %v1843 = vpack.c.b16 %v1555, %v1553
        %v1844 = vpack.c.b16 %v1558, %v1556
        %v1845 = vpack.c.b16 %v1559, %v1557
        %v1846 = vpack.c.b16 %v1562, %v1560
        %v1847 = vpack.c.b16 %v1563, %v1561
        %v1848 = vpack.c.b16 %v1566, %v1564
        %v1849 = vpack.c.b16 %v1567, %v1565
        %v1850 = vpack.c.b16 %v1570, %v1568
        %v1851 = vpack.c.b16 %v1571, %v1569
        %v1852 = vpack.c.b16 %v1574, %v1572
        %v1853 = vpack.c.b16 %v1575, %v1573
        %v1854 = vpack.c.b16 %v1578, %v1576
        %v1855 = vpack.c.b16 %v1579, %v1577
        %v1856 = vpack.c.b16 %v1582, %v1580
        %v1857 = vpack.c.b16 %v1583, %v1581
        %v1858 = vpack.c.b16 %v1586, %v1584
        %v1859 = vpack.c.b16 %v1587, %v1585
        %v1860 = vpack.c.b16 %v1590, %v1588
        %v1861 = vpack.c.b16 %v1591, %v1589
        %v1862 = vpack.c.b16 %v1594, %v1592
        %v1863 = vpack.c.b16 %v1595, %v1593
        %v1864 = vpack.c.b16 %v1598, %v1596
        %v1865 = vpack.c.b16 %v1599, %v1597
        %v1866 = vpack.c.b16 %v1602, %v1600
        %v1867 = vpack.c.b16 %v1603, %v1601
        %v1868 = vpack.c.b16 %v1606, %v1604
        %v1869 = vpack.c.b16 %v1607, %v1605
        %v1870 = vpack.c.b16 %v1610, %v1608
        %v1871 = vpack.c.b16 %v1611, %v1609
        %v1872 = vpack.c.b16 %v1614, %v1612
        %v1873 = vpack.c.b16 %v1615, %v1613
        %v1874 = vpack.c.b16 %v1618, %v1616
        %v1875 = vpack.c.b16 %v1619, %v1617
        %2132 = vmatprep.subr.bf16.mxu0 %v1635
        %2133 = vmatpush1.bf16.msra.mxu0 %v1634
        %2134 = vmatprep.subr.bf16.mxu0 %v1633
        %2135 = vmatpush1.bf16.msra.mxu0 %v1632
        %2136 = vmatprep.subr.bf16.mxu0 %v1631
        %2137 = vmatpush1.bf16.msra.mxu0 %v1630
        %2138 = vmatprep.subr.bf16.mxu0 %v1629
        %2139 = vmatpush1.bf16.msra.mxu0 %v1628
        %2140 = vmatprep.subr.bf16.mxu0 %v1627
        %2141 = vmatpush1.bf16.msra.mxu0 %v1626
        %2142 = vmatprep.subr.bf16.mxu0 %v1625
        %2143 = vmatpush1.bf16.msra.mxu0 %v1624
        %2144 = vmatprep.subr.bf16.mxu0 %v1623
        %2145 = vmatpush1.bf16.msra.mxu0 %v1622
        %2146 = vmatprep.subr.bf16.mxu0 %v1621
        %2147 = vmatpush1.bf16.msra.mxu0 %v1620
        %2148 = vmatprep.subr.bf16.mxu0 %v1651
        %2149 = vmatpush2.bf16.msra.mxu0 %v1650
        %2150 = vmatprep.subr.bf16.mxu0 %v1649
        %2151 = vmatpush2.bf16.msra.mxu0 %v1648
        %2152 = vmatprep.subr.bf16.mxu0 %v1647
        %2153 = vmatpush2.bf16.msra.mxu0 %v1646
        %2154 = vmatprep.subr.bf16.mxu0 %v1645
        %2155 = vmatpush2.bf16.msra.mxu0 %v1644
        %2156 = vmatprep.subr.bf16.mxu0 %v1643
        %2157 = vmatpush2.bf16.msra.mxu0 %v1642
        %2158 = vmatprep.subr.bf16.mxu0 %v1641
        %2159 = vmatpush2.bf16.msra.mxu0 %v1640
        %2160 = vmatprep.subr.bf16.mxu0 %v1639
        %2161 = vmatpush2.bf16.msra.mxu0 %v1638
        %2162 = vmatprep.subr.bf16.mxu0 %v1637
        %2163 = vmatpush2.bf16.msra.mxu0 %v1636
        %2164 = vmatprep.mubr.bf16.mxu0 %v783
        %2165 = vmatmul.mubr.bf16.gmra.mxu0 %v775
        %v2166 = vpop.f32.mrf.mxu0
        %v2167 = vadd.f32 0.0, %v2166
        %v2168 = vpop.f32.mrf.mxu0
        %v2169 = vadd.f32 0.0, %v2168
        %v2170 = vpop.f32.mrf.mxu0
        %v2171 = vpop.f32.mrf.mxu0
        %2172 = vdwg.mxu0
        %2173 = vmatprep.subr.bf16.mxu0 %v1667
        %2174 = vmatpush1.bf16.msra.mxu0 %v1666
        %2175 = vmatprep.subr.bf16.mxu0 %v1665
        %2176 = vmatpush1.bf16.msra.mxu0 %v1664
        %2177 = vmatprep.subr.bf16.mxu0 %v1663
        %2178 = vmatpush1.bf16.msra.mxu0 %v1662
        %2179 = vmatprep.subr.bf16.mxu0 %v1661
        %2180 = vmatpush1.bf16.msra.mxu0 %v1660
        %2181 = vmatprep.subr.bf16.mxu0 %v1659
        %2182 = vmatpush1.bf16.msra.mxu0 %v1658
        %2183 = vmatprep.subr.bf16.mxu0 %v1657
        %2184 = vmatpush1.bf16.msra.mxu0 %v1656
        %2185 = vmatprep.subr.bf16.mxu0 %v1655
        %2186 = vmatpush1.bf16.msra.mxu0 %v1654
        %2187 = vmatprep.subr.bf16.mxu0 %v1653
        %2188 = vmatpush1.bf16.msra.mxu0 %v1652
        %2189 = vmatprep.subr.bf16.mxu0 %v1683
        %2190 = vmatpush2.bf16.msra.mxu0 %v1682
        %2191 = vmatprep.subr.bf16.mxu0 %v1681
        %2192 = vmatpush2.bf16.msra.mxu0 %v1680
        %2193 = vmatprep.subr.bf16.mxu0 %v1679
        %2194 = vmatpush2.bf16.msra.mxu0 %v1678
        %2195 = vmatprep.subr.bf16.mxu0 %v1677
        %2196 = vmatpush2.bf16.msra.mxu0 %v1676
        %2197 = vmatprep.subr.bf16.mxu0 %v1675
        %2198 = vmatpush2.bf16.msra.mxu0 %v1674
        %2199 = vmatprep.subr.bf16.mxu0 %v1673
        %2200 = vmatpush2.bf16.msra.mxu0 %v1672
        %2201 = vmatprep.subr.bf16.mxu0 %v1671
        %2202 = vmatpush2.bf16.msra.mxu0 %v1670
        %2203 = vmatprep.subr.bf16.mxu0 %v1669
        %2204 = vmatpush2.bf16.msra.mxu0 %v1668
        %2205 = vmatprep.mubr.bf16.mxu0 %v784
        %2206 = vmatmul.mubr.bf16.gmra.mxu0 %v782
        %v2207 = vpop.f32.mrf.mxu0
        %v2208 = vadd.f32 %v2167, %v2207
        %v2209 = vpop.f32.mrf.mxu0
        %v2210 = vadd.f32 %v2169, %v2209
        %v2211 = vpop.f32.mrf.mxu0
        %v2212 = vpop.f32.mrf.mxu0
        %2213 = vdwg.mxu0
        %2214 = vmatprep.subr.bf16.mxu0 %v1699
        %2215 = vmatpush1.bf16.msra.mxu0 %v1698
        %2216 = vmatprep.subr.bf16.mxu0 %v1697
        %2217 = vmatpush1.bf16.msra.mxu0 %v1696
        %2218 = vmatprep.subr.bf16.mxu0 %v1695
        %2219 = vmatpush1.bf16.msra.mxu0 %v1694
        %2220 = vmatprep.subr.bf16.mxu0 %v1693
        %2221 = vmatpush1.bf16.msra.mxu0 %v1692
        %2222 = vmatprep.subr.bf16.mxu0 %v1691
        %2223 = vmatpush1.bf16.msra.mxu0 %v1690
        %2224 = vmatprep.subr.bf16.mxu0 %v1689
        %2225 = vmatpush1.bf16.msra.mxu0 %v1688
        %2226 = vmatprep.subr.bf16.mxu0 %v1687
        %2227 = vmatpush1.bf16.msra.mxu0 %v1686
        %2228 = vmatprep.subr.bf16.mxu0 %v1685
        %2229 = vmatpush1.bf16.msra.mxu0 %v1684
        %2230 = vmatprep.subr.bf16.mxu0 %v1715
        %2231 = vmatpush2.bf16.msra.mxu0 %v1714
        %2232 = vmatprep.subr.bf16.mxu0 %v1713
        %2233 = vmatpush2.bf16.msra.mxu0 %v1712
        %2234 = vmatprep.subr.bf16.mxu0 %v1711
        %2235 = vmatpush2.bf16.msra.mxu0 %v1710
        %2236 = vmatprep.subr.bf16.mxu0 %v1709
        %2237 = vmatpush2.bf16.msra.mxu0 %v1708
        %2238 = vmatprep.subr.bf16.mxu0 %v1707
        %2239 = vmatpush2.bf16.msra.mxu0 %v1706
        %2240 = vmatprep.subr.bf16.mxu0 %v1705
        %2241 = vmatpush2.bf16.msra.mxu0 %v1704
        %2242 = vmatprep.subr.bf16.mxu0 %v1703
        %2243 = vmatpush2.bf16.msra.mxu0 %v1702
        %2244 = vmatprep.subr.bf16.mxu0 %v1701
        %2245 = vmatpush2.bf16.msra.mxu0 %v1700
        %2246 = vmatprep.mubr.bf16.mxu0 %v800
        %2247 = vmatmul.mubr.bf16.gmra.mxu0 %v792
        %v2248 = vpop.f32.mrf.mxu0
        %v2249 = vadd.f32 %v2208, %v2248
        %v2250 = vpop.f32.mrf.mxu0
        %v2251 = vadd.f32 %v2210, %v2250
        %v2252 = vpop.f32.mrf.mxu0
        %v2253 = vpop.f32.mrf.mxu0
        %2254 = vdwg.mxu0
        %2255 = vmatprep.subr.bf16.mxu0 %v1731
        %2256 = vmatpush1.bf16.msra.mxu0 %v1730
        %2257 = vmatprep.subr.bf16.mxu0 %v1729
        %2258 = vmatpush1.bf16.msra.mxu0 %v1728
        %2259 = vmatprep.subr.bf16.mxu0 %v1727
        %2260 = vmatpush1.bf16.msra.mxu0 %v1726
        %2261 = vmatprep.subr.bf16.mxu0 %v1725
        %2262 = vmatpush1.bf16.msra.mxu0 %v1724
        %2263 = vmatprep.subr.bf16.mxu0 %v1723
        %2264 = vmatpush1.bf16.msra.mxu0 %v1722
        %2265 = vmatprep.subr.bf16.mxu0 %v1721
        %2266 = vmatpush1.bf16.msra.mxu0 %v1720
        %2267 = vmatprep.subr.bf16.mxu0 %v1719
        %2268 = vmatpush1.bf16.msra.mxu0 %v1718
        %2269 = vmatprep.subr.bf16.mxu0 %v1717
        %2270 = vmatpush1.bf16.msra.mxu0 %v1716
        %2271 = vmatprep.subr.bf16.mxu0 %v1747
        %2272 = vmatpush2.bf16.msra.mxu0 %v1746
        %2273 = vmatprep.subr.bf16.mxu0 %v1745
        %2274 = vmatpush2.bf16.msra.mxu0 %v1744
        %2275 = vmatprep.subr.bf16.mxu0 %v1743
        %2276 = vmatpush2.bf16.msra.mxu0 %v1742
        %2277 = vmatprep.subr.bf16.mxu0 %v1741
        %2278 = vmatpush2.bf16.msra.mxu0 %v1740
        %2279 = vmatprep.subr.bf16.mxu0 %v1739
        %2280 = vmatpush2.bf16.msra.mxu0 %v1738
        %2281 = vmatprep.subr.bf16.mxu0 %v1737
        %2282 = vmatpush2.bf16.msra.mxu0 %v1736
        %2283 = vmatprep.subr.bf16.mxu0 %v1735
        %2284 = vmatpush2.bf16.msra.mxu0 %v1734
        %2285 = vmatprep.subr.bf16.mxu0 %v1733
        %2286 = vmatpush2.bf16.msra.mxu0 %v1732
        %2287 = vmatprep.mubr.bf16.mxu0 %v801
        %2288 = vmatmul.mubr.bf16.gmra.mxu0 %v799
        %v2289 = vpop.f32.mrf.mxu0
        %v2290 = vadd.f32 %v2249, %v2289
        %v2291 = vpop.f32.mrf.mxu0
        %v2292 = vadd.f32 %v2251, %v2291
        %v2293 = vpop.f32.mrf.mxu0
        %v2294 = vpop.f32.mrf.mxu0
        %2295 = vdwg.mxu0
        %2296 = vmatprep.subr.bf16.mxu0 %v1763
        %2297 = vmatpush1.bf16.msra.mxu0 %v1762
        %2298 = vmatprep.subr.bf16.mxu0 %v1761
        %2299 = vmatpush1.bf16.msra.mxu0 %v1760
        %2300 = vmatprep.subr.bf16.mxu0 %v1759
        %2301 = vmatpush1.bf16.msra.mxu0 %v1758
        %2302 = vmatprep.subr.bf16.mxu0 %v1757
        %2303 = vmatpush1.bf16.msra.mxu0 %v1756
        %2304 = vmatprep.subr.bf16.mxu0 %v1755
        %2305 = vmatpush1.bf16.msra.mxu0 %v1754
        %2306 = vmatprep.subr.bf16.mxu0 %v1753
        %2307 = vmatpush1.bf16.msra.mxu0 %v1752
        %2308 = vmatprep.subr.bf16.mxu0 %v1751
        %2309 = vmatpush1.bf16.msra.mxu0 %v1750
        %2310 = vmatprep.subr.bf16.mxu0 %v1749
        %2311 = vmatpush1.bf16.msra.mxu0 %v1748
        %2312 = vmatprep.subr.bf16.mxu0 %v1779
        %2313 = vmatpush2.bf16.msra.mxu0 %v1778
        %2314 = vmatprep.subr.bf16.mxu0 %v1777
        %2315 = vmatpush2.bf16.msra.mxu0 %v1776
        %2316 = vmatprep.subr.bf16.mxu0 %v1775
        %2317 = vmatpush2.bf16.msra.mxu0 %v1774
        %2318 = vmatprep.subr.bf16.mxu0 %v1773
        %2319 = vmatpush2.bf16.msra.mxu0 %v1772
        %2320 = vmatprep.subr.bf16.mxu0 %v1771
        %2321 = vmatpush2.bf16.msra.mxu0 %v1770
        %2322 = vmatprep.subr.bf16.mxu0 %v1769
        %2323 = vmatpush2.bf16.msra.mxu0 %v1768
        %2324 = vmatprep.subr.bf16.mxu0 %v1767
        %2325 = vmatpush2.bf16.msra.mxu0 %v1766
        %2326 = vmatprep.subr.bf16.mxu0 %v1765
        %2327 = vmatpush2.bf16.msra.mxu0 %v1764
        %2328 = vmatprep.mubr.bf16.mxu0 %v817
        %2329 = vmatmul.mubr.bf16.gmra.mxu0 %v809
        %v2330 = vpop.f32.mrf.mxu0
        %v2331 = vadd.f32 %v2290, %v2330
        %v2332 = vpop.f32.mrf.mxu0
        %v2333 = vadd.f32 %v2292, %v2332
        %v2334 = vpop.f32.mrf.mxu0
        %v2335 = vpop.f32.mrf.mxu0
        %2336 = vdwg.mxu0
        %2337 = vmatprep.subr.bf16.mxu0 %v1795
        %2338 = vmatpush1.bf16.msra.mxu0 %v1794
        %2339 = vmatprep.subr.bf16.mxu0 %v1793
        %2340 = vmatpush1.bf16.msra.mxu0 %v1792
        %2341 = vmatprep.subr.bf16.mxu0 %v1791
        %2342 = vmatpush1.bf16.msra.mxu0 %v1790
        %2343 = vmatprep.subr.bf16.mxu0 %v1789
        %2344 = vmatpush1.bf16.msra.mxu0 %v1788
        %2345 = vmatprep.subr.bf16.mxu0 %v1787
        %2346 = vmatpush1.bf16.msra.mxu0 %v1786
        %2347 = vmatprep.subr.bf16.mxu0 %v1785
        %2348 = vmatpush1.bf16.msra.mxu0 %v1784
        %2349 = vmatprep.subr.bf16.mxu0 %v1783
        %2350 = vmatpush1.bf16.msra.mxu0 %v1782
        %2351 = vmatprep.subr.bf16.mxu0 %v1781
        %2352 = vmatpush1.bf16.msra.mxu0 %v1780
        %2353 = vmatprep.subr.bf16.mxu0 %v1811
        %2354 = vmatpush2.bf16.msra.mxu0 %v1810
        %2355 = vmatprep.subr.bf16.mxu0 %v1809
        %2356 = vmatpush2.bf16.msra.mxu0 %v1808
        %2357 = vmatprep.subr.bf16.mxu0 %v1807
        %2358 = vmatpush2.bf16.msra.mxu0 %v1806
        %2359 = vmatprep.subr.bf16.mxu0 %v1805
        %2360 = vmatpush2.bf16.msra.mxu0 %v1804
        %2361 = vmatprep.subr.bf16.mxu0 %v1803
        %2362 = vmatpush2.bf16.msra.mxu0 %v1802
        %2363 = vmatprep.subr.bf16.mxu0 %v1801
        %2364 = vmatpush2.bf16.msra.mxu0 %v1800
        %2365 = vmatprep.subr.bf16.mxu0 %v1799
        %2366 = vmatpush2.bf16.msra.mxu0 %v1798
        %2367 = vmatprep.subr.bf16.mxu0 %v1797
        %2368 = vmatpush2.bf16.msra.mxu0 %v1796
        %2369 = vmatprep.mubr.bf16.mxu0 %v818
        %2370 = vmatmul.mubr.bf16.gmra.mxu0 %v816
        %v2371 = vpop.f32.mrf.mxu0
        %v2372 = vadd.f32 %v2331, %v2371
        %v2373 = vpop.f32.mrf.mxu0
        %v2374 = vadd.f32 %v2333, %v2373
        %v2375 = vpop.f32.mrf.mxu0
        %v2376 = vpop.f32.mrf.mxu0
        %2377 = vdwg.mxu0
        %2378 = vmatprep.subr.bf16.mxu0 %v1827
        %2379 = vmatpush1.bf16.msra.mxu0 %v1826
        %2380 = vmatprep.subr.bf16.mxu0 %v1825
        %2381 = vmatpush1.bf16.msra.mxu0 %v1824
        %2382 = vmatprep.subr.bf16.mxu0 %v1823
        %2383 = vmatpush1.bf16.msra.mxu0 %v1822
        %2384 = vmatprep.subr.bf16.mxu0 %v1821
        %2385 = vmatpush1.bf16.msra.mxu0 %v1820
        %2386 = vmatprep.subr.bf16.mxu0 %v1819
        %2387 = vmatpush1.bf16.msra.mxu0 %v1818
        %2388 = vmatprep.subr.bf16.mxu0 %v1817
        %2389 = vmatpush1.bf16.msra.mxu0 %v1816
        %2390 = vmatprep.subr.bf16.mxu0 %v1815
        %2391 = vmatpush1.bf16.msra.mxu0 %v1814
        %2392 = vmatprep.subr.bf16.mxu0 %v1813
        %2393 = vmatpush1.bf16.msra.mxu0 %v1812
        %2394 = vmatprep.subr.bf16.mxu0 %v1843
        %2395 = vmatpush2.bf16.msra.mxu0 %v1842
        %2396 = vmatprep.subr.bf16.mxu0 %v1841
        %2397 = vmatpush2.bf16.msra.mxu0 %v1840
        %2398 = vmatprep.subr.bf16.mxu0 %v1839
        %2399 = vmatpush2.bf16.msra.mxu0 %v1838
        %2400 = vmatprep.subr.bf16.mxu0 %v1837
        %2401 = vmatpush2.bf16.msra.mxu0 %v1836
        %2402 = vmatprep.subr.bf16.mxu0 %v1835
        %2403 = vmatpush2.bf16.msra.mxu0 %v1834
        %2404 = vmatprep.subr.bf16.mxu0 %v1833
        %2405 = vmatpush2.bf16.msra.mxu0 %v1832
        %2406 = vmatprep.subr.bf16.mxu0 %v1831
        %2407 = vmatpush2.bf16.msra.mxu0 %v1830
        %2408 = vmatprep.subr.bf16.mxu0 %v1829
        %2409 = vmatpush2.bf16.msra.mxu0 %v1828
        %2410 = vmatprep.mubr.bf16.mxu0 %v834
        %2411 = vmatmul.mubr.bf16.gmra.mxu0 %v826
        %v2412 = vpop.f32.mrf.mxu0
        %v2413 = vadd.f32 %v2372, %v2412
        %v2414 = vpop.f32.mrf.mxu0
        %v2415 = vadd.f32 %v2374, %v2414
        %v2416 = vpop.f32.mrf.mxu0
        %v2417 = vpop.f32.mrf.mxu0
        %2418 = vdwg.mxu0
        %2419 = vmatprep.subr.bf16.mxu0 %v1859
        %2420 = vmatpush1.bf16.msra.mxu0 %v1858
        %2421 = vmatprep.subr.bf16.mxu0 %v1857
        %2422 = vmatpush1.bf16.msra.mxu0 %v1856
        %2423 = vmatprep.subr.bf16.mxu0 %v1855
        %2424 = vmatpush1.bf16.msra.mxu0 %v1854
        %2425 = vmatprep.subr.bf16.mxu0 %v1853
        %2426 = vmatpush1.bf16.msra.mxu0 %v1852
        %2427 = vmatprep.subr.bf16.mxu0 %v1851
        %2428 = vmatpush1.bf16.msra.mxu0 %v1850
        %2429 = vmatprep.subr.bf16.mxu0 %v1849
        %2430 = vmatpush1.bf16.msra.mxu0 %v1848
        %2431 = vmatprep.subr.bf16.mxu0 %v1847
        %2432 = vmatpush1.bf16.msra.mxu0 %v1846
        %2433 = vmatprep.subr.bf16.mxu0 %v1845
        %2434 = vmatpush1.bf16.msra.mxu0 %v1844
        %2435 = vmatprep.subr.bf16.mxu0 %v1875
        %2436 = vmatpush2.bf16.msra.mxu0 %v1874
        %2437 = vmatprep.subr.bf16.mxu0 %v1873
        %2438 = vmatpush2.bf16.msra.mxu0 %v1872
        %2439 = vmatprep.subr.bf16.mxu0 %v1871
        %2440 = vmatpush2.bf16.msra.mxu0 %v1870
        %2441 = vmatprep.subr.bf16.mxu0 %v1869
        %2442 = vmatpush2.bf16.msra.mxu0 %v1868
        %2443 = vmatprep.subr.bf16.mxu0 %v1867
        %2444 = vmatpush2.bf16.msra.mxu0 %v1866
        %2445 = vmatprep.subr.bf16.mxu0 %v1865
        %2446 = vmatpush2.bf16.msra.mxu0 %v1864
        %2447 = vmatprep.subr.bf16.mxu0 %v1863
        %2448 = vmatpush2.bf16.msra.mxu0 %v1862
        %2449 = vmatprep.subr.bf16.mxu0 %v1861
        %2450 = vmatpush2.bf16.msra.mxu0 %v1860
        %2451 = vmatprep.mubr.bf16.mxu0 %v835
        %2452 = vmatmul.mubr.bf16.gmra.mxu0 %v833
        %v2453 = vpop.f32.mrf.mxu0
        %v2454 = vadd.f32 %v2413, %v2453
        %v2455 = vpop.f32.mrf.mxu0
        %v2456 = vadd.f32 %v2415, %v2455
        %v2457 = vpop.f32.mrf.mxu0
        %v2458 = vpop.f32.mrf.mxu0
        %2459 = vdwg.mxu0
        %v2462 = vcombine.low %v2454, %v2456
        %v2464 = vadd.f32 %v503, %v2462
        %2465 = vst [vmem:[#allocation2] sm:$0xff] %v2464
        %p2466 = scmp.eq.s32.totalorder %s28, 3
        // Predicated region
        $region101: #{actor_critic_forward.1} parent=59 // pred_check
          %p2467 = pneg %p2466
        $region102: #{actor_critic_forward.1} parent=59 // pred_check_branch
          %2469 = sbr.rel (%p2467) target = $region104
        $region103: #{actor_critic_forward.1} parent=59 // pred_region
          %v2470 = vld [vmem:[#allocation2] sm:$0xff]
          %v2471 = vld [vmem:[#allocation5] sm:$0x3]
          %v2473 = vlaneseq
          %v2474 = vshrl.u32 %v2473, 7
          %v2475 = vsub.s32 0, %v2474
          %v2476 = vrot.slane %v2471, %v2475
          %v2477 = vlaneseq
          %v2478 = vshrl.u32 %v2477, 7
          %v2479 = vsub.s32 1, %v2478
          %v2480 = vrot.slane %v2471, %v2479
          %v2481 = vcombine.low %v2476, %v2480
          %v2483 = vadd.f32 %v2470, %v2481
          %v2484 = vmax.f32 %v2483, 0.0
          %v2486 = vcombine.high %v2484, %v2484
          %v2488 = vpack.c.bf16 %v2484, %v2484
          %v2489 = vpack.c.bf16 %v2486, %v2486
          %v2490 = vld [vmem:[#allocation7] sm:$0xff]
          %v2491 = vld [vmem:[#allocation7 + $0x8] sm:$0xff]
          %v2492 = vld [vmem:[#allocation7 + $0x10] sm:$0xff]
          %v2493 = vld [vmem:[#allocation7 + $0x18] sm:$0xff]
          %v2494 = vld [vmem:[#allocation7 + $0x20] sm:$0xff]
          %v2495 = vld [vmem:[#allocation7 + $0x28] sm:$0xff]
          %v2496 = vld [vmem:[#allocation7 + $0x30] sm:$0xff]
          %v2497 = vld [vmem:[#allocation7 + $0x38] sm:$0xff]
          %v2498 = vld [vmem:[#allocation7 + $0x40] sm:$0xff]
          %v2499 = vld [vmem:[#allocation7 + $0x48] sm:$0xff]
          %v2500 = vld [vmem:[#allocation7 + $0x50] sm:$0xff]
          %v2501 = vld [vmem:[#allocation7 + $0x58] sm:$0xff]
          %v2502 = vld [vmem:[#allocation7 + $0x60] sm:$0xff]
          %v2503 = vld [vmem:[#allocation7 + $0x68] sm:$0xff]
          %v2504 = vld [vmem:[#allocation7 + $0x70] sm:$0xff]
          %v2505 = vld [vmem:[#allocation7 + $0x78] sm:$0xff]
          %v2506 = vld [vmem:[#allocation7 + $0x80] sm:$0xff]
          %v2507 = vld [vmem:[#allocation7 + $0x88] sm:$0xff]
          %v2508 = vld [vmem:[#allocation7 + $0x90] sm:$0xff]
          %v2509 = vld [vmem:[#allocation7 + $0x98] sm:$0xff]
          %v2510 = vld [vmem:[#allocation7 + $0xa0] sm:$0xff]
          %v2511 = vld [vmem:[#allocation7 + $0xa8] sm:$0xff]
          %v2512 = vld [vmem:[#allocation7 + $0xb0] sm:$0xff]
          %v2513 = vld [vmem:[#allocation7 + $0xb8] sm:$0xff]
          %v2514 = vld [vmem:[#allocation7 + $0xc0] sm:$0xff]
          %v2515 = vld [vmem:[#allocation7 + $0xc8] sm:$0xff]
          %v2516 = vld [vmem:[#allocation7 + $0xd0] sm:$0xff]
          %v2517 = vld [vmem:[#allocation7 + $0xd8] sm:$0xff]
          %v2518 = vld [vmem:[#allocation7 + $0xe0] sm:$0xff]
          %v2519 = vld [vmem:[#allocation7 + $0xe8] sm:$0xff]
          %v2520 = vld [vmem:[#allocation7 + $0xf0] sm:$0xff]
          %v2521 = vld [vmem:[#allocation7 + $0xf8] sm:$0xff]
          %v2522 = vld [vmem:[#allocation7 + $0x100] sm:$0xff]
          %v2523 = vld [vmem:[#allocation7 + $0x108] sm:$0xff]
          %v2524 = vld [vmem:[#allocation7 + $0x110] sm:$0xff]
          %v2525 = vld [vmem:[#allocation7 + $0x118] sm:$0xff]
          %v2526 = vld [vmem:[#allocation7 + $0x120] sm:$0xff]
          %v2527 = vld [vmem:[#allocation7 + $0x128] sm:$0xff]
          %v2528 = vld [vmem:[#allocation7 + $0x130] sm:$0xff]
          %v2529 = vld [vmem:[#allocation7 + $0x138] sm:$0xff]
          %v2530 = vld [vmem:[#allocation7 + $0x140] sm:$0xff]
          %v2531 = vld [vmem:[#allocation7 + $0x148] sm:$0xff]
          %v2532 = vld [vmem:[#allocation7 + $0x150] sm:$0xff]
          %v2533 = vld [vmem:[#allocation7 + $0x158] sm:$0xff]
          %v2534 = vld [vmem:[#allocation7 + $0x160] sm:$0xff]
          %v2535 = vld [vmem:[#allocation7 + $0x168] sm:$0xff]
          %v2536 = vld [vmem:[#allocation7 + $0x170] sm:$0xff]
          %v2537 = vld [vmem:[#allocation7 + $0x178] sm:$0xff]
          %v2538 = vld [vmem:[#allocation7 + $0x180] sm:$0xff]
          %v2539 = vld [vmem:[#allocation7 + $0x188] sm:$0xff]
          %v2540 = vld [vmem:[#allocation7 + $0x190] sm:$0xff]
          %v2541 = vld [vmem:[#allocation7 + $0x198] sm:$0xff]
          %v2542 = vld [vmem:[#allocation7 + $0x1a0] sm:$0xff]
          %v2543 = vld [vmem:[#allocation7 + $0x1a8] sm:$0xff]
          %v2544 = vld [vmem:[#allocation7 + $0x1b0] sm:$0xff]
          %v2545 = vld [vmem:[#allocation7 + $0x1b8] sm:$0xff]
          %v2546 = vld [vmem:[#allocation7 + $0x1c0] sm:$0xff]
          %v2547 = vld [vmem:[#allocation7 + $0x1c8] sm:$0xff]
          %v2548 = vld [vmem:[#allocation7 + $0x1d0] sm:$0xff]
          %v2549 = vld [vmem:[#allocation7 + $0x1d8] sm:$0xff]
          %v2550 = vld [vmem:[#allocation7 + $0x1e0] sm:$0xff]
          %v2551 = vld [vmem:[#allocation7 + $0x1e8] sm:$0xff]
          %v2552 = vld [vmem:[#allocation7 + $0x1f0] sm:$0xff]
          %v2553 = vld [vmem:[#allocation7 + $0x1f8] sm:$0xff]
          %v2554 = vld [vmem:[#allocation8] sm:$0xff]
          %v2555 = vld [vmem:[#allocation8 + $0x8] sm:$0xff]
          %v2556 = vld [vmem:[#allocation8 + $0x10] sm:$0xff]
          %v2557 = vld [vmem:[#allocation8 + $0x18] sm:$0xff]
          %v2558 = vld [vmem:[#allocation8 + $0x20] sm:$0xff]
          %v2559 = vld [vmem:[#allocation8 + $0x28] sm:$0xff]
          %v2560 = vld [vmem:[#allocation8 + $0x30] sm:$0xff]
          %v2561 = vld [vmem:[#allocation8 + $0x38] sm:$0xff]
          %v2562 = vld [vmem:[#allocation8 + $0x40] sm:$0xff]
          %v2563 = vld [vmem:[#allocation8 + $0x48] sm:$0xff]
          %v2564 = vld [vmem:[#allocation8 + $0x50] sm:$0xff]
          %v2565 = vld [vmem:[#allocation8 + $0x58] sm:$0xff]
          %v2566 = vld [vmem:[#allocation8 + $0x60] sm:$0xff]
          %v2567 = vld [vmem:[#allocation8 + $0x68] sm:$0xff]
          %v2568 = vld [vmem:[#allocation8 + $0x70] sm:$0xff]
          %v2569 = vld [vmem:[#allocation8 + $0x78] sm:$0xff]
          %v2570 = vld [vmem:[#allocation8 + $0x80] sm:$0xff]
          %v2571 = vld [vmem:[#allocation8 + $0x88] sm:$0xff]
          %v2572 = vld [vmem:[#allocation8 + $0x90] sm:$0xff]
          %v2573 = vld [vmem:[#allocation8 + $0x98] sm:$0xff]
          %v2574 = vld [vmem:[#allocation8 + $0xa0] sm:$0xff]
          %v2575 = vld [vmem:[#allocation8 + $0xa8] sm:$0xff]
          %v2576 = vld [vmem:[#allocation8 + $0xb0] sm:$0xff]
          %v2577 = vld [vmem:[#allocation8 + $0xb8] sm:$0xff]
          %v2578 = vld [vmem:[#allocation8 + $0xc0] sm:$0xff]
          %v2579 = vld [vmem:[#allocation8 + $0xc8] sm:$0xff]
          %v2580 = vld [vmem:[#allocation8 + $0xd0] sm:$0xff]
          %v2581 = vld [vmem:[#allocation8 + $0xd8] sm:$0xff]
          %v2582 = vld [vmem:[#allocation8 + $0xe0] sm:$0xff]
          %v2583 = vld [vmem:[#allocation8 + $0xe8] sm:$0xff]
          %v2584 = vld [vmem:[#allocation8 + $0xf0] sm:$0xff]
          %v2585 = vld [vmem:[#allocation8 + $0xf8] sm:$0xff]
          %v2586 = vld [vmem:[#allocation8 + $0x100] sm:$0xff]
          %v2587 = vld [vmem:[#allocation8 + $0x108] sm:$0xff]
          %v2588 = vld [vmem:[#allocation8 + $0x110] sm:$0xff]
          %v2589 = vld [vmem:[#allocation8 + $0x118] sm:$0xff]
          %v2590 = vld [vmem:[#allocation8 + $0x120] sm:$0xff]
          %v2591 = vld [vmem:[#allocation8 + $0x128] sm:$0xff]
          %v2592 = vld [vmem:[#allocation8 + $0x130] sm:$0xff]
          %v2593 = vld [vmem:[#allocation8 + $0x138] sm:$0xff]
          %v2594 = vld [vmem:[#allocation8 + $0x140] sm:$0xff]
          %v2595 = vld [vmem:[#allocation8 + $0x148] sm:$0xff]
          %v2596 = vld [vmem:[#allocation8 + $0x150] sm:$0xff]
          %v2597 = vld [vmem:[#allocation8 + $0x158] sm:$0xff]
          %v2598 = vld [vmem:[#allocation8 + $0x160] sm:$0xff]
          %v2599 = vld [vmem:[#allocation8 + $0x168] sm:$0xff]
          %v2600 = vld [vmem:[#allocation8 + $0x170] sm:$0xff]
          %v2601 = vld [vmem:[#allocation8 + $0x178] sm:$0xff]
          %v2602 = vld [vmem:[#allocation8 + $0x180] sm:$0xff]
          %v2603 = vld [vmem:[#allocation8 + $0x188] sm:$0xff]
          %v2604 = vld [vmem:[#allocation8 + $0x190] sm:$0xff]
          %v2605 = vld [vmem:[#allocation8 + $0x198] sm:$0xff]
          %v2606 = vld [vmem:[#allocation8 + $0x1a0] sm:$0xff]
          %v2607 = vld [vmem:[#allocation8 + $0x1a8] sm:$0xff]
          %v2608 = vld [vmem:[#allocation8 + $0x1b0] sm:$0xff]
          %v2609 = vld [vmem:[#allocation8 + $0x1b8] sm:$0xff]
          %v2610 = vld [vmem:[#allocation8 + $0x1c0] sm:$0xff]
          %v2611 = vld [vmem:[#allocation8 + $0x1c8] sm:$0xff]
          %v2612 = vld [vmem:[#allocation8 + $0x1d0] sm:$0xff]
          %v2613 = vld [vmem:[#allocation8 + $0x1d8] sm:$0xff]
          %v2614 = vld [vmem:[#allocation8 + $0x1e0] sm:$0xff]
          %v2615 = vld [vmem:[#allocation8 + $0x1e8] sm:$0xff]
          %v2616 = vld [vmem:[#allocation8 + $0x1f0] sm:$0xff]
          %v2617 = vld [vmem:[#allocation8 + $0x1f8] sm:$0xff]
          %v2620 = vrot.slane %v2488, 1
          %v2621 = vrot.slane %v2489, 1
          %v2688 = vunpack.c.l.b16 %v2554
          %v2689 = vunpack.c.h.b16 %v2554
          %v2690 = vunpack.c.l.b16 %v2555
          %v2691 = vunpack.c.h.b16 %v2555
          %v2692 = vunpack.c.l.b16 %v2556
          %v2693 = vunpack.c.h.b16 %v2556
          %v2694 = vunpack.c.l.b16 %v2557
          %v2695 = vunpack.c.h.b16 %v2557
          %v2696 = vunpack.c.l.b16 %v2558
          %v2697 = vunpack.c.h.b16 %v2558
          %v2698 = vunpack.c.l.b16 %v2559
          %v2699 = vunpack.c.h.b16 %v2559
          %v2700 = vunpack.c.l.b16 %v2560
          %v2701 = vunpack.c.h.b16 %v2560
          %v2702 = vunpack.c.l.b16 %v2561
          %v2703 = vunpack.c.h.b16 %v2561
          %v2704 = vunpack.c.l.b16 %v2562
          %v2705 = vunpack.c.h.b16 %v2562
          %v2706 = vunpack.c.l.b16 %v2563
          %v2707 = vunpack.c.h.b16 %v2563
          %v2708 = vunpack.c.l.b16 %v2564
          %v2709 = vunpack.c.h.b16 %v2564
          %v2710 = vunpack.c.l.b16 %v2565
          %v2711 = vunpack.c.h.b16 %v2565
          %v2712 = vunpack.c.l.b16 %v2566
          %v2713 = vunpack.c.h.b16 %v2566
          %v2714 = vunpack.c.l.b16 %v2567
          %v2715 = vunpack.c.h.b16 %v2567
          %v2716 = vunpack.c.l.b16 %v2568
          %v2717 = vunpack.c.h.b16 %v2568
          %v2718 = vunpack.c.l.b16 %v2569
          %v2719 = vunpack.c.h.b16 %v2569
          %v2720 = vunpack.c.l.b16 %v2570
          %v2721 = vunpack.c.h.b16 %v2570
          %v2722 = vunpack.c.l.b16 %v2571
          %v2723 = vunpack.c.h.b16 %v2571
          %v2724 = vunpack.c.l.b16 %v2572
          %v2725 = vunpack.c.h.b16 %v2572
          %v2726 = vunpack.c.l.b16 %v2573
          %v2727 = vunpack.c.h.b16 %v2573
          %v2728 = vunpack.c.l.b16 %v2574
          %v2729 = vunpack.c.h.b16 %v2574
          %v2730 = vunpack.c.l.b16 %v2575
          %v2731 = vunpack.c.h.b16 %v2575
          %v2732 = vunpack.c.l.b16 %v2576
          %v2733 = vunpack.c.h.b16 %v2576
          %v2734 = vunpack.c.l.b16 %v2577
          %v2735 = vunpack.c.h.b16 %v2577
          %v2736 = vunpack.c.l.b16 %v2578
          %v2737 = vunpack.c.h.b16 %v2578
          %v2738 = vunpack.c.l.b16 %v2579
          %v2739 = vunpack.c.h.b16 %v2579
          %v2740 = vunpack.c.l.b16 %v2580
          %v2741 = vunpack.c.h.b16 %v2580
          %v2742 = vunpack.c.l.b16 %v2581
          %v2743 = vunpack.c.h.b16 %v2581
          %v2744 = vunpack.c.l.b16 %v2582
          %v2745 = vunpack.c.h.b16 %v2582
          %v2746 = vunpack.c.l.b16 %v2583
          %v2747 = vunpack.c.h.b16 %v2583
          %v2748 = vunpack.c.l.b16 %v2584
          %v2749 = vunpack.c.h.b16 %v2584
          %v2750 = vunpack.c.l.b16 %v2585
          %v2751 = vunpack.c.h.b16 %v2585
          %v2752 = vunpack.c.l.b16 %v2586
          %v2753 = vunpack.c.h.b16 %v2586
          %v2754 = vunpack.c.l.b16 %v2587
          %v2755 = vunpack.c.h.b16 %v2587
          %v2756 = vunpack.c.l.b16 %v2588
          %v2757 = vunpack.c.h.b16 %v2588
          %v2758 = vunpack.c.l.b16 %v2589
          %v2759 = vunpack.c.h.b16 %v2589
          %v2760 = vunpack.c.l.b16 %v2590
          %v2761 = vunpack.c.h.b16 %v2590
          %v2762 = vunpack.c.l.b16 %v2591
          %v2763 = vunpack.c.h.b16 %v2591
          %v2764 = vunpack.c.l.b16 %v2592
          %v2765 = vunpack.c.h.b16 %v2592
          %v2766 = vunpack.c.l.b16 %v2593
          %v2767 = vunpack.c.h.b16 %v2593
          %v2768 = vunpack.c.l.b16 %v2594
          %v2769 = vunpack.c.h.b16 %v2594
          %v2770 = vunpack.c.l.b16 %v2595
          %v2771 = vunpack.c.h.b16 %v2595
          %v2772 = vunpack.c.l.b16 %v2596
          %v2773 = vunpack.c.h.b16 %v2596
          %v2774 = vunpack.c.l.b16 %v2597
          %v2775 = vunpack.c.h.b16 %v2597
          %v2776 = vunpack.c.l.b16 %v2598
          %v2777 = vunpack.c.h.b16 %v2598
          %v2778 = vunpack.c.l.b16 %v2599
          %v2779 = vunpack.c.h.b16 %v2599
          %v2780 = vunpack.c.l.b16 %v2600
          %v2781 = vunpack.c.h.b16 %v2600
          %v2782 = vunpack.c.l.b16 %v2601
          %v2783 = vunpack.c.h.b16 %v2601
          %v2784 = vunpack.c.l.b16 %v2602
          %v2785 = vunpack.c.h.b16 %v2602
          %v2786 = vunpack.c.l.b16 %v2603
          %v2787 = vunpack.c.h.b16 %v2603
          %v2788 = vunpack.c.l.b16 %v2604
          %v2789 = vunpack.c.h.b16 %v2604
          %v2790 = vunpack.c.l.b16 %v2605
          %v2791 = vunpack.c.h.b16 %v2605
          %v2792 = vunpack.c.l.b16 %v2606
          %v2793 = vunpack.c.h.b16 %v2606
          %v2794 = vunpack.c.l.b16 %v2607
          %v2795 = vunpack.c.h.b16 %v2607
          %v2796 = vunpack.c.l.b16 %v2608
          %v2797 = vunpack.c.h.b16 %v2608
          %v2798 = vunpack.c.l.b16 %v2609
          %v2799 = vunpack.c.h.b16 %v2609
          %v2800 = vunpack.c.l.b16 %v2610
          %v2801 = vunpack.c.h.b16 %v2610
          %v2802 = vunpack.c.l.b16 %v2611
          %v2803 = vunpack.c.h.b16 %v2611
          %v2804 = vunpack.c.l.b16 %v2612
          %v2805 = vunpack.c.h.b16 %v2612
          %v2806 = vunpack.c.l.b16 %v2613
          %v2807 = vunpack.c.h.b16 %v2613
          %v2808 = vunpack.c.l.b16 %v2614
          %v2809 = vunpack.c.h.b16 %v2614
          %v2810 = vunpack.c.l.b16 %v2615
          %v2811 = vunpack.c.h.b16 %v2615
          %v2812 = vunpack.c.l.b16 %v2616
          %v2813 = vunpack.c.h.b16 %v2616
          %v2814 = vunpack.c.l.b16 %v2617
          %v2815 = vunpack.c.h.b16 %v2617
          %v2816 = vpack.c.b16 %v2692, %v2688
          %v2817 = vpack.c.b16 %v2693, %v2689
          %v2818 = vpack.c.b16 %v2694, %v2690
          %v2819 = vpack.c.b16 %v2695, %v2691
          %v2820 = vpack.c.b16 %v2700, %v2696
          %v2821 = vpack.c.b16 %v2701, %v2697
          %v2822 = vpack.c.b16 %v2702, %v2698
          %v2823 = vpack.c.b16 %v2703, %v2699
          %v2824 = vpack.c.b16 %v2708, %v2704
          %v2825 = vpack.c.b16 %v2709, %v2705
          %v2826 = vpack.c.b16 %v2710, %v2706
          %v2827 = vpack.c.b16 %v2711, %v2707
          %v2828 = vpack.c.b16 %v2716, %v2712
          %v2829 = vpack.c.b16 %v2717, %v2713
          %v2830 = vpack.c.b16 %v2718, %v2714
          %v2831 = vpack.c.b16 %v2719, %v2715
          %v2832 = vpack.c.b16 %v2724, %v2720
          %v2833 = vpack.c.b16 %v2725, %v2721
          %v2834 = vpack.c.b16 %v2726, %v2722
          %v2835 = vpack.c.b16 %v2727, %v2723
          %v2836 = vpack.c.b16 %v2732, %v2728
          %v2837 = vpack.c.b16 %v2733, %v2729
          %v2838 = vpack.c.b16 %v2734, %v2730
          %v2839 = vpack.c.b16 %v2735, %v2731
          %v2840 = vpack.c.b16 %v2740, %v2736
          %v2841 = vpack.c.b16 %v2741, %v2737
          %v2842 = vpack.c.b16 %v2742, %v2738
          %v2843 = vpack.c.b16 %v2743, %v2739
          %v2844 = vpack.c.b16 %v2748, %v2744
          %v2845 = vpack.c.b16 %v2749, %v2745
          %v2846 = vpack.c.b16 %v2750, %v2746
          %v2847 = vpack.c.b16 %v2751, %v2747
          %v2848 = vpack.c.b16 %v2756, %v2752
          %v2849 = vpack.c.b16 %v2757, %v2753
          %v2850 = vpack.c.b16 %v2758, %v2754
          %v2851 = vpack.c.b16 %v2759, %v2755
          %v2852 = vpack.c.b16 %v2764, %v2760
          %v2853 = vpack.c.b16 %v2765, %v2761
          %v2854 = vpack.c.b16 %v2766, %v2762
          %v2855 = vpack.c.b16 %v2767, %v2763
          %v2856 = vpack.c.b16 %v2772, %v2768
          %v2857 = vpack.c.b16 %v2773, %v2769
          %v2858 = vpack.c.b16 %v2774, %v2770
          %v2859 = vpack.c.b16 %v2775, %v2771
          %v2860 = vpack.c.b16 %v2780, %v2776
          %v2861 = vpack.c.b16 %v2781, %v2777
          %v2862 = vpack.c.b16 %v2782, %v2778
          %v2863 = vpack.c.b16 %v2783, %v2779
          %v2864 = vpack.c.b16 %v2788, %v2784
          %v2865 = vpack.c.b16 %v2789, %v2785
          %v2866 = vpack.c.b16 %v2790, %v2786
          %v2867 = vpack.c.b16 %v2791, %v2787
          %v2868 = vpack.c.b16 %v2796, %v2792
          %v2869 = vpack.c.b16 %v2797, %v2793
          %v2870 = vpack.c.b16 %v2798, %v2794
          %v2871 = vpack.c.b16 %v2799, %v2795
          %v2872 = vpack.c.b16 %v2804, %v2800
          %v2873 = vpack.c.b16 %v2805, %v2801
          %v2874 = vpack.c.b16 %v2806, %v2802
          %v2875 = vpack.c.b16 %v2807, %v2803
          %v2876 = vpack.c.b16 %v2812, %v2808
          %v2877 = vpack.c.b16 %v2813, %v2809
          %v2878 = vpack.c.b16 %v2814, %v2810
          %v2879 = vpack.c.b16 %v2815, %v2811
          %2944 = vmatprep.subr.bf16.mxu0 %v2845
          %2945 = vmatpush1.bf16.msra.mxu0 %v2844
          %2946 = vmatprep.subr.bf16.mxu0 %v2841
          %2947 = vmatpush1.bf16.msra.mxu0 %v2840
          %2948 = vmatprep.subr.bf16.mxu0 %v2837
          %2949 = vmatpush1.bf16.msra.mxu0 %v2836
          %2950 = vmatprep.subr.bf16.mxu0 %v2833
          %2951 = vmatpush1.bf16.msra.mxu0 %v2832
          %2952 = vmatprep.subr.bf16.mxu0 %v2829
          %2953 = vmatpush1.bf16.msra.mxu0 %v2828
          %2954 = vmatprep.subr.bf16.mxu0 %v2825
          %2955 = vmatpush1.bf16.msra.mxu0 %v2824
          %2956 = vmatprep.subr.bf16.mxu0 %v2821
          %2957 = vmatpush1.bf16.msra.mxu0 %v2820
          %2958 = vmatprep.subr.bf16.mxu0 %v2817
          %2959 = vmatpush1.bf16.msra.mxu0 %v2816
          %2960 = vmatprep.subr.bf16.mxu0 %v2877
          %2961 = vmatpush2.bf16.msra.mxu0 %v2876
          %2962 = vmatprep.subr.bf16.mxu0 %v2873
          %2963 = vmatpush2.bf16.msra.mxu0 %v2872
          %2964 = vmatprep.subr.bf16.mxu0 %v2869
          %2965 = vmatpush2.bf16.msra.mxu0 %v2868
          %2966 = vmatprep.subr.bf16.mxu0 %v2865
          %2967 = vmatpush2.bf16.msra.mxu0 %v2864
          %2968 = vmatprep.subr.bf16.mxu0 %v2861
          %2969 = vmatpush2.bf16.msra.mxu0 %v2860
          %2970 = vmatprep.subr.bf16.mxu0 %v2857
          %2971 = vmatpush2.bf16.msra.mxu0 %v2856
          %2972 = vmatprep.subr.bf16.mxu0 %v2853
          %2973 = vmatpush2.bf16.msra.mxu0 %v2852
          %2974 = vmatprep.subr.bf16.mxu0 %v2849
          %2975 = vmatpush2.bf16.msra.mxu0 %v2848
          %2976 = vmatprep.mubr.bf16.mxu0 %v2621
          %2977 = vmatmul.mubr.bf16.gmra.mxu0 %v2620
          %v2978 = vpop.f32.mrf.mxu0
          %v2979 = vadd.f32 0.0, %v2978
          %v2980 = vpop.f32.mrf.mxu0
          %v2981 = vadd.f32 0.0, %v2980
          %v2982 = vpop.f32.mrf.mxu0
          %v2983 = vpop.f32.mrf.mxu0
          %2984 = vdwg.mxu0
          %2985 = vmatprep.subr.bf16.mxu0 %v2847
          %2986 = vmatpush1.bf16.msra.mxu0 %v2846
          %2987 = vmatprep.subr.bf16.mxu0 %v2843
          %2988 = vmatpush1.bf16.msra.mxu0 %v2842
          %2989 = vmatprep.subr.bf16.mxu0 %v2839
          %2990 = vmatpush1.bf16.msra.mxu0 %v2838
          %2991 = vmatprep.subr.bf16.mxu0 %v2835
          %2992 = vmatpush1.bf16.msra.mxu0 %v2834
          %2993 = vmatprep.subr.bf16.mxu0 %v2831
          %2994 = vmatpush1.bf16.msra.mxu0 %v2830
          %2995 = vmatprep.subr.bf16.mxu0 %v2827
          %2996 = vmatpush1.bf16.msra.mxu0 %v2826
          %2997 = vmatprep.subr.bf16.mxu0 %v2823
          %2998 = vmatpush1.bf16.msra.mxu0 %v2822
          %2999 = vmatprep.subr.bf16.mxu0 %v2819
          %3000 = vmatpush1.bf16.msra.mxu0 %v2818
          %3001 = vmatprep.subr.bf16.mxu0 %v2879
          %3002 = vmatpush2.bf16.msra.mxu0 %v2878
          %3003 = vmatprep.subr.bf16.mxu0 %v2875
          %3004 = vmatpush2.bf16.msra.mxu0 %v2874
          %3005 = vmatprep.subr.bf16.mxu0 %v2871
          %3006 = vmatpush2.bf16.msra.mxu0 %v2870
          %3007 = vmatprep.subr.bf16.mxu0 %v2867
          %3008 = vmatpush2.bf16.msra.mxu0 %v2866
          %3009 = vmatprep.subr.bf16.mxu0 %v2863
          %3010 = vmatpush2.bf16.msra.mxu0 %v2862
          %3011 = vmatprep.subr.bf16.mxu0 %v2859
          %3012 = vmatpush2.bf16.msra.mxu0 %v2858
          %3013 = vmatprep.subr.bf16.mxu0 %v2855
          %3014 = vmatpush2.bf16.msra.mxu0 %v2854
          %3015 = vmatprep.subr.bf16.mxu0 %v2851
          %3016 = vmatpush2.bf16.msra.mxu0 %v2850
          %3017 = vmatprep.mubr.bf16.mxu0 %v2621
          %3018 = vmatmul.mubr.bf16.gmra.mxu0 %v2620
          %v3019 = vpop.f32.mrf.mxu0
          %v3020 = vadd.f32 0.0, %v3019
          %v3021 = vpop.f32.mrf.mxu0
          %v3022 = vadd.f32 0.0, %v3021
          %v3023 = vpop.f32.mrf.mxu0
          %v3024 = vpop.f32.mrf.mxu0
          %3025 = vdwg.mxu0
          %v3090 = vunpack.c.l.b16 %v2490
          %v3091 = vunpack.c.h.b16 %v2490
          %v3092 = vunpack.c.l.b16 %v2491
          %v3093 = vunpack.c.h.b16 %v2491
          %v3094 = vunpack.c.l.b16 %v2492
          %v3095 = vunpack.c.h.b16 %v2492
          %v3096 = vunpack.c.l.b16 %v2493
          %v3097 = vunpack.c.h.b16 %v2493
          %v3098 = vunpack.c.l.b16 %v2494
          %v3099 = vunpack.c.h.b16 %v2494
          %v3100 = vunpack.c.l.b16 %v2495
          %v3101 = vunpack.c.h.b16 %v2495
          %v3102 = vunpack.c.l.b16 %v2496
          %v3103 = vunpack.c.h.b16 %v2496
          %v3104 = vunpack.c.l.b16 %v2497
          %v3105 = vunpack.c.h.b16 %v2497
          %v3106 = vunpack.c.l.b16 %v2498
          %v3107 = vunpack.c.h.b16 %v2498
          %v3108 = vunpack.c.l.b16 %v2499
          %v3109 = vunpack.c.h.b16 %v2499
          %v3110 = vunpack.c.l.b16 %v2500
          %v3111 = vunpack.c.h.b16 %v2500
          %v3112 = vunpack.c.l.b16 %v2501
          %v3113 = vunpack.c.h.b16 %v2501
          %v3114 = vunpack.c.l.b16 %v2502
          %v3115 = vunpack.c.h.b16 %v2502
          %v3116 = vunpack.c.l.b16 %v2503
          %v3117 = vunpack.c.h.b16 %v2503
          %v3118 = vunpack.c.l.b16 %v2504
          %v3119 = vunpack.c.h.b16 %v2504
          %v3120 = vunpack.c.l.b16 %v2505
          %v3121 = vunpack.c.h.b16 %v2505
          %v3122 = vunpack.c.l.b16 %v2506
          %v3123 = vunpack.c.h.b16 %v2506
          %v3124 = vunpack.c.l.b16 %v2507
          %v3125 = vunpack.c.h.b16 %v2507
          %v3126 = vunpack.c.l.b16 %v2508
          %v3127 = vunpack.c.h.b16 %v2508
          %v3128 = vunpack.c.l.b16 %v2509
          %v3129 = vunpack.c.h.b16 %v2509
          %v3130 = vunpack.c.l.b16 %v2510
          %v3131 = vunpack.c.h.b16 %v2510
          %v3132 = vunpack.c.l.b16 %v2511
          %v3133 = vunpack.c.h.b16 %v2511
          %v3134 = vunpack.c.l.b16 %v2512
          %v3135 = vunpack.c.h.b16 %v2512
          %v3136 = vunpack.c.l.b16 %v2513
          %v3137 = vunpack.c.h.b16 %v2513
          %v3138 = vunpack.c.l.b16 %v2514
          %v3139 = vunpack.c.h.b16 %v2514
          %v3140 = vunpack.c.l.b16 %v2515
          %v3141 = vunpack.c.h.b16 %v2515
          %v3142 = vunpack.c.l.b16 %v2516
          %v3143 = vunpack.c.h.b16 %v2516
          %v3144 = vunpack.c.l.b16 %v2517
          %v3145 = vunpack.c.h.b16 %v2517
          %v3146 = vunpack.c.l.b16 %v2518
          %v3147 = vunpack.c.h.b16 %v2518
          %v3148 = vunpack.c.l.b16 %v2519
          %v3149 = vunpack.c.h.b16 %v2519
          %v3150 = vunpack.c.l.b16 %v2520
          %v3151 = vunpack.c.h.b16 %v2520
          %v3152 = vunpack.c.l.b16 %v2521
          %v3153 = vunpack.c.h.b16 %v2521
          %v3154 = vunpack.c.l.b16 %v2522
          %v3155 = vunpack.c.h.b16 %v2522
          %v3156 = vunpack.c.l.b16 %v2523
          %v3157 = vunpack.c.h.b16 %v2523
          %v3158 = vunpack.c.l.b16 %v2524
          %v3159 = vunpack.c.h.b16 %v2524
          %v3160 = vunpack.c.l.b16 %v2525
          %v3161 = vunpack.c.h.b16 %v2525
          %v3162 = vunpack.c.l.b16 %v2526
          %v3163 = vunpack.c.h.b16 %v2526
          %v3164 = vunpack.c.l.b16 %v2527
          %v3165 = vunpack.c.h.b16 %v2527
          %v3166 = vunpack.c.l.b16 %v2528
          %v3167 = vunpack.c.h.b16 %v2528
          %v3168 = vunpack.c.l.b16 %v2529
          %v3169 = vunpack.c.h.b16 %v2529
          %v3170 = vunpack.c.l.b16 %v2530
          %v3171 = vunpack.c.h.b16 %v2530
          %v3172 = vunpack.c.l.b16 %v2531
          %v3173 = vunpack.c.h.b16 %v2531
          %v3174 = vunpack.c.l.b16 %v2532
          %v3175 = vunpack.c.h.b16 %v2532
          %v3176 = vunpack.c.l.b16 %v2533
          %v3177 = vunpack.c.h.b16 %v2533
          %v3178 = vunpack.c.l.b16 %v2534
          %v3179 = vunpack.c.h.b16 %v2534
          %v3180 = vunpack.c.l.b16 %v2535
          %v3181 = vunpack.c.h.b16 %v2535
          %v3182 = vunpack.c.l.b16 %v2536
          %v3183 = vunpack.c.h.b16 %v2536
          %v3184 = vunpack.c.l.b16 %v2537
          %v3185 = vunpack.c.h.b16 %v2537
          %v3186 = vunpack.c.l.b16 %v2538
          %v3187 = vunpack.c.h.b16 %v2538
          %v3188 = vunpack.c.l.b16 %v2539
          %v3189 = vunpack.c.h.b16 %v2539
          %v3190 = vunpack.c.l.b16 %v2540
          %v3191 = vunpack.c.h.b16 %v2540
          %v3192 = vunpack.c.l.b16 %v2541
          %v3193 = vunpack.c.h.b16 %v2541
          %v3194 = vunpack.c.l.b16 %v2542
          %v3195 = vunpack.c.h.b16 %v2542
          %v3196 = vunpack.c.l.b16 %v2543
          %v3197 = vunpack.c.h.b16 %v2543
          %v3198 = vunpack.c.l.b16 %v2544
          %v3199 = vunpack.c.h.b16 %v2544
          %v3200 = vunpack.c.l.b16 %v2545
          %v3201 = vunpack.c.h.b16 %v2545
          %v3202 = vunpack.c.l.b16 %v2546
          %v3203 = vunpack.c.h.b16 %v2546
          %v3204 = vunpack.c.l.b16 %v2547
          %v3205 = vunpack.c.h.b16 %v2547
          %v3206 = vunpack.c.l.b16 %v2548
          %v3207 = vunpack.c.h.b16 %v2548
          %v3208 = vunpack.c.l.b16 %v2549
          %v3209 = vunpack.c.h.b16 %v2549
          %v3210 = vunpack.c.l.b16 %v2550
          %v3211 = vunpack.c.h.b16 %v2550
          %v3212 = vunpack.c.l.b16 %v2551
          %v3213 = vunpack.c.h.b16 %v2551
          %v3214 = vunpack.c.l.b16 %v2552
          %v3215 = vunpack.c.h.b16 %v2552
          %v3216 = vunpack.c.l.b16 %v2553
          %v3217 = vunpack.c.h.b16 %v2553
          %v3218 = vpack.c.b16 %v3094, %v3090
          %v3219 = vpack.c.b16 %v3095, %v3091
          %v3220 = vpack.c.b16 %v3096, %v3092
          %v3221 = vpack.c.b16 %v3097, %v3093
          %v3222 = vpack.c.b16 %v3102, %v3098
          %v3223 = vpack.c.b16 %v3103, %v3099
          %v3224 = vpack.c.b16 %v3104, %v3100
          %v3225 = vpack.c.b16 %v3105, %v3101
          %v3226 = vpack.c.b16 %v3110, %v3106
          %v3227 = vpack.c.b16 %v3111, %v3107
          %v3228 = vpack.c.b16 %v3112, %v3108
          %v3229 = vpack.c.b16 %v3113, %v3109
          %v3230 = vpack.c.b16 %v3118, %v3114
          %v3231 = vpack.c.b16 %v3119, %v3115
          %v3232 = vpack.c.b16 %v3120, %v3116
          %v3233 = vpack.c.b16 %v3121, %v3117
          %v3234 = vpack.c.b16 %v3126, %v3122
          %v3235 = vpack.c.b16 %v3127, %v3123
          %v3236 = vpack.c.b16 %v3128, %v3124
          %v3237 = vpack.c.b16 %v3129, %v3125
          %v3238 = vpack.c.b16 %v3134, %v3130
          %v3239 = vpack.c.b16 %v3135, %v3131
          %v3240 = vpack.c.b16 %v3136, %v3132
          %v3241 = vpack.c.b16 %v3137, %v3133
          %v3242 = vpack.c.b16 %v3142, %v3138
          %v3243 = vpack.c.b16 %v3143, %v3139
          %v3244 = vpack.c.b16 %v3144, %v3140
          %v3245 = vpack.c.b16 %v3145, %v3141
          %v3246 = vpack.c.b16 %v3150, %v3146
          %v3247 = vpack.c.b16 %v3151, %v3147
          %v3248 = vpack.c.b16 %v3152, %v3148
          %v3249 = vpack.c.b16 %v3153, %v3149
          %v3250 = vpack.c.b16 %v3158, %v3154
          %v3251 = vpack.c.b16 %v3159, %v3155
          %v3252 = vpack.c.b16 %v3160, %v3156
          %v3253 = vpack.c.b16 %v3161, %v3157
          %v3254 = vpack.c.b16 %v3166, %v3162
          %v3255 = vpack.c.b16 %v3167, %v3163
          %v3256 = vpack.c.b16 %v3168, %v3164
          %v3257 = vpack.c.b16 %v3169, %v3165
          %v3258 = vpack.c.b16 %v3174, %v3170
          %v3259 = vpack.c.b16 %v3175, %v3171
          %v3260 = vpack.c.b16 %v3176, %v3172
          %v3261 = vpack.c.b16 %v3177, %v3173
          %v3262 = vpack.c.b16 %v3182, %v3178
          %v3263 = vpack.c.b16 %v3183, %v3179
          %v3264 = vpack.c.b16 %v3184, %v3180
          %v3265 = vpack.c.b16 %v3185, %v3181
          %v3266 = vpack.c.b16 %v3190, %v3186
          %v3267 = vpack.c.b16 %v3191, %v3187
          %v3268 = vpack.c.b16 %v3192, %v3188
          %v3269 = vpack.c.b16 %v3193, %v3189
          %v3270 = vpack.c.b16 %v3198, %v3194
          %v3271 = vpack.c.b16 %v3199, %v3195
          %v3272 = vpack.c.b16 %v3200, %v3196
          %v3273 = vpack.c.b16 %v3201, %v3197
          %v3274 = vpack.c.b16 %v3206, %v3202
          %v3275 = vpack.c.b16 %v3207, %v3203
          %v3276 = vpack.c.b16 %v3208, %v3204
          %v3277 = vpack.c.b16 %v3209, %v3205
          %v3278 = vpack.c.b16 %v3214, %v3210
          %v3279 = vpack.c.b16 %v3215, %v3211
          %v3280 = vpack.c.b16 %v3216, %v3212
          %v3281 = vpack.c.b16 %v3217, %v3213
          %3346 = vmatprep.subr.bf16.mxu0 %v3247
          %3347 = vmatpush1.bf16.msra.mxu0 %v3246
          %3348 = vmatprep.subr.bf16.mxu0 %v3243
          %3349 = vmatpush1.bf16.msra.mxu0 %v3242
          %3350 = vmatprep.subr.bf16.mxu0 %v3239
          %3351 = vmatpush1.bf16.msra.mxu0 %v3238
          %3352 = vmatprep.subr.bf16.mxu0 %v3235
          %3353 = vmatpush1.bf16.msra.mxu0 %v3234
          %3354 = vmatprep.subr.bf16.mxu0 %v3231
          %3355 = vmatpush1.bf16.msra.mxu0 %v3230
          %3356 = vmatprep.subr.bf16.mxu0 %v3227
          %3357 = vmatpush1.bf16.msra.mxu0 %v3226
          %3358 = vmatprep.subr.bf16.mxu0 %v3223
          %3359 = vmatpush1.bf16.msra.mxu0 %v3222
          %3360 = vmatprep.subr.bf16.mxu0 %v3219
          %3361 = vmatpush1.bf16.msra.mxu0 %v3218
          %3362 = vmatprep.subr.bf16.mxu0 %v3279
          %3363 = vmatpush2.bf16.msra.mxu0 %v3278
          %3364 = vmatprep.subr.bf16.mxu0 %v3275
          %3365 = vmatpush2.bf16.msra.mxu0 %v3274
          %3366 = vmatprep.subr.bf16.mxu0 %v3271
          %3367 = vmatpush2.bf16.msra.mxu0 %v3270
          %3368 = vmatprep.subr.bf16.mxu0 %v3267
          %3369 = vmatpush2.bf16.msra.mxu0 %v3266
          %3370 = vmatprep.subr.bf16.mxu0 %v3263
          %3371 = vmatpush2.bf16.msra.mxu0 %v3262
          %3372 = vmatprep.subr.bf16.mxu0 %v3259
          %3373 = vmatpush2.bf16.msra.mxu0 %v3258
          %3374 = vmatprep.subr.bf16.mxu0 %v3255
          %3375 = vmatpush2.bf16.msra.mxu0 %v3254
          %3376 = vmatprep.subr.bf16.mxu0 %v3251
          %3377 = vmatpush2.bf16.msra.mxu0 %v3250
          %3378 = vmatprep.mubr.bf16.mxu0 %v2489
          %3379 = vmatmul.mubr.bf16.gmra.mxu0 %v2488
          %v3380 = vpop.f32.mrf.mxu0
          %v3381 = vadd.f32 %v2979, %v3380
          %v3382 = vpop.f32.mrf.mxu0
          %v3383 = vadd.f32 %v2981, %v3382
          %v3384 = vpop.f32.mrf.mxu0
          %v3385 = vpop.f32.mrf.mxu0
          %3386 = vdwg.mxu0
          %3387 = vmatprep.subr.bf16.mxu0 %v3249
          %3388 = vmatpush1.bf16.msra.mxu0 %v3248
          %3389 = vmatprep.subr.bf16.mxu0 %v3245
          %3390 = vmatpush1.bf16.msra.mxu0 %v3244
          %3391 = vmatprep.subr.bf16.mxu0 %v3241
          %3392 = vmatpush1.bf16.msra.mxu0 %v3240
          %3393 = vmatprep.subr.bf16.mxu0 %v3237
          %3394 = vmatpush1.bf16.msra.mxu0 %v3236
          %3395 = vmatprep.subr.bf16.mxu0 %v3233
          %3396 = vmatpush1.bf16.msra.mxu0 %v3232
          %3397 = vmatprep.subr.bf16.mxu0 %v3229
          %3398 = vmatpush1.bf16.msra.mxu0 %v3228
          %3399 = vmatprep.subr.bf16.mxu0 %v3225
          %3400 = vmatpush1.bf16.msra.mxu0 %v3224
          %3401 = vmatprep.subr.bf16.mxu0 %v3221
          %3402 = vmatpush1.bf16.msra.mxu0 %v3220
          %3403 = vmatprep.subr.bf16.mxu0 %v3281
          %3404 = vmatpush2.bf16.msra.mxu0 %v3280
          %3405 = vmatprep.subr.bf16.mxu0 %v3277
          %3406 = vmatpush2.bf16.msra.mxu0 %v3276
          %3407 = vmatprep.subr.bf16.mxu0 %v3273
          %3408 = vmatpush2.bf16.msra.mxu0 %v3272
          %3409 = vmatprep.subr.bf16.mxu0 %v3269
          %3410 = vmatpush2.bf16.msra.mxu0 %v3268
          %3411 = vmatprep.subr.bf16.mxu0 %v3265
          %3412 = vmatpush2.bf16.msra.mxu0 %v3264
          %3413 = vmatprep.subr.bf16.mxu0 %v3261
          %3414 = vmatpush2.bf16.msra.mxu0 %v3260
          %3415 = vmatprep.subr.bf16.mxu0 %v3257
          %3416 = vmatpush2.bf16.msra.mxu0 %v3256
          %3417 = vmatprep.subr.bf16.mxu0 %v3253
          %3418 = vmatpush2.bf16.msra.mxu0 %v3252
          %3419 = vmatprep.mubr.bf16.mxu0 %v2489
          %3420 = vmatmul.mubr.bf16.gmra.mxu0 %v2488
          %v3421 = vpop.f32.mrf.mxu0
          %v3422 = vadd.f32 %v3020, %v3421
          %v3423 = vpop.f32.mrf.mxu0
          %v3424 = vadd.f32 %v3022, %v3423
          %v3425 = vpop.f32.mrf.mxu0
          %v3426 = vpop.f32.mrf.mxu0
          %3427 = vdwg.mxu0
          %v3428 = vld [vmem:[#allocation10] sm:$0xf]
          %v3430 = vlaneseq
          %v3431 = vshrl.u32 %v3430, 7
          %v3432 = vsub.s32 0, %v3431
          %v3433 = vrot.slane %v3428, %v3432
          %v3434 = vlaneseq
          %v3435 = vshrl.u32 %v3434, 7
          %v3436 = vsub.s32 1, %v3435
          %v3437 = vrot.slane %v3428, %v3436
          %v3438 = vlaneseq
          %v3439 = vshrl.u32 %v3438, 7
          %v3440 = vsub.s32 2, %v3439
          %v3441 = vrot.slane %v3428, %v3440
          %v3442 = vlaneseq
          %v3443 = vshrl.u32 %v3442, 7
          %v3444 = vsub.s32 3, %v3443
          %v3445 = vrot.slane %v3428, %v3444
          %v3450 = vadd.f32 %v3381, %v3433
          %v3451 = vadd.f32 %v3383, %v3437
          %v3452 = vadd.f32 %v3422, %v3441
          %v3453 = vadd.f32 %v3424, %v3445
          %v3454 = vmax.f32 %v3450, 0.0
          %v3455 = vmax.f32 %v3451, 0.0
          %v3456 = vmax.f32 %v3452, 0.0
          %v3457 = vmax.f32 %v3453, 0.0
          %v3458 = vpack.c.bf16 %v3454, %v3454
          %v3459 = vpack.c.bf16 %v3455, %v3455
          %v3460 = vpack.c.bf16 %v3456, %v3456
          %v3461 = vpack.c.bf16 %v3457, %v3457
          %v3462 = vld [vmem:[#allocation11] sm:$0xff]
          %v3463 = vld [vmem:[#allocation11 + $0x8] sm:$0xff]
          %v3464 = vld [vmem:[#allocation11 + $0x10] sm:$0xff]
          %v3465 = vld [vmem:[#allocation11 + $0x18] sm:$0xff]
          %v3466 = vld [vmem:[#allocation11 + $0x20] sm:$0xff]
          %v3467 = vld [vmem:[#allocation11 + $0x28] sm:$0xff]
          %v3468 = vld [vmem:[#allocation11 + $0x30] sm:$0xff]
          %v3469 = vld [vmem:[#allocation11 + $0x38] sm:$0xff]
          %v3470 = vld [vmem:[#allocation11 + $0x40] sm:$0xff]
          %v3471 = vld [vmem:[#allocation11 + $0x48] sm:$0xff]
          %v3472 = vld [vmem:[#allocation11 + $0x50] sm:$0xff]
          %v3473 = vld [vmem:[#allocation11 + $0x58] sm:$0xff]
          %v3474 = vld [vmem:[#allocation11 + $0x60] sm:$0xff]
          %v3475 = vld [vmem:[#allocation11 + $0x68] sm:$0xff]
          %v3476 = vld [vmem:[#allocation11 + $0x70] sm:$0xff]
          %v3477 = vld [vmem:[#allocation11 + $0x78] sm:$0xff]
          %v3478 = vld [vmem:[#allocation11 + $0x80] sm:$0xff]
          %v3479 = vld [vmem:[#allocation11 + $0x88] sm:$0xff]
          %v3480 = vld [vmem:[#allocation11 + $0x90] sm:$0xff]
          %v3481 = vld [vmem:[#allocation11 + $0x98] sm:$0xff]
          %v3482 = vld [vmem:[#allocation11 + $0xa0] sm:$0xff]
          %v3483 = vld [vmem:[#allocation11 + $0xa8] sm:$0xff]
          %v3484 = vld [vmem:[#allocation11 + $0xb0] sm:$0xff]
          %v3485 = vld [vmem:[#allocation11 + $0xb8] sm:$0xff]
          %v3486 = vld [vmem:[#allocation11 + $0xc0] sm:$0xff]
          %v3487 = vld [vmem:[#allocation11 + $0xc8] sm:$0xff]
          %v3488 = vld [vmem:[#allocation11 + $0xd0] sm:$0xff]
          %v3489 = vld [vmem:[#allocation11 + $0xd8] sm:$0xff]
          %v3490 = vld [vmem:[#allocation11 + $0xe0] sm:$0xff]
          %v3491 = vld [vmem:[#allocation11 + $0xe8] sm:$0xff]
          %v3492 = vld [vmem:[#allocation11 + $0xf0] sm:$0xff]
          %v3493 = vld [vmem:[#allocation11 + $0xf8] sm:$0xff]
          %v3494 = vld [vmem:[#allocation11 + $0x100] sm:$0xff]
          %v3495 = vld [vmem:[#allocation11 + $0x108] sm:$0xff]
          %v3496 = vld [vmem:[#allocation11 + $0x110] sm:$0xff]
          %v3497 = vld [vmem:[#allocation11 + $0x118] sm:$0xff]
          %v3498 = vld [vmem:[#allocation11 + $0x120] sm:$0xff]
          %v3499 = vld [vmem:[#allocation11 + $0x128] sm:$0xff]
          %v3500 = vld [vmem:[#allocation11 + $0x130] sm:$0xff]
          %v3501 = vld [vmem:[#allocation11 + $0x138] sm:$0xff]
          %v3502 = vld [vmem:[#allocation11 + $0x140] sm:$0xff]
          %v3503 = vld [vmem:[#allocation11 + $0x148] sm:$0xff]
          %v3504 = vld [vmem:[#allocation11 + $0x150] sm:$0xff]
          %v3505 = vld [vmem:[#allocation11 + $0x158] sm:$0xff]
          %v3506 = vld [vmem:[#allocation11 + $0x160] sm:$0xff]
          %v3507 = vld [vmem:[#allocation11 + $0x168] sm:$0xff]
          %v3508 = vld [vmem:[#allocation11 + $0x170] sm:$0xff]
          %v3509 = vld [vmem:[#allocation11 + $0x178] sm:$0xff]
          %v3510 = vld [vmem:[#allocation11 + $0x180] sm:$0xff]
          %v3511 = vld [vmem:[#allocation11 + $0x188] sm:$0xff]
          %v3512 = vld [vmem:[#allocation11 + $0x190] sm:$0xff]
          %v3513 = vld [vmem:[#allocation11 + $0x198] sm:$0xff]
          %v3514 = vld [vmem:[#allocation11 + $0x1a0] sm:$0xff]
          %v3515 = vld [vmem:[#allocation11 + $0x1a8] sm:$0xff]
          %v3516 = vld [vmem:[#allocation11 + $0x1b0] sm:$0xff]
          %v3517 = vld [vmem:[#allocation11 + $0x1b8] sm:$0xff]
          %v3518 = vld [vmem:[#allocation11 + $0x1c0] sm:$0xff]
          %v3519 = vld [vmem:[#allocation11 + $0x1c8] sm:$0xff]
          %v3520 = vld [vmem:[#allocation11 + $0x1d0] sm:$0xff]
          %v3521 = vld [vmem:[#allocation11 + $0x1d8] sm:$0xff]
          %v3522 = vld [vmem:[#allocation11 + $0x1e0] sm:$0xff]
          %v3523 = vld [vmem:[#allocation11 + $0x1e8] sm:$0xff]
          %v3524 = vld [vmem:[#allocation11 + $0x1f0] sm:$0xff]
          %v3525 = vld [vmem:[#allocation11 + $0x1f8] sm:$0xff]
          %v3526 = vld [vmem:[#allocation11 + $0x200] sm:$0xff]
          %v3527 = vld [vmem:[#allocation11 + $0x208] sm:$0xff]
          %v3528 = vld [vmem:[#allocation11 + $0x210] sm:$0xff]
          %v3529 = vld [vmem:[#allocation11 + $0x218] sm:$0xff]
          %v3530 = vld [vmem:[#allocation11 + $0x220] sm:$0xff]
          %v3531 = vld [vmem:[#allocation11 + $0x228] sm:$0xff]
          %v3532 = vld [vmem:[#allocation11 + $0x230] sm:$0xff]
          %v3533 = vld [vmem:[#allocation11 + $0x238] sm:$0xff]
          %v3534 = vld [vmem:[#allocation11 + $0x240] sm:$0xff]
          %v3535 = vld [vmem:[#allocation11 + $0x248] sm:$0xff]
          %v3536 = vld [vmem:[#allocation11 + $0x250] sm:$0xff]
          %v3537 = vld [vmem:[#allocation11 + $0x258] sm:$0xff]
          %v3538 = vld [vmem:[#allocation11 + $0x260] sm:$0xff]
          %v3539 = vld [vmem:[#allocation11 + $0x268] sm:$0xff]
          %v3540 = vld [vmem:[#allocation11 + $0x270] sm:$0xff]
          %v3541 = vld [vmem:[#allocation11 + $0x278] sm:$0xff]
          %v3542 = vld [vmem:[#allocation11 + $0x280] sm:$0xff]
          %v3543 = vld [vmem:[#allocation11 + $0x288] sm:$0xff]
          %v3544 = vld [vmem:[#allocation11 + $0x290] sm:$0xff]
          %v3545 = vld [vmem:[#allocation11 + $0x298] sm:$0xff]
          %v3546 = vld [vmem:[#allocation11 + $0x2a0] sm:$0xff]
          %v3547 = vld [vmem:[#allocation11 + $0x2a8] sm:$0xff]
          %v3548 = vld [vmem:[#allocation11 + $0x2b0] sm:$0xff]
          %v3549 = vld [vmem:[#allocation11 + $0x2b8] sm:$0xff]
          %v3550 = vld [vmem:[#allocation11 + $0x2c0] sm:$0xff]
          %v3551 = vld [vmem:[#allocation11 + $0x2c8] sm:$0xff]
          %v3552 = vld [vmem:[#allocation11 + $0x2d0] sm:$0xff]
          %v3553 = vld [vmem:[#allocation11 + $0x2d8] sm:$0xff]
          %v3554 = vld [vmem:[#allocation11 + $0x2e0] sm:$0xff]
          %v3555 = vld [vmem:[#allocation11 + $0x2e8] sm:$0xff]
          %v3556 = vld [vmem:[#allocation11 + $0x2f0] sm:$0xff]
          %v3557 = vld [vmem:[#allocation11 + $0x2f8] sm:$0xff]
          %v3558 = vld [vmem:[#allocation11 + $0x300] sm:$0xff]
          %v3559 = vld [vmem:[#allocation11 + $0x308] sm:$0xff]
          %v3560 = vld [vmem:[#allocation11 + $0x310] sm:$0xff]
          %v3561 = vld [vmem:[#allocation11 + $0x318] sm:$0xff]
          %v3562 = vld [vmem:[#allocation11 + $0x320] sm:$0xff]
          %v3563 = vld [vmem:[#allocation11 + $0x328] sm:$0xff]
          %v3564 = vld [vmem:[#allocation11 + $0x330] sm:$0xff]
          %v3565 = vld [vmem:[#allocation11 + $0x338] sm:$0xff]
          %v3566 = vld [vmem:[#allocation11 + $0x340] sm:$0xff]
          %v3567 = vld [vmem:[#allocation11 + $0x348] sm:$0xff]
          %v3568 = vld [vmem:[#allocation11 + $0x350] sm:$0xff]
          %v3569 = vld [vmem:[#allocation11 + $0x358] sm:$0xff]
          %v3570 = vld [vmem:[#allocation11 + $0x360] sm:$0xff]
          %v3571 = vld [vmem:[#allocation11 + $0x368] sm:$0xff]
          %v3572 = vld [vmem:[#allocation11 + $0x370] sm:$0xff]
          %v3573 = vld [vmem:[#allocation11 + $0x378] sm:$0xff]
          %v3574 = vld [vmem:[#allocation11 + $0x380] sm:$0xff]
          %v3575 = vld [vmem:[#allocation11 + $0x388] sm:$0xff]
          %v3576 = vld [vmem:[#allocation11 + $0x390] sm:$0xff]
          %v3577 = vld [vmem:[#allocation11 + $0x398] sm:$0xff]
          %v3578 = vld [vmem:[#allocation11 + $0x3a0] sm:$0xff]
          %v3579 = vld [vmem:[#allocation11 + $0x3a8] sm:$0xff]
          %v3580 = vld [vmem:[#allocation11 + $0x3b0] sm:$0xff]
          %v3581 = vld [vmem:[#allocation11 + $0x3b8] sm:$0xff]
          %v3582 = vld [vmem:[#allocation11 + $0x3c0] sm:$0xff]
          %v3583 = vld [vmem:[#allocation11 + $0x3c8] sm:$0xff]
          %v3584 = vld [vmem:[#allocation11 + $0x3d0] sm:$0xff]
          %v3585 = vld [vmem:[#allocation11 + $0x3d8] sm:$0xff]
          %v3586 = vld [vmem:[#allocation11 + $0x3e0] sm:$0xff]
          %v3587 = vld [vmem:[#allocation11 + $0x3e8] sm:$0xff]
          %v3588 = vld [vmem:[#allocation11 + $0x3f0] sm:$0xff]
          %v3589 = vld [vmem:[#allocation11 + $0x3f8] sm:$0xff]
          %v3590 = vld [vmem:[#allocation13] sm:$0xf]
          %v3592 = vlaneseq
          %v3593 = vshrl.u32 %v3592, 7
          %v3594 = vsub.s32 0, %v3593
          %v3595 = vrot.slane %v3590, %v3594
          %v3596 = vlaneseq
          %v3597 = vshrl.u32 %v3596, 7
          %v3598 = vsub.s32 1, %v3597
          %v3599 = vrot.slane %v3590, %v3598
          %v3600 = vlaneseq
          %v3601 = vshrl.u32 %v3600, 7
          %v3602 = vsub.s32 2, %v3601
          %v3603 = vrot.slane %v3590, %v3602
          %v3604 = vlaneseq
          %v3605 = vshrl.u32 %v3604, 7
          %v3606 = vsub.s32 3, %v3605
          %v3607 = vrot.slane %v3590, %v3606
          %v3740 = vunpack.c.l.b16 %v3462
          %v3741 = vunpack.c.h.b16 %v3462
          %v3742 = vunpack.c.l.b16 %v3463
          %v3743 = vunpack.c.h.b16 %v3463
          %v3744 = vunpack.c.l.b16 %v3464
          %v3745 = vunpack.c.h.b16 %v3464
          %v3746 = vunpack.c.l.b16 %v3465
          %v3747 = vunpack.c.h.b16 %v3465
          %v3748 = vunpack.c.l.b16 %v3466
          %v3749 = vunpack.c.h.b16 %v3466
          %v3750 = vunpack.c.l.b16 %v3467
          %v3751 = vunpack.c.h.b16 %v3467
          %v3752 = vunpack.c.l.b16 %v3468
          %v3753 = vunpack.c.h.b16 %v3468
          %v3754 = vunpack.c.l.b16 %v3469
          %v3755 = vunpack.c.h.b16 %v3469
          %v3756 = vunpack.c.l.b16 %v3470
          %v3757 = vunpack.c.h.b16 %v3470
          %v3758 = vunpack.c.l.b16 %v3471
          %v3759 = vunpack.c.h.b16 %v3471
          %v3760 = vunpack.c.l.b16 %v3472
          %v3761 = vunpack.c.h.b16 %v3472
          %v3762 = vunpack.c.l.b16 %v3473
          %v3763 = vunpack.c.h.b16 %v3473
          %v3764 = vunpack.c.l.b16 %v3474
          %v3765 = vunpack.c.h.b16 %v3474
          %v3766 = vunpack.c.l.b16 %v3475
          %v3767 = vunpack.c.h.b16 %v3475
          %v3768 = vunpack.c.l.b16 %v3476
          %v3769 = vunpack.c.h.b16 %v3476
          %v3770 = vunpack.c.l.b16 %v3477
          %v3771 = vunpack.c.h.b16 %v3477
          %v3772 = vunpack.c.l.b16 %v3478
          %v3773 = vunpack.c.h.b16 %v3478
          %v3774 = vunpack.c.l.b16 %v3479
          %v3775 = vunpack.c.h.b16 %v3479
          %v3776 = vunpack.c.l.b16 %v3480
          %v3777 = vunpack.c.h.b16 %v3480
          %v3778 = vunpack.c.l.b16 %v3481
          %v3779 = vunpack.c.h.b16 %v3481
          %v3780 = vunpack.c.l.b16 %v3482
          %v3781 = vunpack.c.h.b16 %v3482
          %v3782 = vunpack.c.l.b16 %v3483
          %v3783 = vunpack.c.h.b16 %v3483
          %v3784 = vunpack.c.l.b16 %v3484
          %v3785 = vunpack.c.h.b16 %v3484
          %v3786 = vunpack.c.l.b16 %v3485
          %v3787 = vunpack.c.h.b16 %v3485
          %v3788 = vunpack.c.l.b16 %v3486
          %v3789 = vunpack.c.h.b16 %v3486
          %v3790 = vunpack.c.l.b16 %v3487
          %v3791 = vunpack.c.h.b16 %v3487
          %v3792 = vunpack.c.l.b16 %v3488
          %v3793 = vunpack.c.h.b16 %v3488
          %v3794 = vunpack.c.l.b16 %v3489
          %v3795 = vunpack.c.h.b16 %v3489
          %v3796 = vunpack.c.l.b16 %v3490
          %v3797 = vunpack.c.h.b16 %v3490
          %v3798 = vunpack.c.l.b16 %v3491
          %v3799 = vunpack.c.h.b16 %v3491
          %v3800 = vunpack.c.l.b16 %v3492
          %v3801 = vunpack.c.h.b16 %v3492
          %v3802 = vunpack.c.l.b16 %v3493
          %v3803 = vunpack.c.h.b16 %v3493
          %v3804 = vunpack.c.l.b16 %v3494
          %v3805 = vunpack.c.h.b16 %v3494
          %v3806 = vunpack.c.l.b16 %v3495
          %v3807 = vunpack.c.h.b16 %v3495
          %v3808 = vunpack.c.l.b16 %v3496
          %v3809 = vunpack.c.h.b16 %v3496
          %v3810 = vunpack.c.l.b16 %v3497
          %v3811 = vunpack.c.h.b16 %v3497
          %v3812 = vunpack.c.l.b16 %v3498
          %v3813 = vunpack.c.h.b16 %v3498
          %v3814 = vunpack.c.l.b16 %v3499
          %v3815 = vunpack.c.h.b16 %v3499
          %v3816 = vunpack.c.l.b16 %v3500
          %v3817 = vunpack.c.h.b16 %v3500
          %v3818 = vunpack.c.l.b16 %v3501
          %v3819 = vunpack.c.h.b16 %v3501
          %v3820 = vunpack.c.l.b16 %v3502
          %v3821 = vunpack.c.h.b16 %v3502
          %v3822 = vunpack.c.l.b16 %v3503
          %v3823 = vunpack.c.h.b16 %v3503
          %v3824 = vunpack.c.l.b16 %v3504
          %v3825 = vunpack.c.h.b16 %v3504
          %v3826 = vunpack.c.l.b16 %v3505
          %v3827 = vunpack.c.h.b16 %v3505
          %v3828 = vunpack.c.l.b16 %v3506
          %v3829 = vunpack.c.h.b16 %v3506
          %v3830 = vunpack.c.l.b16 %v3507
          %v3831 = vunpack.c.h.b16 %v3507
          %v3832 = vunpack.c.l.b16 %v3508
          %v3833 = vunpack.c.h.b16 %v3508
          %v3834 = vunpack.c.l.b16 %v3509
          %v3835 = vunpack.c.h.b16 %v3509
          %v3836 = vunpack.c.l.b16 %v3510
          %v3837 = vunpack.c.h.b16 %v3510
          %v3838 = vunpack.c.l.b16 %v3511
          %v3839 = vunpack.c.h.b16 %v3511
          %v3840 = vunpack.c.l.b16 %v3512
          %v3841 = vunpack.c.h.b16 %v3512
          %v3842 = vunpack.c.l.b16 %v3513
          %v3843 = vunpack.c.h.b16 %v3513
          %v3844 = vunpack.c.l.b16 %v3514
          %v3845 = vunpack.c.h.b16 %v3514
          %v3846 = vunpack.c.l.b16 %v3515
          %v3847 = vunpack.c.h.b16 %v3515
          %v3848 = vunpack.c.l.b16 %v3516
          %v3849 = vunpack.c.h.b16 %v3516
          %v3850 = vunpack.c.l.b16 %v3517
          %v3851 = vunpack.c.h.b16 %v3517
          %v3852 = vunpack.c.l.b16 %v3518
          %v3853 = vunpack.c.h.b16 %v3518
          %v3854 = vunpack.c.l.b16 %v3519
          %v3855 = vunpack.c.h.b16 %v3519
          %v3856 = vunpack.c.l.b16 %v3520
          %v3857 = vunpack.c.h.b16 %v3520
          %v3858 = vunpack.c.l.b16 %v3521
          %v3859 = vunpack.c.h.b16 %v3521
          %v3860 = vunpack.c.l.b16 %v3522
          %v3861 = vunpack.c.h.b16 %v3522
          %v3862 = vunpack.c.l.b16 %v3523
          %v3863 = vunpack.c.h.b16 %v3523
          %v3864 = vunpack.c.l.b16 %v3524
          %v3865 = vunpack.c.h.b16 %v3524
          %v3866 = vunpack.c.l.b16 %v3525
          %v3867 = vunpack.c.h.b16 %v3525
          %v3868 = vunpack.c.l.b16 %v3526
          %v3869 = vunpack.c.h.b16 %v3526
          %v3870 = vunpack.c.l.b16 %v3527
          %v3871 = vunpack.c.h.b16 %v3527
          %v3872 = vunpack.c.l.b16 %v3528
          %v3873 = vunpack.c.h.b16 %v3528
          %v3874 = vunpack.c.l.b16 %v3529
          %v3875 = vunpack.c.h.b16 %v3529
          %v3876 = vunpack.c.l.b16 %v3530
          %v3877 = vunpack.c.h.b16 %v3530
          %v3878 = vunpack.c.l.b16 %v3531
          %v3879 = vunpack.c.h.b16 %v3531
          %v3880 = vunpack.c.l.b16 %v3532
          %v3881 = vunpack.c.h.b16 %v3532
          %v3882 = vunpack.c.l.b16 %v3533
          %v3883 = vunpack.c.h.b16 %v3533
          %v3884 = vunpack.c.l.b16 %v3534
          %v3885 = vunpack.c.h.b16 %v3534
          %v3886 = vunpack.c.l.b16 %v3535
          %v3887 = vunpack.c.h.b16 %v3535
          %v3888 = vunpack.c.l.b16 %v3536
          %v3889 = vunpack.c.h.b16 %v3536
          %v3890 = vunpack.c.l.b16 %v3537
          %v3891 = vunpack.c.h.b16 %v3537
          %v3892 = vunpack.c.l.b16 %v3538
          %v3893 = vunpack.c.h.b16 %v3538
          %v3894 = vunpack.c.l.b16 %v3539
          %v3895 = vunpack.c.h.b16 %v3539
          %v3896 = vunpack.c.l.b16 %v3540
          %v3897 = vunpack.c.h.b16 %v3540
          %v3898 = vunpack.c.l.b16 %v3541
          %v3899 = vunpack.c.h.b16 %v3541
          %v3900 = vunpack.c.l.b16 %v3542
          %v3901 = vunpack.c.h.b16 %v3542
          %v3902 = vunpack.c.l.b16 %v3543
          %v3903 = vunpack.c.h.b16 %v3543
          %v3904 = vunpack.c.l.b16 %v3544
          %v3905 = vunpack.c.h.b16 %v3544
          %v3906 = vunpack.c.l.b16 %v3545
          %v3907 = vunpack.c.h.b16 %v3545
          %v3908 = vunpack.c.l.b16 %v3546
          %v3909 = vunpack.c.h.b16 %v3546
          %v3910 = vunpack.c.l.b16 %v3547
          %v3911 = vunpack.c.h.b16 %v3547
          %v3912 = vunpack.c.l.b16 %v3548
          %v3913 = vunpack.c.h.b16 %v3548
          %v3914 = vunpack.c.l.b16 %v3549
          %v3915 = vunpack.c.h.b16 %v3549
          %v3916 = vunpack.c.l.b16 %v3550
          %v3917 = vunpack.c.h.b16 %v3550
          %v3918 = vunpack.c.l.b16 %v3551
          %v3919 = vunpack.c.h.b16 %v3551
          %v3920 = vunpack.c.l.b16 %v3552
          %v3921 = vunpack.c.h.b16 %v3552
          %v3922 = vunpack.c.l.b16 %v3553
          %v3923 = vunpack.c.h.b16 %v3553
          %v3924 = vunpack.c.l.b16 %v3554
          %v3925 = vunpack.c.h.b16 %v3554
          %v3926 = vunpack.c.l.b16 %v3555
          %v3927 = vunpack.c.h.b16 %v3555
          %v3928 = vunpack.c.l.b16 %v3556
          %v3929 = vunpack.c.h.b16 %v3556
          %v3930 = vunpack.c.l.b16 %v3557
          %v3931 = vunpack.c.h.b16 %v3557
          %v3932 = vunpack.c.l.b16 %v3558
          %v3933 = vunpack.c.h.b16 %v3558
          %v3934 = vunpack.c.l.b16 %v3559
          %v3935 = vunpack.c.h.b16 %v3559
          %v3936 = vunpack.c.l.b16 %v3560
          %v3937 = vunpack.c.h.b16 %v3560
          %v3938 = vunpack.c.l.b16 %v3561
          %v3939 = vunpack.c.h.b16 %v3561
          %v3940 = vunpack.c.l.b16 %v3562
          %v3941 = vunpack.c.h.b16 %v3562
          %v3942 = vunpack.c.l.b16 %v3563
          %v3943 = vunpack.c.h.b16 %v3563
          %v3944 = vunpack.c.l.b16 %v3564
          %v3945 = vunpack.c.h.b16 %v3564
          %v3946 = vunpack.c.l.b16 %v3565
          %v3947 = vunpack.c.h.b16 %v3565
          %v3948 = vunpack.c.l.b16 %v3566
          %v3949 = vunpack.c.h.b16 %v3566
          %v3950 = vunpack.c.l.b16 %v3567
          %v3951 = vunpack.c.h.b16 %v3567
          %v3952 = vunpack.c.l.b16 %v3568
          %v3953 = vunpack.c.h.b16 %v3568
          %v3954 = vunpack.c.l.b16 %v3569
          %v3955 = vunpack.c.h.b16 %v3569
          %v3956 = vunpack.c.l.b16 %v3570
          %v3957 = vunpack.c.h.b16 %v3570
          %v3958 = vunpack.c.l.b16 %v3571
          %v3959 = vunpack.c.h.b16 %v3571
          %v3960 = vunpack.c.l.b16 %v3572
          %v3961 = vunpack.c.h.b16 %v3572
          %v3962 = vunpack.c.l.b16 %v3573
          %v3963 = vunpack.c.h.b16 %v3573
          %v3964 = vunpack.c.l.b16 %v3574
          %v3965 = vunpack.c.h.b16 %v3574
          %v3966 = vunpack.c.l.b16 %v3575
          %v3967 = vunpack.c.h.b16 %v3575
          %v3968 = vunpack.c.l.b16 %v3576
          %v3969 = vunpack.c.h.b16 %v3576
          %v3970 = vunpack.c.l.b16 %v3577
          %v3971 = vunpack.c.h.b16 %v3577
          %v3972 = vunpack.c.l.b16 %v3578
          %v3973 = vunpack.c.h.b16 %v3578
          %v3974 = vunpack.c.l.b16 %v3579
          %v3975 = vunpack.c.h.b16 %v3579
          %v3976 = vunpack.c.l.b16 %v3580
          %v3977 = vunpack.c.h.b16 %v3580
          %v3978 = vunpack.c.l.b16 %v3581
          %v3979 = vunpack.c.h.b16 %v3581
          %v3980 = vunpack.c.l.b16 %v3582
          %v3981 = vunpack.c.h.b16 %v3582
          %v3982 = vunpack.c.l.b16 %v3583
          %v3983 = vunpack.c.h.b16 %v3583
          %v3984 = vunpack.c.l.b16 %v3584
          %v3985 = vunpack.c.h.b16 %v3584
          %v3986 = vunpack.c.l.b16 %v3585
          %v3987 = vunpack.c.h.b16 %v3585
          %v3988 = vunpack.c.l.b16 %v3586
          %v3989 = vunpack.c.h.b16 %v3586
          %v3990 = vunpack.c.l.b16 %v3587
          %v3991 = vunpack.c.h.b16 %v3587
          %v3992 = vunpack.c.l.b16 %v3588
          %v3993 = vunpack.c.h.b16 %v3588
          %v3994 = vunpack.c.l.b16 %v3589
          %v3995 = vunpack.c.h.b16 %v3589
          %v3996 = vpack.c.b16 %v3744, %v3740
          %v3997 = vpack.c.b16 %v3745, %v3741
          %v3998 = vpack.c.b16 %v3746, %v3742
          %v3999 = vpack.c.b16 %v3747, %v3743
          %v4000 = vpack.c.b16 %v3752, %v3748
          %v4001 = vpack.c.b16 %v3753, %v3749
          %v4002 = vpack.c.b16 %v3754, %v3750
          %v4003 = vpack.c.b16 %v3755, %v3751
          %v4004 = vpack.c.b16 %v3760, %v3756
          %v4005 = vpack.c.b16 %v3761, %v3757
          %v4006 = vpack.c.b16 %v3762, %v3758
          %v4007 = vpack.c.b16 %v3763, %v3759
          %v4008 = vpack.c.b16 %v3768, %v3764
          %v4009 = vpack.c.b16 %v3769, %v3765
          %v4010 = vpack.c.b16 %v3770, %v3766
          %v4011 = vpack.c.b16 %v3771, %v3767
          %v4012 = vpack.c.b16 %v3776, %v3772
          %v4013 = vpack.c.b16 %v3777, %v3773
          %v4014 = vpack.c.b16 %v3778, %v3774
          %v4015 = vpack.c.b16 %v3779, %v3775
          %v4016 = vpack.c.b16 %v3784, %v3780
          %v4017 = vpack.c.b16 %v3785, %v3781
          %v4018 = vpack.c.b16 %v3786, %v3782
          %v4019 = vpack.c.b16 %v3787, %v3783
          %v4020 = vpack.c.b16 %v3792, %v3788
          %v4021 = vpack.c.b16 %v3793, %v3789
          %v4022 = vpack.c.b16 %v3794, %v3790
          %v4023 = vpack.c.b16 %v3795, %v3791
          %v4024 = vpack.c.b16 %v3800, %v3796
          %v4025 = vpack.c.b16 %v3801, %v3797
          %v4026 = vpack.c.b16 %v3802, %v3798
          %v4027 = vpack.c.b16 %v3803, %v3799
          %v4028 = vpack.c.b16 %v3808, %v3804
          %v4029 = vpack.c.b16 %v3809, %v3805
          %v4030 = vpack.c.b16 %v3810, %v3806
          %v4031 = vpack.c.b16 %v3811, %v3807
          %v4032 = vpack.c.b16 %v3816, %v3812
          %v4033 = vpack.c.b16 %v3817, %v3813
          %v4034 = vpack.c.b16 %v3818, %v3814
          %v4035 = vpack.c.b16 %v3819, %v3815
          %v4036 = vpack.c.b16 %v3824, %v3820
          %v4037 = vpack.c.b16 %v3825, %v3821
          %v4038 = vpack.c.b16 %v3826, %v3822
          %v4039 = vpack.c.b16 %v3827, %v3823
          %v4040 = vpack.c.b16 %v3832, %v3828
          %v4041 = vpack.c.b16 %v3833, %v3829
          %v4042 = vpack.c.b16 %v3834, %v3830
          %v4043 = vpack.c.b16 %v3835, %v3831
          %v4044 = vpack.c.b16 %v3840, %v3836
          %v4045 = vpack.c.b16 %v3841, %v3837
          %v4046 = vpack.c.b16 %v3842, %v3838
          %v4047 = vpack.c.b16 %v3843, %v3839
          %v4048 = vpack.c.b16 %v3848, %v3844
          %v4049 = vpack.c.b16 %v3849, %v3845
          %v4050 = vpack.c.b16 %v3850, %v3846
          %v4051 = vpack.c.b16 %v3851, %v3847
          %v4052 = vpack.c.b16 %v3856, %v3852
          %v4053 = vpack.c.b16 %v3857, %v3853
          %v4054 = vpack.c.b16 %v3858, %v3854
          %v4055 = vpack.c.b16 %v3859, %v3855
          %v4056 = vpack.c.b16 %v3864, %v3860
          %v4057 = vpack.c.b16 %v3865, %v3861
          %v4058 = vpack.c.b16 %v3866, %v3862
          %v4059 = vpack.c.b16 %v3867, %v3863
          %v4060 = vpack.c.b16 %v3872, %v3868
          %v4061 = vpack.c.b16 %v3873, %v3869
          %v4062 = vpack.c.b16 %v3874, %v3870
          %v4063 = vpack.c.b16 %v3875, %v3871
          %v4064 = vpack.c.b16 %v3880, %v3876
          %v4065 = vpack.c.b16 %v3881, %v3877
          %v4066 = vpack.c.b16 %v3882, %v3878
          %v4067 = vpack.c.b16 %v3883, %v3879
          %v4068 = vpack.c.b16 %v3888, %v3884
          %v4069 = vpack.c.b16 %v3889, %v3885
          %v4070 = vpack.c.b16 %v3890, %v3886
          %v4071 = vpack.c.b16 %v3891, %v3887
          %v4072 = vpack.c.b16 %v3896, %v3892
          %v4073 = vpack.c.b16 %v3897, %v3893
          %v4074 = vpack.c.b16 %v3898, %v3894
          %v4075 = vpack.c.b16 %v3899, %v3895
          %v4076 = vpack.c.b16 %v3904, %v3900
          %v4077 = vpack.c.b16 %v3905, %v3901
          %v4078 = vpack.c.b16 %v3906, %v3902
          %v4079 = vpack.c.b16 %v3907, %v3903
          %v4080 = vpack.c.b16 %v3912, %v3908
          %v4081 = vpack.c.b16 %v3913, %v3909
          %v4082 = vpack.c.b16 %v3914, %v3910
          %v4083 = vpack.c.b16 %v3915, %v3911
          %v4084 = vpack.c.b16 %v3920, %v3916
          %v4085 = vpack.c.b16 %v3921, %v3917
          %v4086 = vpack.c.b16 %v3922, %v3918
          %v4087 = vpack.c.b16 %v3923, %v3919
          %v4088 = vpack.c.b16 %v3928, %v3924
          %v4089 = vpack.c.b16 %v3929, %v3925
          %v4090 = vpack.c.b16 %v3930, %v3926
          %v4091 = vpack.c.b16 %v3931, %v3927
          %v4092 = vpack.c.b16 %v3936, %v3932
          %v4093 = vpack.c.b16 %v3937, %v3933
          %v4094 = vpack.c.b16 %v3938, %v3934
          %v4095 = vpack.c.b16 %v3939, %v3935
          %v4096 = vpack.c.b16 %v3944, %v3940
          %v4097 = vpack.c.b16 %v3945, %v3941
          %v4098 = vpack.c.b16 %v3946, %v3942
          %v4099 = vpack.c.b16 %v3947, %v3943
          %v4100 = vpack.c.b16 %v3952, %v3948
          %v4101 = vpack.c.b16 %v3953, %v3949
          %v4102 = vpack.c.b16 %v3954, %v3950
          %v4103 = vpack.c.b16 %v3955, %v3951
          %v4104 = vpack.c.b16 %v3960, %v3956
          %v4105 = vpack.c.b16 %v3961, %v3957
          %v4106 = vpack.c.b16 %v3962, %v3958
          %v4107 = vpack.c.b16 %v3963, %v3959
          %v4108 = vpack.c.b16 %v3968, %v3964
          %v4109 = vpack.c.b16 %v3969, %v3965
          %v4110 = vpack.c.b16 %v3970, %v3966
          %v4111 = vpack.c.b16 %v3971, %v3967
          %v4112 = vpack.c.b16 %v3976, %v3972
          %v4113 = vpack.c.b16 %v3977, %v3973
          %v4114 = vpack.c.b16 %v3978, %v3974
          %v4115 = vpack.c.b16 %v3979, %v3975
          %v4116 = vpack.c.b16 %v3984, %v3980
          %v4117 = vpack.c.b16 %v3985, %v3981
          %v4118 = vpack.c.b16 %v3986, %v3982
          %v4119 = vpack.c.b16 %v3987, %v3983
          %v4120 = vpack.c.b16 %v3992, %v3988
          %v4121 = vpack.c.b16 %v3993, %v3989
          %v4122 = vpack.c.b16 %v3994, %v3990
          %v4123 = vpack.c.b16 %v3995, %v3991
          %4252 = vmatprep.subr.bf16.mxu0 %v4025
          %4253 = vmatpush1.bf16.msra.mxu0 %v4024
          %4254 = vmatprep.subr.bf16.mxu0 %v4021
          %4255 = vmatpush1.bf16.msra.mxu0 %v4020
          %4256 = vmatprep.subr.bf16.mxu0 %v4017
          %4257 = vmatpush1.bf16.msra.mxu0 %v4016
          %4258 = vmatprep.subr.bf16.mxu0 %v4013
          %4259 = vmatpush1.bf16.msra.mxu0 %v4012
          %4260 = vmatprep.subr.bf16.mxu0 %v4009
          %4261 = vmatpush1.bf16.msra.mxu0 %v4008
          %4262 = vmatprep.subr.bf16.mxu0 %v4005
          %4263 = vmatpush1.bf16.msra.mxu0 %v4004
          %4264 = vmatprep.subr.bf16.mxu0 %v4001
          %4265 = vmatpush1.bf16.msra.mxu0 %v4000
          %4266 = vmatprep.subr.bf16.mxu0 %v3997
          %4267 = vmatpush1.bf16.msra.mxu0 %v3996
          %4268 = vmatprep.subr.bf16.mxu0 %v4057
          %4269 = vmatpush2.bf16.msra.mxu0 %v4056
          %4270 = vmatprep.subr.bf16.mxu0 %v4053
          %4271 = vmatpush2.bf16.msra.mxu0 %v4052
          %4272 = vmatprep.subr.bf16.mxu0 %v4049
          %4273 = vmatpush2.bf16.msra.mxu0 %v4048
          %4274 = vmatprep.subr.bf16.mxu0 %v4045
          %4275 = vmatpush2.bf16.msra.mxu0 %v4044
          %4276 = vmatprep.subr.bf16.mxu0 %v4041
          %4277 = vmatpush2.bf16.msra.mxu0 %v4040
          %4278 = vmatprep.subr.bf16.mxu0 %v4037
          %4279 = vmatpush2.bf16.msra.mxu0 %v4036
          %4280 = vmatprep.subr.bf16.mxu0 %v4033
          %4281 = vmatpush2.bf16.msra.mxu0 %v4032
          %4282 = vmatprep.subr.bf16.mxu0 %v4029
          %4283 = vmatpush2.bf16.msra.mxu0 %v4028
          %4284 = vmatprep.mubr.bf16.mxu0 %v3459
          %4285 = vmatmul.mubr.bf16.gmra.mxu0 %v3458
          %v4286 = vpop.f32.mrf.mxu0
          %v4287 = vadd.f32 %v3595, %v4286
          %v4288 = vpop.f32.mrf.mxu0
          %v4289 = vadd.f32 %v3599, %v4288
          %v4290 = vpop.f32.mrf.mxu0
          %v4291 = vpop.f32.mrf.mxu0
          %4292 = vdwg.mxu0
          %4293 = vmatprep.subr.bf16.mxu0 %v4089
          %4294 = vmatpush1.bf16.msra.mxu0 %v4088
          %4295 = vmatprep.subr.bf16.mxu0 %v4085
          %4296 = vmatpush1.bf16.msra.mxu0 %v4084
          %4297 = vmatprep.subr.bf16.mxu0 %v4081
          %4298 = vmatpush1.bf16.msra.mxu0 %v4080
          %4299 = vmatprep.subr.bf16.mxu0 %v4077
          %4300 = vmatpush1.bf16.msra.mxu0 %v4076
          %4301 = vmatprep.subr.bf16.mxu0 %v4073
          %4302 = vmatpush1.bf16.msra.mxu0 %v4072
          %4303 = vmatprep.subr.bf16.mxu0 %v4069
          %4304 = vmatpush1.bf16.msra.mxu0 %v4068
          %4305 = vmatprep.subr.bf16.mxu0 %v4065
          %4306 = vmatpush1.bf16.msra.mxu0 %v4064
          %4307 = vmatprep.subr.bf16.mxu0 %v4061
          %4308 = vmatpush1.bf16.msra.mxu0 %v4060
          %4309 = vmatprep.subr.bf16.mxu0 %v4121
          %4310 = vmatpush2.bf16.msra.mxu0 %v4120
          %4311 = vmatprep.subr.bf16.mxu0 %v4117
          %4312 = vmatpush2.bf16.msra.mxu0 %v4116
          %4313 = vmatprep.subr.bf16.mxu0 %v4113
          %4314 = vmatpush2.bf16.msra.mxu0 %v4112
          %4315 = vmatprep.subr.bf16.mxu0 %v4109
          %4316 = vmatpush2.bf16.msra.mxu0 %v4108
          %4317 = vmatprep.subr.bf16.mxu0 %v4105
          %4318 = vmatpush2.bf16.msra.mxu0 %v4104
          %4319 = vmatprep.subr.bf16.mxu0 %v4101
          %4320 = vmatpush2.bf16.msra.mxu0 %v4100
          %4321 = vmatprep.subr.bf16.mxu0 %v4097
          %4322 = vmatpush2.bf16.msra.mxu0 %v4096
          %4323 = vmatprep.subr.bf16.mxu0 %v4093
          %4324 = vmatpush2.bf16.msra.mxu0 %v4092
          %4325 = vmatprep.mubr.bf16.mxu0 %v3461
          %4326 = vmatmul.mubr.bf16.gmra.mxu0 %v3460
          %v4327 = vpop.f32.mrf.mxu0
          %v4328 = vadd.f32 %v4287, %v4327
          %v4329 = vpop.f32.mrf.mxu0
          %v4330 = vadd.f32 %v4289, %v4329
          %v4331 = vpop.f32.mrf.mxu0
          %v4332 = vpop.f32.mrf.mxu0
          %4333 = vdwg.mxu0
          %4334 = vmatprep.subr.bf16.mxu0 %v4027
          %4335 = vmatpush1.bf16.msra.mxu0 %v4026
          %4336 = vmatprep.subr.bf16.mxu0 %v4023
          %4337 = vmatpush1.bf16.msra.mxu0 %v4022
          %4338 = vmatprep.subr.bf16.mxu0 %v4019
          %4339 = vmatpush1.bf16.msra.mxu0 %v4018
          %4340 = vmatprep.subr.bf16.mxu0 %v4015
          %4341 = vmatpush1.bf16.msra.mxu0 %v4014
          %4342 = vmatprep.subr.bf16.mxu0 %v4011
          %4343 = vmatpush1.bf16.msra.mxu0 %v4010
          %4344 = vmatprep.subr.bf16.mxu0 %v4007
          %4345 = vmatpush1.bf16.msra.mxu0 %v4006
          %4346 = vmatprep.subr.bf16.mxu0 %v4003
          %4347 = vmatpush1.bf16.msra.mxu0 %v4002
          %4348 = vmatprep.subr.bf16.mxu0 %v3999
          %4349 = vmatpush1.bf16.msra.mxu0 %v3998
          %4350 = vmatprep.subr.bf16.mxu0 %v4059
          %4351 = vmatpush2.bf16.msra.mxu0 %v4058
          %4352 = vmatprep.subr.bf16.mxu0 %v4055
          %4353 = vmatpush2.bf16.msra.mxu0 %v4054
          %4354 = vmatprep.subr.bf16.mxu0 %v4051
          %4355 = vmatpush2.bf16.msra.mxu0 %v4050
          %4356 = vmatprep.subr.bf16.mxu0 %v4047
          %4357 = vmatpush2.bf16.msra.mxu0 %v4046
          %4358 = vmatprep.subr.bf16.mxu0 %v4043
          %4359 = vmatpush2.bf16.msra.mxu0 %v4042
          %4360 = vmatprep.subr.bf16.mxu0 %v4039
          %4361 = vmatpush2.bf16.msra.mxu0 %v4038
          %4362 = vmatprep.subr.bf16.mxu0 %v4035
          %4363 = vmatpush2.bf16.msra.mxu0 %v4034
          %4364 = vmatprep.subr.bf16.mxu0 %v4031
          %4365 = vmatpush2.bf16.msra.mxu0 %v4030
          %4366 = vmatprep.mubr.bf16.mxu0 %v3459
          %4367 = vmatmul.mubr.bf16.gmra.mxu0 %v3458
          %v4368 = vpop.f32.mrf.mxu0
          %v4369 = vadd.f32 %v3603, %v4368
          %v4370 = vpop.f32.mrf.mxu0
          %v4371 = vadd.f32 %v3607, %v4370
          %v4372 = vpop.f32.mrf.mxu0
          %v4373 = vpop.f32.mrf.mxu0
          %4374 = vdwg.mxu0
          %4375 = vmatprep.subr.bf16.mxu0 %v4091
          %4376 = vmatpush1.bf16.msra.mxu0 %v4090
          %4377 = vmatprep.subr.bf16.mxu0 %v4087
          %4378 = vmatpush1.bf16.msra.mxu0 %v4086
          %4379 = vmatprep.subr.bf16.mxu0 %v4083
          %4380 = vmatpush1.bf16.msra.mxu0 %v4082
          %4381 = vmatprep.subr.bf16.mxu0 %v4079
          %4382 = vmatpush1.bf16.msra.mxu0 %v4078
          %4383 = vmatprep.subr.bf16.mxu0 %v4075
          %4384 = vmatpush1.bf16.msra.mxu0 %v4074
          %4385 = vmatprep.subr.bf16.mxu0 %v4071
          %4386 = vmatpush1.bf16.msra.mxu0 %v4070
          %4387 = vmatprep.subr.bf16.mxu0 %v4067
          %4388 = vmatpush1.bf16.msra.mxu0 %v4066
          %4389 = vmatprep.subr.bf16.mxu0 %v4063
          %4390 = vmatpush1.bf16.msra.mxu0 %v4062
          %4391 = vmatprep.subr.bf16.mxu0 %v4123
          %4392 = vmatpush2.bf16.msra.mxu0 %v4122
          %4393 = vmatprep.subr.bf16.mxu0 %v4119
          %4394 = vmatpush2.bf16.msra.mxu0 %v4118
          %4395 = vmatprep.subr.bf16.mxu0 %v4115
          %4396 = vmatpush2.bf16.msra.mxu0 %v4114
          %4397 = vmatprep.subr.bf16.mxu0 %v4111
          %4398 = vmatpush2.bf16.msra.mxu0 %v4110
          %4399 = vmatprep.subr.bf16.mxu0 %v4107
          %4400 = vmatpush2.bf16.msra.mxu0 %v4106
          %4401 = vmatprep.subr.bf16.mxu0 %v4103
          %4402 = vmatpush2.bf16.msra.mxu0 %v4102
          %4403 = vmatprep.subr.bf16.mxu0 %v4099
          %4404 = vmatpush2.bf16.msra.mxu0 %v4098
          %4405 = vmatprep.subr.bf16.mxu0 %v4095
          %4406 = vmatpush2.bf16.msra.mxu0 %v4094
          %4407 = vmatprep.mubr.bf16.mxu0 %v3461
          %4408 = vmatmul.mubr.bf16.gmra.mxu0 %v3460
          %v4409 = vpop.f32.mrf.mxu0
          %v4410 = vadd.f32 %v4369, %v4409
          %v4411 = vpop.f32.mrf.mxu0
          %v4412 = vadd.f32 %v4371, %v4411
          %v4413 = vpop.f32.mrf.mxu0
          %v4414 = vpop.f32.mrf.mxu0
          %4415 = vdwg.mxu0
          %v4416 = vmax.f32 %v4328, 0.0
          %v4417 = vmax.f32 %v4330, 0.0
          %v4418 = vmax.f32 %v4410, 0.0
          %v4419 = vmax.f32 %v4412, 0.0
          %v4420 = vpack.c.bf16 %v4416, %v4416
          %v4421 = vpack.c.bf16 %v4417, %v4417
          %v4422 = vpack.c.bf16 %v4418, %v4418
          %v4423 = vpack.c.bf16 %v4419, %v4419
          %v4424 = vld [vmem:[#allocation14] sm:$0xf]
          %v4425 = vld [vmem:[#allocation14 + $0x4] sm:$0xf]
          %v4426 = vld [vmem:[#allocation14 + $0x8] sm:$0xf]
          %v4427 = vld [vmem:[#allocation14 + $0xc] sm:$0xf]
          %v4428 = vld [vmem:[#allocation14 + $0x10] sm:$0xf]
          %v4429 = vld [vmem:[#allocation14 + $0x14] sm:$0xf]
          %v4430 = vld [vmem:[#allocation14 + $0x18] sm:$0xf]
          %v4431 = vld [vmem:[#allocation14 + $0x1c] sm:$0xf]
          %v4432 = vld [vmem:[#allocation14 + $0x20] sm:$0xf]
          %v4433 = vld [vmem:[#allocation14 + $0x24] sm:$0xf]
          %v4434 = vld [vmem:[#allocation14 + $0x28] sm:$0xf]
          %v4435 = vld [vmem:[#allocation14 + $0x2c] sm:$0xf]
          %v4436 = vld [vmem:[#allocation14 + $0x30] sm:$0xf]
          %v4437 = vld [vmem:[#allocation14 + $0x34] sm:$0xf]
          %v4438 = vld [vmem:[#allocation14 + $0x38] sm:$0xf]
          %v4439 = vld [vmem:[#allocation14 + $0x3c] sm:$0xf]
          %v4440 = vld [vmem:[#allocation14 + $0x40] sm:$0xf]
          %v4441 = vld [vmem:[#allocation14 + $0x44] sm:$0xf]
          %v4442 = vld [vmem:[#allocation14 + $0x48] sm:$0xf]
          %v4443 = vld [vmem:[#allocation14 + $0x4c] sm:$0xf]
          %v4444 = vld [vmem:[#allocation14 + $0x50] sm:$0xf]
          %v4445 = vld [vmem:[#allocation14 + $0x54] sm:$0xf]
          %v4446 = vld [vmem:[#allocation14 + $0x58] sm:$0xf]
          %v4447 = vld [vmem:[#allocation14 + $0x5c] sm:$0xf]
          %v4448 = vld [vmem:[#allocation14 + $0x60] sm:$0xf]
          %v4449 = vld [vmem:[#allocation14 + $0x64] sm:$0xf]
          %v4450 = vld [vmem:[#allocation14 + $0x68] sm:$0xf]
          %v4451 = vld [vmem:[#allocation14 + $0x6c] sm:$0xf]
          %v4452 = vld [vmem:[#allocation14 + $0x70] sm:$0xf]
          %v4453 = vld [vmem:[#allocation14 + $0x74] sm:$0xf]
          %v4454 = vld [vmem:[#allocation14 + $0x78] sm:$0xf]
          %v4455 = vld [vmem:[#allocation14 + $0x7c] sm:$0xf]
          %v4456 = vld [vmem:[#allocation14 + $0x80] sm:$0xf]
          %v4457 = vld [vmem:[#allocation14 + $0x84] sm:$0xf]
          %v4458 = vld [vmem:[#allocation14 + $0x88] sm:$0xf]
          %v4459 = vld [vmem:[#allocation14 + $0x8c] sm:$0xf]
          %v4460 = vld [vmem:[#allocation14 + $0x90] sm:$0xf]
          %v4461 = vld [vmem:[#allocation14 + $0x94] sm:$0xf]
          %v4462 = vld [vmem:[#allocation14 + $0x98] sm:$0xf]
          %v4463 = vld [vmem:[#allocation14 + $0x9c] sm:$0xf]
          %v4464 = vld [vmem:[#allocation14 + $0xa0] sm:$0xf]
          %v4465 = vld [vmem:[#allocation14 + $0xa4] sm:$0xf]
          %v4466 = vld [vmem:[#allocation14 + $0xa8] sm:$0xf]
          %v4467 = vld [vmem:[#allocation14 + $0xac] sm:$0xf]
          %v4468 = vld [vmem:[#allocation14 + $0xb0] sm:$0xf]
          %v4469 = vld [vmem:[#allocation14 + $0xb4] sm:$0xf]
          %v4470 = vld [vmem:[#allocation14 + $0xb8] sm:$0xf]
          %v4471 = vld [vmem:[#allocation14 + $0xbc] sm:$0xf]
          %v4472 = vld [vmem:[#allocation14 + $0xc0] sm:$0xf]
          %v4473 = vld [vmem:[#allocation14 + $0xc4] sm:$0xf]
          %v4474 = vld [vmem:[#allocation14 + $0xc8] sm:$0xf]
          %v4475 = vld [vmem:[#allocation14 + $0xcc] sm:$0xf]
          %v4476 = vld [vmem:[#allocation14 + $0xd0] sm:$0xf]
          %v4477 = vld [vmem:[#allocation14 + $0xd4] sm:$0xf]
          %v4478 = vld [vmem:[#allocation14 + $0xd8] sm:$0xf]
          %v4479 = vld [vmem:[#allocation14 + $0xdc] sm:$0xf]
          %v4480 = vld [vmem:[#allocation14 + $0xe0] sm:$0xf]
          %v4481 = vld [vmem:[#allocation14 + $0xe4] sm:$0xf]
          %v4482 = vld [vmem:[#allocation14 + $0xe8] sm:$0xf]
          %v4483 = vld [vmem:[#allocation14 + $0xec] sm:$0xf]
          %v4484 = vld [vmem:[#allocation14 + $0xf0] sm:$0xf]
          %v4485 = vld [vmem:[#allocation14 + $0xf4] sm:$0xf]
          %v4486 = vld [vmem:[#allocation14 + $0xf8] sm:$0xf]
          %v4487 = vld [vmem:[#allocation14 + $0xfc] sm:$0xf]
          %v4488 = vld [vmem:[#allocation16] sm:$0x1]
          %v4490 = vlaneseq
          %v4491 = vshrl.u32 %v4490, 7
          %v4492 = vsub.s32 0, %v4491
          %v4493 = vrot.slane %v4488, %v4492
          %v4559 = vunpack.c.l.b16 %v4424
          %v4560 = vunpack.c.l.b16 %v4425
          %v4561 = vunpack.c.l.b16 %v4426
          %v4562 = vunpack.c.l.b16 %v4427
          %v4563 = vunpack.c.l.b16 %v4428
          %v4564 = vunpack.c.l.b16 %v4429
          %v4565 = vunpack.c.l.b16 %v4430
          %v4566 = vunpack.c.l.b16 %v4431
          %v4567 = vunpack.c.l.b16 %v4432
          %v4568 = vunpack.c.l.b16 %v4433
          %v4569 = vunpack.c.l.b16 %v4434
          %v4570 = vunpack.c.l.b16 %v4435
          %v4571 = vunpack.c.l.b16 %v4436
          %v4572 = vunpack.c.l.b16 %v4437
          %v4573 = vunpack.c.l.b16 %v4438
          %v4574 = vunpack.c.l.b16 %v4439
          %v4575 = vunpack.c.l.b16 %v4440
          %v4576 = vunpack.c.l.b16 %v4441
          %v4577 = vunpack.c.l.b16 %v4442
          %v4578 = vunpack.c.l.b16 %v4443
          %v4579 = vunpack.c.l.b16 %v4444
          %v4580 = vunpack.c.l.b16 %v4445
          %v4581 = vunpack.c.l.b16 %v4446
          %v4582 = vunpack.c.l.b16 %v4447
          %v4583 = vunpack.c.l.b16 %v4448
          %v4584 = vunpack.c.l.b16 %v4449
          %v4585 = vunpack.c.l.b16 %v4450
          %v4586 = vunpack.c.l.b16 %v4451
          %v4587 = vunpack.c.l.b16 %v4452
          %v4588 = vunpack.c.l.b16 %v4453
          %v4589 = vunpack.c.l.b16 %v4454
          %v4590 = vunpack.c.l.b16 %v4455
          %v4591 = vunpack.c.l.b16 %v4456
          %v4592 = vunpack.c.l.b16 %v4457
          %v4593 = vunpack.c.l.b16 %v4458
          %v4594 = vunpack.c.l.b16 %v4459
          %v4595 = vunpack.c.l.b16 %v4460
          %v4596 = vunpack.c.l.b16 %v4461
          %v4597 = vunpack.c.l.b16 %v4462
          %v4598 = vunpack.c.l.b16 %v4463
          %v4599 = vunpack.c.l.b16 %v4464
          %v4600 = vunpack.c.l.b16 %v4465
          %v4601 = vunpack.c.l.b16 %v4466
          %v4602 = vunpack.c.l.b16 %v4467
          %v4603 = vunpack.c.l.b16 %v4468
          %v4604 = vunpack.c.l.b16 %v4469
          %v4605 = vunpack.c.l.b16 %v4470
          %v4606 = vunpack.c.l.b16 %v4471
          %v4607 = vunpack.c.l.b16 %v4472
          %v4608 = vunpack.c.l.b16 %v4473
          %v4609 = vunpack.c.l.b16 %v4474
          %v4610 = vunpack.c.l.b16 %v4475
          %v4611 = vunpack.c.l.b16 %v4476
          %v4612 = vunpack.c.l.b16 %v4477
          %v4613 = vunpack.c.l.b16 %v4478
          %v4614 = vunpack.c.l.b16 %v4479
          %v4615 = vunpack.c.l.b16 %v4480
          %v4616 = vunpack.c.l.b16 %v4481
          %v4617 = vunpack.c.l.b16 %v4482
          %v4618 = vunpack.c.l.b16 %v4483
          %v4619 = vunpack.c.l.b16 %v4484
          %v4620 = vunpack.c.l.b16 %v4485
          %v4621 = vunpack.c.l.b16 %v4486
          %v4622 = vunpack.c.l.b16 %v4487
          %v4623 = vpack.c.b16 %v4560, %v4559
          %v4624 = vpack.c.b16 %v4562, %v4561
          %v4625 = vpack.c.b16 %v4564, %v4563
          %v4626 = vpack.c.b16 %v4566, %v4565
          %v4627 = vpack.c.b16 %v4568, %v4567
          %v4628 = vpack.c.b16 %v4570, %v4569
          %v4629 = vpack.c.b16 %v4572, %v4571
          %v4630 = vpack.c.b16 %v4574, %v4573
          %v4631 = vpack.c.b16 %v4576, %v4575
          %v4632 = vpack.c.b16 %v4578, %v4577
          %v4633 = vpack.c.b16 %v4580, %v4579
          %v4634 = vpack.c.b16 %v4582, %v4581
          %v4635 = vpack.c.b16 %v4584, %v4583
          %v4636 = vpack.c.b16 %v4586, %v4585
          %v4637 = vpack.c.b16 %v4588, %v4587
          %v4638 = vpack.c.b16 %v4590, %v4589
          %v4639 = vpack.c.b16 %v4592, %v4591
          %v4640 = vpack.c.b16 %v4594, %v4593
          %v4641 = vpack.c.b16 %v4596, %v4595
          %v4642 = vpack.c.b16 %v4598, %v4597
          %v4643 = vpack.c.b16 %v4600, %v4599
          %v4644 = vpack.c.b16 %v4602, %v4601
          %v4645 = vpack.c.b16 %v4604, %v4603
          %v4646 = vpack.c.b16 %v4606, %v4605
          %v4647 = vpack.c.b16 %v4608, %v4607
          %v4648 = vpack.c.b16 %v4610, %v4609
          %v4649 = vpack.c.b16 %v4612, %v4611
          %v4650 = vpack.c.b16 %v4614, %v4613
          %v4651 = vpack.c.b16 %v4616, %v4615
          %v4652 = vpack.c.b16 %v4618, %v4617
          %v4653 = vpack.c.b16 %v4620, %v4619
          %v4654 = vpack.c.b16 %v4622, %v4621
          %4687 = vmatprep.subr.bf16.mxu0 0
          %4688 = vmatpush1.bf16.msra.mxu0 %v4630
          %4689 = vmatprep.subr.bf16.mxu0 0
          %4690 = vmatpush1.bf16.msra.mxu0 %v4629
          %4691 = vmatprep.subr.bf16.mxu0 0
          %4692 = vmatpush1.bf16.msra.mxu0 %v4628
          %4693 = vmatprep.subr.bf16.mxu0 0
          %4694 = vmatpush1.bf16.msra.mxu0 %v4627
          %4695 = vmatprep.subr.bf16.mxu0 0
          %4696 = vmatpush1.bf16.msra.mxu0 %v4626
          %4697 = vmatprep.subr.bf16.mxu0 0
          %4698 = vmatpush1.bf16.msra.mxu0 %v4625
          %4699 = vmatprep.subr.bf16.mxu0 0
          %4700 = vmatpush1.bf16.msra.mxu0 %v4624
          %4701 = vmatprep.subr.bf16.mxu0 0
          %4702 = vmatpush1.bf16.msra.mxu0 %v4623
          %4703 = vmatprep.subr.bf16.mxu0 0
          %4704 = vmatpush2.bf16.msra.mxu0 %v4638
          %4705 = vmatprep.subr.bf16.mxu0 0
          %4706 = vmatpush2.bf16.msra.mxu0 %v4637
          %4707 = vmatprep.subr.bf16.mxu0 0
          %4708 = vmatpush2.bf16.msra.mxu0 %v4636
          %4709 = vmatprep.subr.bf16.mxu0 0
          %4710 = vmatpush2.bf16.msra.mxu0 %v4635
          %4711 = vmatprep.subr.bf16.mxu0 0
          %4712 = vmatpush2.bf16.msra.mxu0 %v4634
          %4713 = vmatprep.subr.bf16.mxu0 0
          %4714 = vmatpush2.bf16.msra.mxu0 %v4633
          %4715 = vmatprep.subr.bf16.mxu0 0
          %4716 = vmatpush2.bf16.msra.mxu0 %v4632
          %4717 = vmatprep.subr.bf16.mxu0 0
          %4718 = vmatpush2.bf16.msra.mxu0 %v4631
          %4719 = vmatprep.mubr.bf16.mxu0 %v4421
          %4720 = vmatmul.mubr.bf16.gmra.mxu0 %v4420
          %v4721 = vpop.f32.mrf.mxu0
          %v4722 = vadd.f32 %v4493, %v4721
          %v4723 = vpop.f32.mrf.mxu0
          %v4724 = vpop.f32.mrf.mxu0
          %v4725 = vpop.f32.mrf.mxu0
          %4726 = vdwg.mxu0
          %4727 = vmatprep.subr.bf16.mxu0 0
          %4728 = vmatpush1.bf16.msra.mxu0 %v4646
          %4729 = vmatprep.subr.bf16.mxu0 0
          %4730 = vmatpush1.bf16.msra.mxu0 %v4645
          %4731 = vmatprep.subr.bf16.mxu0 0
          %4732 = vmatpush1.bf16.msra.mxu0 %v4644
          %4733 = vmatprep.subr.bf16.mxu0 0
          %4734 = vmatpush1.bf16.msra.mxu0 %v4643
          %4735 = vmatprep.subr.bf16.mxu0 0
          %4736 = vmatpush1.bf16.msra.mxu0 %v4642
          %4737 = vmatprep.subr.bf16.mxu0 0
          %4738 = vmatpush1.bf16.msra.mxu0 %v4641
          %4739 = vmatprep.subr.bf16.mxu0 0
          %4740 = vmatpush1.bf16.msra.mxu0 %v4640
          %4741 = vmatprep.subr.bf16.mxu0 0
          %4742 = vmatpush1.bf16.msra.mxu0 %v4639
          %4743 = vmatprep.subr.bf16.mxu0 0
          %4744 = vmatpush2.bf16.msra.mxu0 %v4654
          %4745 = vmatprep.subr.bf16.mxu0 0
          %4746 = vmatpush2.bf16.msra.mxu0 %v4653
          %4747 = vmatprep.subr.bf16.mxu0 0
          %4748 = vmatpush2.bf16.msra.mxu0 %v4652
          %4749 = vmatprep.subr.bf16.mxu0 0
          %4750 = vmatpush2.bf16.msra.mxu0 %v4651
          %4751 = vmatprep.subr.bf16.mxu0 0
          %4752 = vmatpush2.bf16.msra.mxu0 %v4650
          %4753 = vmatprep.subr.bf16.mxu0 0
          %4754 = vmatpush2.bf16.msra.mxu0 %v4649
          %4755 = vmatprep.subr.bf16.mxu0 0
          %4756 = vmatpush2.bf16.msra.mxu0 %v4648
          %4757 = vmatprep.subr.bf16.mxu0 0
          %4758 = vmatpush2.bf16.msra.mxu0 %v4647
          %4759 = vmatprep.mubr.bf16.mxu0 %v4423
          %4760 = vmatmul.mubr.bf16.gmra.mxu0 %v4422
          %v4761 = vpop.f32.mrf.mxu0
          %v4762 = vadd.f32 %v4722, %v4761
          %v4763 = vpop.f32.mrf.mxu0
          %v4764 = vpop.f32.mrf.mxu0
          %v4765 = vpop.f32.mrf.mxu0
          %4766 = vdwg.mxu0
          %4767 = vst [vmem:[%s10] sm:$0x3] %v4762
        $region104: #{actor_critic_forward.1} parent=59 // pred_fallthru
          _
        // Predicated region
        $region105: #{actor_critic_forward.1} parent=59 // pred_check
          %p4768 = pneg %p261
        $region106: #{actor_critic_forward.1} parent=59 // pred_check_branch
          %4770 = sbr.rel (%p4768) target = $region108
        $region107: #{actor_critic_forward.1} parent=59 // pred_region
          _
        $region108: #{actor_critic_forward.1} parent=59 // pred_fallthru
          _
        // Predicated region
        $region109: #{actor_critic_forward.1} parent=59 // pred_check
          %p4771 = pneg %p261
        $region110: #{actor_critic_forward.1} parent=59 // pred_check_branch
          %4773 = sbr.rel (%p4771) target = $region112
        $region111: #{actor_critic_forward.1} parent=59 // pred_region
          _
        $region112: #{actor_critic_forward.1} parent=59 // pred_fallthru
          _
      $region60: #{actor_critic_forward.1} parent=5 // pred_fallthru
        _
      %p4774 = scmp.le.s32.totalorder 2, %s23
      // Predicated region
      $region113: #{actor_critic_forward.1} parent=5 // pred_check
        %p4775 = pneg %p4774
      $region114: #{actor_critic_forward.1} parent=5 // pred_check_branch
        %4777 = sbr.rel (%p4775) target = $region116
      $region115: #{actor_critic_forward.1} parent=5 // pred_region
        %s4778 = ssub.s32 %s23, 2
      $region116: #{actor_critic_forward.1} parent=5 // pred_fallthru
        _
    $region6: #{actor_critic_forward.1} parent=1 // loop_footer
      %s27 = sadd.s32 1, %s23
    $region7: #{actor_critic_forward.1} parent=1 // loop_footer_branch
      %22 = sbr.rel target = $region3
    $region8: #{actor_critic_forward.1} parent=1 // loop_exit
      _
    %4779 = vsyncpa [#allocation4], 1
    %s4780 = scalar_lea.sflag [#allocation4], 1
    %4781 = vsyncpa %s4780, 1
    %4782 = vsyncpa [#allocation6], 1
    %4783 = vsyncpa [#allocation9], 1
    %4784 = vsyncpa [#allocation12], 1
    %4785 = vsyncpa [#allocation15], 1

</llo_original>
